<compile_context>
chip_gen: v6e
topology: v6e:2x2x1
jax: 0.10.0
libtpu: 0.0.40
codegen_flags: <defaults>
</compile_context>

<pallas_src>
import functools

import jax
import jax.numpy as jnp
from jax import lax
from jax.experimental import pallas as pl
from jax.experimental.pallas import tpu as pltpu


# ------------------------------ helpers ------------------------------------

def _row_tile(m):
    """Row tile: prefer 256 (VMEM-safe on v5e/v7x), keep >=2 grid steps."""
    for t in (256, 128, 64, 32, 16, 8):
        if m % t == 0 and m // t >= 2:
            return t
    return m                      # small/odd M: single full-extent block


def _cparams(n_parallel_axes, big_vmem=False):
    kw = {}
    if big_vmem:
        # Weight-resident kernels (QKV/Wo or W1/W2 + (tm,FF) scratch): raise
        # scoped-VMEM headroom above the v5e (16 MiB) / v7x (32 MiB) defaults.
        kw["vmem_limit_bytes"] = 48 * 1024 * 1024
    return pltpu.CompilerParams(
        dimension_semantics=("parallel",) * n_parallel_axes, **kw)


def _ln_f32(x, gamma, beta, eps=1e-12):
    mean = jnp.mean(x, axis=-1, keepdims=True)
    var = jnp.mean(jnp.square(x - mean), axis=-1, keepdims=True)
    return (x - mean) * lax.rsqrt(var + eps) * gamma + beta


# ----------------------------- Pallas kernels -------------------------------

def _emb_layernorm_kernel(x_ref, g_ref, b_ref, o_ref):
    x = x_ref[...].astype(jnp.float32)
    o_ref[...] = _ln_f32(x, g_ref[...], b_ref[...]).astype(o_ref.dtype)


def _attn_block_kernel(x_ref, wqkv_ref, bqkv_ref, wo_ref, bo_ref, g_ref, b_ref,
                       o_ref, ctx_ref, *, num_heads, head_dim):
    # One batch row per grid step.  Fuses: QKV projection, per-head attention,
    # output projection, residual add and LayerNorm.
    # NOTE: the sciwing module calls BertModel(tokens, segments) without an
    # attention mask, so HF defaults to an all-ones mask — padding positions
    # participate in the softmax here too (matching the reference).
    x = x_ref[0]                                       # (S, H) bf16
    H = num_heads * head_dim
    scale = 1.0 / (head_dim ** 0.5)
    for h in range(num_heads):                         # static, small loop
        lo = h * head_dim
        # Static weight-ref slices; one narrow matmul per projection, f32 acc.
        q = jnp.dot(x, wqkv_ref[:, lo:lo + head_dim],
                    preferred_element_type=jnp.float32)
        q = (q + bqkv_ref[:, lo:lo + head_dim]) * scale       # scale folded in q
        k = jnp.dot(x, wqkv_ref[:, H + lo:H + lo + head_dim],
                    preferred_element_type=jnp.float32)
        k = k + bqkv_ref[:, H + lo:H + lo + head_dim]
        v = jnp.dot(x, wqkv_ref[:, 2 * H + lo:2 * H + lo + head_dim],
                    preferred_element_type=jnp.float32)
        v = v + bqkv_ref[:, 2 * H + lo:2 * H + lo + head_dim]
        # scores: contract last dims (no explicit K transpose)
        s = lax.dot_general(q.astype(jnp.bfloat16), k.astype(jnp.bfloat16),
                            (((1,), (1,)), ((), ())),
                            preferred_element_type=jnp.float32)
        s = s - jnp.max(s, axis=-1, keepdims=True)
        p = jnp.exp(s)
        p = p * pl.reciprocal(jnp.sum(p, axis=-1, keepdims=True), approx=True)
        ctx_ref[:, lo:lo + head_dim] = jnp.dot(
            p.astype(jnp.bfloat16), v.astype(jnp.bfloat16),
            preferred_element_type=jnp.float32).astype(ctx_ref.dtype)
    # Output projection + residual + LayerNorm (all in one epilogue).
    y = jnp.dot(ctx_ref[...], wo_ref[...], preferred_element_type=jnp.float32)
    y = y + bo_ref[...] + x.astype(jnp.float32)
    o_ref[0] = _ln_f32(y, g_ref[...], b_ref[...]).astype(o_ref.dtype)


def _ffn_block_kernel(x_ref, w1_ref, b1_ref, w2_ref, b2_ref, g_ref, b_ref,
                      acc_in_ref, *rest, last_layer):
    # Fused FFN: x@W1 + gelu -> VMEM scratch -> @W2 + bias + residual + LN2,
    # plus running layer-sum accumulation.  Last layer skips the dead `hidden`
    # output (only the accumulator feeds the gather).
    if last_layer:
        acc_out_ref, ff_ref = rest
        h_ref = None
    else:
        h_ref, acc_out_ref, ff_ref = rest
    x = x_ref[...]                                     # (tm, H) bf16
    h = jnp.dot(x, w1_ref[...], preferred_element_type=jnp.float32)
    h = h + b1_ref[...]
    # TODO(synk): HF BERT uses exact erf GELU; tanh approximation kept for
    # guaranteed Mosaic lowering (small systematic deviation).
    ff_ref[...] = jax.nn.gelu(h, approximate=True).astype(ff_ref.dtype)
    y = jnp.dot(ff_ref[...], w2_ref[...], preferred_element_type=jnp.float32)
    y = y + b2_ref[...] + x.astype(jnp.float32)
    y = _ln_f32(y, g_ref[...], b_ref[...])
    if not last_layer:
        h_ref[...] = y.astype(h_ref.dtype)
    acc_out_ref[...] = acc_in_ref[...] + y             # f32 running layer sum


def _gather_kernel(idx_ref, enc_ref, o_ref, *, scale):
    # One-hot gather of each word's first word-piece; idx = -1 -> zero row.
    enc = enc_ref[0].astype(jnp.float32)               # (S, H)
    idx = idx_ref[0]                                   # (1, W) int32
    S = enc.shape[0]
    W = idx.shape[-1]
    pos = lax.broadcasted_iota(jnp.int32, (S, W), 0)
    onehot = (pos == idx).astype(jnp.float32)          # (S, W) via broadcast
    out = lax.dot_general(onehot, enc, (((0,), (0,)), ((), ())),
                          preferred_element_type=jnp.float32)
    if scale != 1.0:
        out = out * scale                              # scale the (W,H) output
    o_ref[0] = out


# ------------------------------ wrappers -------------------------------------

def embedding_layernorm(x, gamma, beta):
    M, H = x.shape
    tm = _row_tile(M)
    return pl.pallas_call(
        _emb_layernorm_kernel,
        out_shape=jax.ShapeDtypeStruct((M, H), jnp.bfloat16),
        grid=(M // tm,),
        in_specs=[pl.BlockSpec((tm, H), lambda i: (i, 0)),
                  pl.BlockSpec((1, H), lambda i: (0, 0)),
                  pl.BlockSpec((1, H), lambda i: (0, 0))],
        out_specs=pl.BlockSpec((tm, H), lambda i: (i, 0)),
        compiler_params=_cparams(1),
    )(x, gamma.reshape(1, H), beta.reshape(1, H))


def attention_block(x_bsh, wqkv, bqkv, wo, bo, gamma, beta, num_heads):
    B, S, H = x_bsh.shape
    dh = H // num_heads
    kernel = functools.partial(_attn_block_kernel, num_heads=num_heads,
                               head_dim=dh)
    return pl.pallas_call(
        kernel,
        out_shape=jax.ShapeDtypeStruct((B, S, H), jnp.bfloat16),
        grid=(B,),
        in_specs=[pl.BlockSpec((1, S, H), lambda b: (b, 0, 0)),
                  pl.BlockSpec((H, 3 * H), lambda b: (0, 0)),
                  pl.BlockSpec((1, 3 * H), lambda b: (0, 0)),
                  pl.BlockSpec((H, H), lambda b: (0, 0)),
                  pl.BlockSpec((1, H), lambda b: (0, 0)),
                  pl.BlockSpec((1, H), lambda b: (0, 0)),
                  pl.BlockSpec((1, H), lambda b: (0, 0))],
        out_specs=pl.BlockSpec((1, S, H), lambda b: (b, 0, 0)),
        scratch_shapes=[pltpu.VMEM((S, H), jnp.bfloat16)],
        compiler_params=_cparams(1, big_vmem=True),
    )(x_bsh, wqkv, bqkv.reshape(1, 3 * H), wo, bo.reshape(1, H),
      gamma.reshape(1, H), beta.reshape(1, H))


def ffn_block(x, w1, b1, w2, b2, gamma, beta, acc_in, last_layer=False):
    M, H = x.shape
    FF = w1.shape[1]
    tm = _row_tile(M)
    row = pl.BlockSpec((tm, H), lambda i: (i, 0))
    kernel = functools.partial(_ffn_block_kernel, last_layer=last_layer)
    if last_layer:
        out_shape = jax.ShapeDtypeStruct((M, H), jnp.float32)
        out_specs = row
        aliases = {7: 0}                       # acc_in buffer reused for acc_out
    else:
        out_shape = (jax.ShapeDtypeStruct((M, H), jnp.bfloat16),
                     jax.ShapeDtypeStruct((M, H), jnp.float32))
        out_specs = (row, row)
        aliases = {7: 1}
    return pl.pallas_call(
        kernel,
        out_shape=out_shape,
        grid=(M // tm,),
        in_specs=[row,
                  pl.BlockSpec((H, FF), lambda i: (0, 0)),
                  pl.BlockSpec((1, FF), lambda i: (0, 0)),
                  pl.BlockSpec((FF, H), lambda i: (0, 0)),
                  pl.BlockSpec((1, H), lambda i: (0, 0)),
                  pl.BlockSpec((1, H), lambda i: (0, 0)),
                  pl.BlockSpec((1, H), lambda i: (0, 0)),
                  row],
        out_specs=out_specs,
        scratch_shapes=[pltpu.VMEM((tm, FF), jnp.bfloat16)],
        input_output_aliases=aliases,
        compiler_params=_cparams(1, big_vmem=True),
    )(x, w1, b1.reshape(1, FF), w2, b2.reshape(1, H),
      gamma.reshape(1, H), beta.reshape(1, H), acc_in)


def aggregate_gather(encoding_bsh, word_start_idx, num_layers, aggregation):
    B, S, H = encoding_bsh.shape
    W = word_start_idx.shape[1]
    scale = 1.0 / num_layers if aggregation == "average" else 1.0
    kernel = functools.partial(_gather_kernel, scale=scale)
    return pl.pallas_call(
        kernel,
        out_shape=jax.ShapeDtypeStruct((B, W, H), jnp.float32),
        grid=(B,),
        in_specs=[pl.BlockSpec((1, 1, W), lambda b: (b, 0, 0)),
                  pl.BlockSpec((1, S, H), lambda b: (b, 0, 0))],
        out_specs=pl.BlockSpec((1, W, H), lambda b: (b, 0, 0)),
        compiler_params=_cparams(1),
    )(word_start_idx.reshape(B, 1, W), encoding_bsh)


# ------------------------------ BERT (glue) ----------------------------------

def bert_layer(hidden_bsh, acc, p, num_heads, last_layer):
    B, S, H = hidden_bsh.shape
    a = attention_block(hidden_bsh, p["wqkv"], p["bqkv"], p["wo"], p["bo"],
                        p["ln1_g"], p["ln1_b"], num_heads)       # (B,S,H) bf16
    out = ffn_block(a.reshape(B * S, H), p["w1"], p["b1"], p["w2"], p["b2"],
                    p["ln2_g"], p["ln2_b"], acc, last_layer=last_layer)
    if last_layer:
        return None, out
    hidden, acc = out
    return hidden.reshape(B, S, H), acc


def bert_embedder_forward(params, token_ids, word_start_idx, *, num_heads,
                          aggregation="sum"):
    B, S = token_ids.shape
    H = params["word_emb"].shape[1]
    # Embedding lookups / adds are glue (XLA); layernorm runs in Pallas.
    x = jnp.take(params["word_emb"], token_ids, axis=0)
    x = x + params["pos_emb"][:S][None, :, :]
    x = x + params["type_emb"][0][None, None, :]          # segment ids = 0
    hidden = embedding_layernorm(x.reshape(B * S, H),
                                 params["emb_ln_g"], params["emb_ln_b"])
    hidden = hidden.reshape(B, S, H)
    # Running f32 sum of the 12 encoder-layer outputs (embedding output is NOT
    # included, matching the module's encoded_layers assert of len == 12).
    acc = jnp.zeros((B * S, H), jnp.float32)
    n_layers = len(params["layers"])
    for li, lp in enumerate(params["layers"]):
        hidden, acc = bert_layer(hidden, acc, lp, num_heads,
                                 last_layer=(li == n_layers - 1))
    # dropout_value = 0.0 -> identity
    return aggregate_gather(acc.reshape(B, S, H), word_start_idx,
                            num_layers=n_layers, aggregation=aggregation)


def make_params(key, vocab, max_pos, hidden, ff, num_layers):
    def init(k, shape, dtype=jnp.float32):
        return (jax.random.normal(k, shape, jnp.float32) * 0.02).astype(dtype)

    keys = jax.random.split(key, 3 + num_layers)
    params = {
        "word_emb": init(keys[0], (vocab, hidden)),
        "pos_emb": init(keys[1], (max_pos, hidden)),
        "type_emb": init(keys[2], (2, hidden)),
        "emb_ln_g": jnp.ones((hidden,), jnp.float32),
        "emb_ln_b": jnp.zeros((hidden,), jnp.float32),
        "layers": [],
    }
    wdt = jnp.bfloat16   # MXU input dtype; f32 accumulation inside kernels
    for i in range(num_layers):
        lk = jax.random.split(keys[3 + i], 6)
        wq = init(lk[0], (hidden, hidden), wdt)
        wk = init(lk[1], (hidden, hidden), wdt)
        wv = init(lk[2], (hidden, hidden), wdt)
        params["layers"].append({
            # Fused QKV weight [Wq | Wk | Wv]; consumed inside the attention
            # kernel via per-head column slices.
            "wqkv": jnp.concatenate([wq, wk, wv], axis=1),
            "bqkv": jnp.zeros((3 * hidden,), jnp.float32),
            "wo": init(lk[3], (hidden, hidden), wdt),
            "bo": jnp.zeros((hidden,), jnp.float32),
            "ln1_g": jnp.ones((hidden,), jnp.float32),
            "ln1_b": jnp.zeros((hidden,), jnp.float32),
            "w1": init(lk[4], (hidden, ff), wdt),
            "b1": jnp.zeros((ff,), jnp.float32),
            "w2": init(lk[5], (ff, hidden), wdt),
            "b2": jnp.zeros((hidden,), jnp.float32),
            "ln2_g": jnp.ones((hidden,), jnp.float32),
            "ln2_b": jnp.zeros((hidden,), jnp.float32),
        })
    return params


# --------------------------------- main --------------------------------------

if __name__ == "__main__":
    # TODO(synk): tokenization and pretrained-weight loading are synthesized.
    key = jax.random.PRNGKey(0)

    B = 2                      # batch of 2 "lines"
    # per-line: number of word-pieces each word token splits into
    sub_counts = [[1, 2, 1, 1, 2, 1], [2, 1, 1, 1]]
    bert_lens = [sum(c) for c in sub_counts]          # [8, 5]
    max_len_bert = max(bert_lens)                     # 8
    max_len_words = max(len(c) for c in sub_counts)   # 6
    S = max_len_bert + 2                              # +[CLS]/[SEP] -> 10
    W = max_len_words

    H, L, NH, FF, V = 32, 12, 4, 128, 64              # 'bert-base' => 12 layers

    # synthetic word-piece token ids: [CLS]=1, content in [3, V), [SEP]=2, PAD=0
    tok_rows = []
    for i, blen in enumerate(bert_lens):
        content = jax.random.randint(jax.random.fold_in(key, 100 + i),
                                     (blen,), 3, V, dtype=jnp.int32)
        row = jnp.concatenate([
            jnp.array([1], jnp.int32), content, jnp.array([2], jnp.int32),
            jnp.zeros((S - blen - 2,), jnp.int32)])
        tok_rows.append(row)
    token_ids = jnp.stack(tok_rows)                   # (B, S) int32

    # sequence position of each word's FIRST word-piece (+1 for [CLS]);
    # -1 marks padded word slots (yields a zero embedding, as in the module)
    idx_rows = []
    for counts in sub_counts:
        cum, idxs = 0, []
        for c in counts:
            idxs.append(1 + cum)
            cum += c
        idxs += [-1] * (W - len(counts))
        idx_rows.append(idxs)
    word_start_idx = jnp.array(idx_rows, jnp.int32)   # (B, W)

    params = make_params(key, V, S, H, FF, L)

    fwd = jax.jit(functools.partial(bert_embedder_forward,
                                    num_heads=NH, aggregation="sum"))
    out = fwd(params, token_ids, word_start_idx)
    out = jax.block_until_ready(out)
    assert out.shape == (B, W, H), out.shape
    # padded word slots must be exactly zero
    assert float(jnp.abs(out[1, 4:]).max()) == 0.0
    print("KERNEL_OK")
</pallas_src>

<mosaic_0001>
module attributes {stable_mosaic.version = 11 : i64} {
  func.func @_emb_layernorm_kernel(%arg0: i32, %arg1: memref<20x32xf32, #tpu.memory_space<vmem>>, %arg2: memref<1x32xf32, #tpu.memory_space<vmem>>, %arg3: memref<1x32xf32, #tpu.memory_space<vmem>>, %arg4: memref<20x32xbf16, #tpu.memory_space<vmem>>) attributes {dimension_semantics = [#tpu.dimension_semantics<parallel>], iteration_bounds = array<i64: 1>, scalar_prefetch = 0 : i64, scratch_operands = 0 : i64, tpu.core_type = #tpu.core_type<tc>, window_params = [{transform_indices = @transform_0, window_bounds = array<i64: 20, 32>}, {pipeline_mode = #tpu.pipeline_mode<synchronous>, transform_indices = @transform_1, window_bounds = array<i64: 1, 32>}, {pipeline_mode = #tpu.pipeline_mode<synchronous>, transform_indices = @transform_2, window_bounds = array<i64: 1, 32>}, {transform_indices = @transform_3, window_bounds = array<i64: 20, 32>}]} {
    %c0 = arith.constant 0 : index
    %c0_0 = arith.constant 0 : index
    %0 = vector.load %arg1[%c0, %c0_0] : memref<20x32xf32, #tpu.memory_space<vmem>>, vector<20x32xf32>
    %c0_1 = arith.constant 0 : index
    %c0_2 = arith.constant 0 : index
    %1 = vector.load %arg2[%c0_1, %c0_2] : memref<1x32xf32, #tpu.memory_space<vmem>>, vector<1x32xf32>
    %c0_3 = arith.constant 0 : index
    %c0_4 = arith.constant 0 : index
    %2 = vector.load %arg3[%c0_3, %c0_4] : memref<1x32xf32, #tpu.memory_space<vmem>>, vector<1x32xf32>
    %cst = arith.constant dense<0.000000e+00> : vector<20xf32>
    %3 = vector.multi_reduction <add>, %0, %cst [1] : vector<20x32xf32> to vector<20xf32>
    %4 = vector.shape_cast %3 : vector<20xf32> to vector<20x1xf32>
    %cst_5 = arith.constant 3.200000e+01 : f32
    %5 = vector.broadcast %cst_5 : f32 to vector<20x1xf32>
    %6 = arith.divf %4, %5 : vector<20x1xf32>
    %7 = vector.broadcast %6 : vector<20x1xf32> to vector<20x32xf32>
    %8 = arith.subf %0, %7 : vector<20x32xf32>
    %9 = arith.mulf %8, %8 : vector<20x32xf32>
    %cst_6 = arith.constant dense<0.000000e+00> : vector<20xf32>
    %10 = vector.multi_reduction <add>, %9, %cst_6 [1] : vector<20x32xf32> to vector<20xf32>
    %11 = vector.shape_cast %10 : vector<20xf32> to vector<20x1xf32>
    %cst_7 = arith.constant 3.200000e+01 : f32
    %12 = vector.broadcast %cst_7 : f32 to vector<20x1xf32>
    %13 = arith.divf %11, %12 : vector<20x1xf32>
    %14 = vector.broadcast %6 : vector<20x1xf32> to vector<20x32xf32>
    %15 = arith.subf %0, %14 : vector<20x32xf32>
    %cst_8 = arith.constant 9.99999996E-13 : f32
    %16 = vector.broadcast %cst_8 : f32 to vector<20x1xf32>
    %17 = arith.addf %13, %16 : vector<20x1xf32>
    %18 = math.rsqrt %17 : vector<20x1xf32>
    %19 = vector.broadcast %18 : vector<20x1xf32> to vector<20x32xf32>
    %20 = arith.mulf %15, %19 : vector<20x32xf32>
    %21 = vector.broadcast %1 : vector<1x32xf32> to vector<20x32xf32>
    %22 = arith.mulf %20, %21 : vector<20x32xf32>
    %23 = vector.broadcast %2 : vector<1x32xf32> to vector<20x32xf32>
    %24 = arith.addf %22, %23 : vector<20x32xf32>
    %25 = arith.truncf %24 : vector<20x32xf32> to vector<20x32xbf16>
    %c0_9 = arith.constant 0 : index
    %c0_10 = arith.constant 0 : index
    %26 = vector.load %arg4[%c0_9, %c0_10] : memref<20x32xbf16, #tpu.memory_space<vmem>>, vector<20x32xbf16>
    tpu.vector_store %arg4[%c0_9, %c0_10], %25 {strides = array<i32>} : memref<20x32xbf16, #tpu.memory_space<vmem>>, vector<20x32xbf16>,
    return
  }
  func.func @transform_0(%arg0: i32) -> (i32, i32) {
    %c0_i32 = arith.constant 0 : i32
    %c0_i32_0 = arith.constant 0 : i32
    return %arg0, %c0_i32 : i32, i32
  }
  func.func @transform_1(%arg0: i32) -> (i32, i32) {
    %c0_i32 = arith.constant 0 : i32
    %c0_i32_0 = arith.constant 0 : i32
    %c0_i32_1 = arith.constant 0 : i32
    return %c0_i32, %c0_i32_0 : i32, i32
  }
  func.func @transform_2(%arg0: i32) -> (i32, i32) {
    %c0_i32 = arith.constant 0 : i32
    %c0_i32_0 = arith.constant 0 : i32
    %c0_i32_1 = arith.constant 0 : i32
    return %c0_i32, %c0_i32_0 : i32, i32
  }
  func.func @transform_3(%arg0: i32) -> (i32, i32) {
    %c0_i32 = arith.constant 0 : i32
    %c0_i32_0 = arith.constant 0 : i32
    return %arg0, %c0_i32 : i32, i32
  }
}

module attributes {stable_mosaic.version = 11 : i64} {
  func.func @_attn_block_kernel(%arg0: i32, %arg1: memref<1x10x32xbf16, #tpu.memory_space<vmem>>, %arg2: memref<32x96xbf16, #tpu.memory_space<vmem>>, %arg3: memref<1x96xf32, #tpu.memory_space<vmem>>, %arg4: memref<32x32xbf16, #tpu.memory_space<vmem>>, %arg5: memref<1x32xf32, #tpu.memory_space<vmem>>, %arg6: memref<1x32xf32, #tpu.memory_space<vmem>>, %arg7: memref<1x32xf32, #tpu.memory_space<vmem>>, %arg8: memref<1x10x32xbf16, #tpu.memory_space<vmem>>, %arg9: memref<10x32xbf16, #tpu.memory_space<vmem>>) attributes {dimension_semantics = [#tpu.dimension_semantics<parallel>], iteration_bounds = array<i64: 2>, scalar_prefetch = 0 : i64, scratch_operands = 1 : i64, tpu.core_type = #tpu.core_type<tc>, window_params = [{transform_indices = @transform_0, window_bounds = array<i64: 1, 10, 32>}, {pipeline_mode = #tpu.pipeline_mode<synchronous>, transform_indices = @transform_1, window_bounds = array<i64: 32, 96>}, {pipeline_mode = #tpu.pipeline_mode<synchronous>, transform_indices = @transform_2, window_bounds = array<i64: 1, 96>}, {pipeline_mode = #tpu.pipeline_mode<synchronous>, transform_indices = @transform_3, window_bounds = array<i64: 32, 32>}, {pipeline_mode = #tpu.pipeline_mode<synchronous>, transform_indices = @transform_4, window_bounds = array<i64: 1, 32>}, {pipeline_mode = #tpu.pipeline_mode<synchronous>, transform_indices = @transform_5, window_bounds = array<i64: 1, 32>}, {pipeline_mode = #tpu.pipeline_mode<synchronous>, transform_indices = @transform_6, window_bounds = array<i64: 1, 32>}, {transform_indices = @transform_7, window_bounds = array<i64: 1, 10, 32>}]} {
    %c0 = arith.constant 0 : index
    %c0_0 = arith.constant 0 : index
    %c0_1 = arith.constant 0 : index
    %0 = vector.load %arg1[%c0, %c0_0, %c0_1] : memref<1x10x32xbf16, #tpu.memory_space<vmem>>, vector<1x10x32xbf16>
    %1 = vector.shape_cast %0 : vector<1x10x32xbf16> to vector<10x32xbf16>
    %c0_2 = arith.constant 0 : index
    %c0_3 = arith.constant 0 : index
    %2 = vector.load %arg2[%c0_2, %c0_3] : memref<32x96xbf16, #tpu.memory_space<vmem>>, vector<32x8xbf16>
    %cst = arith.constant dense<0.000000e+00> : vector<10x8xf32>
    %3 = tpu.matmul %1, %2, %cst {dimension_numbers = #tpu.dot_dimension_numbers<[1], [0], [0], [1], [0, 0, 1, 1], [], []>} : vector<10x32xbf16>, vector<32x8xbf16>, vector<10x8xf32> -> vector<10x8xf32>
    %c0_4 = arith.constant 0 : index
    %c0_5 = arith.constant 0 : index
    %4 = vector.load %arg3[%c0_4, %c0_5] : memref<1x96xf32, #tpu.memory_space<vmem>>, vector<1x8xf32>
    %5 = vector.broadcast %4 : vector<1x8xf32> to vector<10x8xf32>
    %6 = arith.addf %3, %5 : vector<10x8xf32>
    %cst_6 = arith.constant 0.353553385 : f32
    %7 = vector.broadcast %cst_6 : f32 to vector<10x8xf32>
    %8 = arith.mulf %6, %7 : vector<10x8xf32>
    %c0_7 = arith.constant 0 : index
    %c32 = arith.constant 32 : index
    %9 = vector.load %arg2[%c0_7, %c32] : memref<32x96xbf16, #tpu.memory_space<vmem>>, vector<32x8xbf16>
    %cst_8 = arith.constant dense<0.000000e+00> : vector<10x8xf32>
    %10 = tpu.matmul %1, %9, %cst_8 {dimension_numbers = #tpu.dot_dimension_numbers<[1], [0], [0], [1], [0, 0, 1, 1], [], []>} : vector<10x32xbf16>, vector<32x8xbf16>, vector<10x8xf32> -> vector<10x8xf32>
    %c0_9 = arith.constant 0 : index
    %c32_10 = arith.constant 32 : index
    %11 = vector.load %arg3[%c0_9, %c32_10] : memref<1x96xf32, #tpu.memory_space<vmem>>, vector<1x8xf32>
    %12 = vector.broadcast %11 : vector<1x8xf32> to vector<10x8xf32>
    %13 = arith.addf %10, %12 : vector<10x8xf32>
    %c0_11 = arith.constant 0 : index
    %c64 = arith.constant 64 : index
    %14 = vector.load %arg2[%c0_11, %c64] : memref<32x96xbf16, #tpu.memory_space<vmem>>, vector<32x8xbf16>
    %cst_12 = arith.constant dense<0.000000e+00> : vector<10x8xf32>
    %15 = tpu.matmul %1, %14, %cst_12 {dimension_numbers = #tpu.dot_dimension_numbers<[1], [0], [0], [1], [0, 0, 1, 1], [], []>} : vector<10x32xbf16>, vector<32x8xbf16>, vector<10x8xf32> -> vector<10x8xf32>
    %c0_13 = arith.constant 0 : index
    %c64_14 = arith.constant 64 : index
    %16 = vector.load %arg3[%c0_13, %c64_14] : memref<1x96xf32, #tpu.memory_space<vmem>>, vector<1x8xf32>
    %17 = vector.broadcast %16 : vector<1x8xf32> to vector<10x8xf32>
    %18 = arith.addf %15, %17 : vector<10x8xf32>
    %19 = arith.truncf %8 : vector<10x8xf32> to vector<10x8xbf16>
    %20 = arith.truncf %13 : vector<10x8xf32> to vector<10x8xbf16>
    %cst_15 = arith.constant dense<0.000000e+00> : vector<10x10xf32>
    %21 = tpu.matmul %19, %20, %cst_15 {dimension_numbers = #tpu.dot_dimension_numbers<[1], [1], [0], [0], [0, 0, 1, 0], [], []>} : vector<10x8xbf16>, vector<10x8xbf16>, vector<10x10xf32> -> vector<10x10xf32>
    %cst_16 = arith.constant dense<0xFF800000> : vector<10xf32>
    %22 = vector.multi_reduction <maximumf>, %21, %cst_16 [1] : vector<10x10xf32> to vector<10xf32>
    %23 = vector.shape_cast %22 : vector<10xf32> to vector<10x1xf32>
    %24 = vector.broadcast %23 : vector<10x1xf32> to vector<10x10xf32>
    %25 = arith.subf %21, %24 : vector<10x10xf32>
    %26 = math.exp %25 : vector<10x10xf32>
    %cst_17 = arith.constant dense<0.000000e+00> : vector<10xf32>
    %27 = vector.multi_reduction <add>, %26, %cst_17 [1] : vector<10x10xf32> to vector<10xf32>
    %28 = vector.shape_cast %27 : vector<10xf32> to vector<10x1xf32>
    %29 = tpu.reciprocal %28 {approx = true} : vector<10x1xf32> -> vector<10x1xf32>
    %30 = vector.broadcast %29 : vector<10x1xf32> to vector<10x10xf32>
    %31 = arith.mulf %26, %30 : vector<10x10xf32>
    %32 = arith.truncf %31 : vector<10x10xf32> to vector<10x10xbf16>
    %33 = arith.truncf %18 : vector<10x8xf32> to vector<10x8xbf16>
    %cst_18 = arith.constant dense<0.000000e+00> : vector<10x8xf32>
    %34 = tpu.matmul %32, %33, %cst_18 {dimension_numbers = #tpu.dot_dimension_numbers<[1], [0], [0], [1], [0, 0, 1, 1], [], []>} : vector<10x10xbf16>, vector<10x8xbf16>, vector<10x8xf32> -> vector<10x8xf32>
    %35 = arith.truncf %34 : vector<10x8xf32> to vector<10x8xbf16>
    %c0_19 = arith.constant 0 : index
    %c0_20 = arith.constant 0 : index
    %36 = vector.load %arg9[%c0_19, %c0_20] : memref<10x32xbf16, #tpu.memory_space<vmem>>, vector<10x8xbf16>
    tpu.vector_store %arg9[%c0_19, %c0_20], %35 {strides = array<i32>} : memref<10x32xbf16, #tpu.memory_space<vmem>>, vector<10x8xbf16>,
    %c0_21 = arith.constant 0 : index
    %c8 = arith.constant 8 : index
    %37 = vector.load %arg2[%c0_21, %c8] : memref<32x96xbf16, #tpu.memory_space<vmem>>, vector<32x8xbf16>
    %cst_22 = arith.constant dense<0.000000e+00> : vector<10x8xf32>
    %38 = tpu.matmul %1, %37, %cst_22 {dimension_numbers = #tpu.dot_dimension_numbers<[1], [0], [0], [1], [0, 0, 1, 1], [], []>} : vector<10x32xbf16>, vector<32x8xbf16>, vector<10x8xf32> -> vector<10x8xf32>
    %c0_23 = arith.constant 0 : index
    %c8_24 = arith.constant 8 : index
    %39 = vector.load %arg3[%c0_23, %c8_24] : memref<1x96xf32, #tpu.memory_space<vmem>>, vector<1x8xf32>
    %40 = vector.broadcast %39 : vector<1x8xf32> to vector<10x8xf32>
    %41 = arith.addf %38, %40 : vector<10x8xf32>
    %cst_25 = arith.constant 0.353553385 : f32
    %42 = vector.broadcast %cst_25 : f32 to vector<10x8xf32>
    %43 = arith.mulf %41, %42 : vector<10x8xf32>
    %c0_26 = arith.constant 0 : index
    %c40 = arith.constant 40 : index
    %44 = vector.load %arg2[%c0_26, %c40] : memref<32x96xbf16, #tpu.memory_space<vmem>>, vector<32x8xbf16>
    %cst_27 = arith.constant dense<0.000000e+00> : vector<10x8xf32>
    %45 = tpu.matmul %1, %44, %cst_27 {dimension_numbers = #tpu.dot_dimension_numbers<[1], [0], [0], [1], [0, 0, 1, 1], [], []>} : vector<10x32xbf16>, vector<32x8xbf16>, vector<10x8xf32> -> vector<10x8xf32>
    %c0_28 = arith.constant 0 : index
    %c40_29 = arith.constant 40 : index
    %46 = vector.load %arg3[%c0_28, %c40_29] : memref<1x96xf32, #tpu.memory_space<vmem>>, vector<1x8xf32>
    %47 = vector.broadcast %46 : vector<1x8xf32> to vector<10x8xf32>
    %48 = arith.addf %45, %47 : vector<10x8xf32>
    %c0_30 = arith.constant 0 : index
    %c72 = arith.constant 72 : index
    %49 = vector.load %arg2[%c0_30, %c72] : memref<32x96xbf16, #tpu.memory_space<vmem>>, vector<32x8xbf16>
    %cst_31 = arith.constant dense<0.000000e+00> : vector<10x8xf32>
    %50 = tpu.matmul %1, %49, %cst_31 {dimension_numbers = #tpu.dot_dimension_numbers<[1], [0], [0], [1], [0, 0, 1, 1], [], []>} : vector<10x32xbf16>, vector<32x8xbf16>, vector<10x8xf32> -> vector<10x8xf32>
    %c0_32 = arith.constant 0 : index
    %c72_33 = arith.constant 72 : index
    %51 = vector.load %arg3[%c0_32, %c72_33] : memref<1x96xf32, #tpu.memory_space<vmem>>, vector<1x8xf32>
    %52 = vector.broadcast %51 : vector<1x8xf32> to vector<10x8xf32>
    %53 = arith.addf %50, %52 : vector<10x8xf32>
    %54 = arith.truncf %43 : vector<10x8xf32> to vector<10x8xbf16>
    %55 = arith.truncf %48 : vector<10x8xf32> to vector<10x8xbf16>
    %cst_34 = arith.constant dense<0.000000e+00> : vector<10x10xf32>
    %56 = tpu.matmul %54, %55, %cst_34 {dimension_numbers = #tpu.dot_dimension_numbers<[1], [1], [0], [0], [0, 0, 1, 0], [], []>} : vector<10x8xbf16>, vector<10x8xbf16>, vector<10x10xf32> -> vector<10x10xf32>
    %cst_35 = arith.constant dense<0xFF800000> : vector<10xf32>
    %57 = vector.multi_reduction <maximumf>, %56, %cst_35 [1] : vector<10x10xf32> to vector<10xf32>
    %58 = vector.shape_cast %57 : vector<10xf32> to vector<10x1xf32>
    %59 = vector.broadcast %58 : vector<10x1xf32> to vector<10x10xf32>
    %60 = arith.subf %56, %59 : vector<10x10xf32>
    %61 = math.exp %60 : vector<10x10xf32>
    %cst_36 = arith.constant dense<0.000000e+00> : vector<10xf32>
    %62 = vector.multi_reduction <add>, %61, %cst_36 [1] : vector<10x10xf32> to vector<10xf32>
    %63 = vector.shape_cast %62 : vector<10xf32> to vector<10x1xf32>
    %64 = tpu.reciprocal %63 {approx = true} : vector<10x1xf32> -> vector<10x1xf32>
    %65 = vector.broadcast %64 : vector<10x1xf32> to vector<10x10xf32>
    %66 = arith.mulf %61, %65 : vector<10x10xf32>
    %67 = arith.truncf %66 : vector<10x10xf32> to vector<10x10xbf16>
    %68 = arith.truncf %53 : vector<10x8xf32> to vector<10x8xbf16>
    %cst_37 = arith.constant dense<0.000000e+00> : vector<10x8xf32>
    %69 = tpu.matmul %67, %68, %cst_37 {dimension_numbers = #tpu.dot_dimension_numbers<[1], [0], [0], [1], [0, 0, 1, 1], [], []>} : vector<10x10xbf16>, vector<10x8xbf16>, vector<10x8xf32> -> vector<10x8xf32>
    %70 = arith.truncf %69 : vector<10x8xf32> to vector<10x8xbf16>
    %c0_38 = arith.constant 0 : index
    %c8_39 = arith.constant 8 : index
    %71 = vector.load %arg9[%c0_38, %c8_39] : memref<10x32xbf16, #tpu.memory_space<vmem>>, vector<10x8xbf16>
    tpu.vector_store %arg9[%c0_38, %c8_39], %70 {strides = array<i32>} : memref<10x32xbf16, #tpu.memory_space<vmem>>, vector<10x8xbf16>,
    %c0_40 = arith.constant 0 : index
    %c16 = arith.constant 16 : index
    %72 = vector.load %arg2[%c0_40, %c16] : memref<32x96xbf16, #tpu.memory_space<vmem>>, vector<32x8xbf16>
    %cst_41 = arith.constant dense<0.000000e+00> : vector<10x8xf32>
    %73 = tpu.matmul %1, %72, %cst_41 {dimension_numbers = #tpu.dot_dimension_numbers<[1], [0], [0], [1], [0, 0, 1, 1], [], []>} : vector<10x32xbf16>, vector<32x8xbf16>, vector<10x8xf32> -> vector<10x8xf32>
    %c0_42 = arith.constant 0 : index
    %c16_43 = arith.constant 16 : index
    %74 = vector.load %arg3[%c0_42, %c16_43] : memref<1x96xf32, #tpu.memory_space<vmem>>, vector<1x8xf32>
    %75 = vector.broadcast %74 : vector<1x8xf32> to vector<10x8xf32>
    %76 = arith.addf %73, %75 : vector<10x8xf32>
    %cst_44 = arith.constant 0.353553385 : f32
    %77 = vector.broadcast %cst_44 : f32 to vector<10x8xf32>
    %78 = arith.mulf %76, %77 : vector<10x8xf32>
    %c0_45 = arith.constant 0 : index
    %c48 = arith.constant 48 : index
    %79 = vector.load %arg2[%c0_45, %c48] : memref<32x96xbf16, #tpu.memory_space<vmem>>, vector<32x8xbf16>
    %cst_46 = arith.constant dense<0.000000e+00> : vector<10x8xf32>
    %80 = tpu.matmul %1, %79, %cst_46 {dimension_numbers = #tpu.dot_dimension_numbers<[1], [0], [0], [1], [0, 0, 1, 1], [], []>} : vector<10x32xbf16>, vector<32x8xbf16>, vector<10x8xf32> -> vector<10x8xf32>
    %c0_47 = arith.constant 0 : index
    %c48_48 = arith.constant 48 : index
    %81 = vector.load %arg3[%c0_47, %c48_48] : memref<1x96xf32, #tpu.memory_space<vmem>>, vector<1x8xf32>
    %82 = vector.broadcast %81 : vector<1x8xf32> to vector<10x8xf32>
    %83 = arith.addf %80, %82 : vector<10x8xf32>
    %c0_49 = arith.constant 0 : index
    %c80 = arith.constant 80 : index
    %84 = vector.load %arg2[%c0_49, %c80] : memref<32x96xbf16, #tpu.memory_space<vmem>>, vector<32x8xbf16>
    %cst_50 = arith.constant dense<0.000000e+00> : vector<10x8xf32>
    %85 = tpu.matmul %1, %84, %cst_50 {dimension_numbers = #tpu.dot_dimension_numbers<[1], [0], [0], [1], [0, 0, 1, 1], [], []>} : vector<10x32xbf16>, vector<32x8xbf16>, vector<10x8xf32> -> vector<10x8xf32>
    %c0_51 = arith.constant 0 : index
    %c80_52 = arith.constant 80 : index
    %86 = vector.load %arg3[%c0_51, %c80_52] : memref<1x96xf32, #tpu.memory_space<vmem>>, vector<1x8xf32>
    %87 = vector.broadcast %86 : vector<1x8xf32> to vector<10x8xf32>
    %88 = arith.addf %85, %87 : vector<10x8xf32>
    %89 = arith.truncf %78 : vector<10x8xf32> to vector<10x8xbf16>
    %90 = arith.truncf %83 : vector<10x8xf32> to vector<10x8xbf16>
    %cst_53 = arith.constant dense<0.000000e+00> : vector<10x10xf32>
    %91 = tpu.matmul %89, %90, %cst_53 {dimension_numbers = #tpu.dot_dimension_numbers<[1], [1], [0], [0], [0, 0, 1, 0], [], []>} : vector<10x8xbf16>, vector<10x8xbf16>, vector<10x10xf32> -> vector<10x10xf32>
    %cst_54 = arith.constant dense<0xFF800000> : vector<10xf32>
    %92 = vector.multi_reduction <maximumf>, %91, %cst_54 [1] : vector<10x10xf32> to vector<10xf32>
    %93 = vector.shape_cast %92 : vector<10xf32> to vector<10x1xf32>
    %94 = vector.broadcast %93 : vector<10x1xf32> to vector<10x10xf32>
    %95 = arith.subf %91, %94 : vector<10x10xf32>
    %96 = math.exp %95 : vector<10x10xf32>
    %cst_55 = arith.constant dense<0.000000e+00> : vector<10xf32>
    %97 = vector.multi_reduction <add>, %96, %cst_55 [1] : vector<10x10xf32> to vector<10xf32>
    %98 = vector.shape_cast %97 : vector<10xf32> to vector<10x1xf32>
    %99 = tpu.reciprocal %98 {approx = true} : vector<10x1xf32> -> vector<10x1xf32>
    %100 = vector.broadcast %99 : vector<10x1xf32> to vector<10x10xf32>
    %101 = arith.mulf %96, %100 : vector<10x10xf32>
    %102 = arith.truncf %101 : vector<10x10xf32> to vector<10x10xbf16>
    %103 = arith.truncf %88 : vector<10x8xf32> to vector<10x8xbf16>
    %cst_56 = arith.constant dense<0.000000e+00> : vector<10x8xf32>
    %104 = tpu.matmul %102, %103, %cst_56 {dimension_numbers = #tpu.dot_dimension_numbers<[1], [0], [0], [1], [0, 0, 1, 1], [], []>} : vector<10x10xbf16>, vector<10x8xbf16>, vector<10x8xf32> -> vector<10x8xf32>
    %105 = arith.truncf %104 : vector<10x8xf32> to vector<10x8xbf16>
    %c0_57 = arith.constant 0 : index
    %c16_58 = arith.constant 16 : index
    %106 = vector.load %arg9[%c0_57, %c16_58] : memref<10x32xbf16, #tpu.memory_space<vmem>>, vector<10x8xbf16>
    tpu.vector_store %arg9[%c0_57, %c16_58], %105 {strides = array<i32>} : memref<10x32xbf16, #tpu.memory_space<vmem>>, vector<10x8xbf16>,
    %c0_59 = arith.constant 0 : index
    %c24 = arith.constant 24 : index
    %107 = vector.load %arg2[%c0_59, %c24] : memref<32x96xbf16, #tpu.memory_space<vmem>>, vector<32x8xbf16>
    %cst_60 = arith.constant dense<0.000000e+00> : vector<10x8xf32>
    %108 = tpu.matmul %1, %107, %cst_60 {dimension_numbers = #tpu.dot_dimension_numbers<[1], [0], [0], [1], [0, 0, 1, 1], [], []>} : vector<10x32xbf16>, vector<32x8xbf16>, vector<10x8xf32> -> vector<10x8xf32>
    %c0_61 = arith.constant 0 : index
    %c24_62 = arith.constant 24 : index
    %109 = vector.load %arg3[%c0_61, %c24_62] : memref<1x96xf32, #tpu.memory_space<vmem>>, vector<1x8xf32>
    %110 = vector.broadcast %109 : vector<1x8xf32> to vector<10x8xf32>
    %111 = arith.addf %108, %110 : vector<10x8xf32>
    %cst_63 = arith.constant 0.353553385 : f32
    %112 = vector.broadcast %cst_63 : f32 to vector<10x8xf32>
    %113 = arith.mulf %111, %112 : vector<10x8xf32>
    %c0_64 = arith.constant 0 : index
    %c56 = arith.constant 56 : index
    %114 = vector.load %arg2[%c0_64, %c56] : memref<32x96xbf16, #tpu.memory_space<vmem>>, vector<32x8xbf16>
    %cst_65 = arith.constant dense<0.000000e+00> : vector<10x8xf32>
    %115 = tpu.matmul %1, %114, %cst_65 {dimension_numbers = #tpu.dot_dimension_numbers<[1], [0], [0], [1], [0, 0, 1, 1], [], []>} : vector<10x32xbf16>, vector<32x8xbf16>, vector<10x8xf32> -> vector<10x8xf32>
    %c0_66 = arith.constant 0 : index
    %c56_67 = arith.constant 56 : index
    %116 = vector.load %arg3[%c0_66, %c56_67] : memref<1x96xf32, #tpu.memory_space<vmem>>, vector<1x8xf32>
    %117 = vector.broadcast %116 : vector<1x8xf32> to vector<10x8xf32>
    %118 = arith.addf %115, %117 : vector<10x8xf32>
    %c0_68 = arith.constant 0 : index
    %c88 = arith.constant 88 : index
    %119 = vector.load %arg2[%c0_68, %c88] : memref<32x96xbf16, #tpu.memory_space<vmem>>, vector<32x8xbf16>
    %cst_69 = arith.constant dense<0.000000e+00> : vector<10x8xf32>
    %120 = tpu.matmul %1, %119, %cst_69 {dimension_numbers = #tpu.dot_dimension_numbers<[1], [0], [0], [1], [0, 0, 1, 1], [], []>} : vector<10x32xbf16>, vector<32x8xbf16>, vector<10x8xf32> -> vector<10x8xf32>
    %c0_70 = arith.constant 0 : index
    %c88_71 = arith.constant 88 : index
    %121 = vector.load %arg3[%c0_70, %c88_71] : memref<1x96xf32, #tpu.memory_space<vmem>>, vector<1x8xf32>
    %122 = vector.broadcast %121 : vector<1x8xf32> to vector<10x8xf32>
    %123 = arith.addf %120, %122 : vector<10x8xf32>
    %124 = arith.truncf %113 : vector<10x8xf32> to vector<10x8xbf16>
    %125 = arith.truncf %118 : vector<10x8xf32> to vector<10x8xbf16>
    %cst_72 = arith.constant dense<0.000000e+00> : vector<10x10xf32>
    %126 = tpu.matmul %124, %125, %cst_72 {dimension_numbers = #tpu.dot_dimension_numbers<[1], [1], [0], [0], [0, 0, 1, 0], [], []>} : vector<10x8xbf16>, vector<10x8xbf16>, vector<10x10xf32> -> vector<10x10xf32>
    %cst_73 = arith.constant dense<0xFF800000> : vector<10xf32>
    %127 = vector.multi_reduction <maximumf>, %126, %cst_73 [1] : vector<10x10xf32> to vector<10xf32>
    %128 = vector.shape_cast %127 : vector<10xf32> to vector<10x1xf32>
    %129 = vector.broadcast %128 : vector<10x1xf32> to vector<10x10xf32>
    %130 = arith.subf %126, %129 : vector<10x10xf32>
    %131 = math.exp %130 : vector<10x10xf32>
    %cst_74 = arith.constant dense<0.000000e+00> : vector<10xf32>
    %132 = vector.multi_reduction <add>, %131, %cst_74 [1] : vector<10x10xf32> to vector<10xf32>
    %133 = vector.shape_cast %132 : vector<10xf32> to vector<10x1xf32>
    %134 = tpu.reciprocal %133 {approx = true} : vector<10x1xf32> -> vector<10x1xf32>
    %135 = vector.broadcast %134 : vector<10x1xf32> to vector<10x10xf32>
    %136 = arith.mulf %131, %135 : vector<10x10xf32>
    %137 = arith.truncf %136 : vector<10x10xf32> to vector<10x10xbf16>
    %138 = arith.truncf %123 : vector<10x8xf32> to vector<10x8xbf16>
    %cst_75 = arith.constant dense<0.000000e+00> : vector<10x8xf32>
    %139 = tpu.matmul %137, %138, %cst_75 {dimension_numbers = #tpu.dot_dimension_numbers<[1], [0], [0], [1], [0, 0, 1, 1], [], []>} : vector<10x10xbf16>, vector<10x8xbf16>, vector<10x8xf32> -> vector<10x8xf32>
    %140 = arith.truncf %139 : vector<10x8xf32> to vector<10x8xbf16>
    %c0_76 = arith.constant 0 : index
    %c24_77 = arith.constant 24 : index
    %141 = vector.load %arg9[%c0_76, %c24_77] : memref<10x32xbf16, #tpu.memory_space<vmem>>, vector<10x8xbf16>
    tpu.vector_store %arg9[%c0_76, %c24_77], %140 {strides = array<i32>} : memref<10x32xbf16, #tpu.memory_space<vmem>>, vector<10x8xbf16>,
    %c0_78 = arith.constant 0 : index
    %c0_79 = arith.constant 0 : index
    %142 = vector.load %arg9[%c0_78, %c0_79] : memref<10x32xbf16, #tpu.memory_space<vmem>>, vector<10x32xbf16>
    %c0_80 = arith.constant 0 : index
    %c0_81 = arith.constant 0 : index
    %143 = vector.load %arg4[%c0_80, %c0_81] : memref<32x32xbf16, #tpu.memory_space<vmem>>, vector<32x32xbf16>
    %cst_82 = arith.constant dense<0.000000e+00> : vector<10x32xf32>
    %144 = tpu.matmul %142, %143, %cst_82 {dimension_numbers = #tpu.dot_dimension_numbers<[1], [0], [0], [1], [0, 0, 1, 1], [], []>} : vector<10x32xbf16>, vector<32x32xbf16>, vector<10x32xf32> -> vector<10x32xf32>
    %c0_83 = arith.constant 0 : index
    %c0_84 = arith.constant 0 : index
    %145 = vector.load %arg5[%c0_83, %c0_84] : memref<1x32xf32, #tpu.memory_space<vmem>>, vector<1x32xf32>
    %146 = vector.broadcast %145 : vector<1x32xf32> to vector<10x32xf32>
    %147 = arith.addf %144, %146 : vector<10x32xf32>
    %148 = arith.extf %1 : vector<10x32xbf16> to vector<10x32xf32>
    %149 = arith.addf %147, %148 : vector<10x32xf32>
    %c0_85 = arith.constant 0 : index
    %c0_86 = arith.constant 0 : index
    %150 = vector.load %arg6[%c0_85, %c0_86] : memref<1x32xf32, #tpu.memory_space<vmem>>, vector<1x32xf32>
    %c0_87 = arith.constant 0 : index
    %c0_88 = arith.constant 0 : index
    %151 = vector.load %arg7[%c0_87, %c0_88] : memref<1x32xf32, #tpu.memory_space<vmem>>, vector<1x32xf32>
    %cst_89 = arith.constant dense<0.000000e+00> : vector<10xf32>
    %152 = vector.multi_reduction <add>, %149, %cst_89 [1] : vector<10x32xf32> to vector<10xf32>
    %153 = vector.shape_cast %152 : vector<10xf32> to vector<10x1xf32>
    %cst_90 = arith.constant 3.200000e+01 : f32
    %154 = vector.broadcast %cst_90 : f32 to vector<10x1xf32>
    %155 = arith.divf %153, %154 : vector<10x1xf32>
    %156 = vector.broadcast %155 : vector<10x1xf32> to vector<10x32xf32>
    %157 = arith.subf %149, %156 : vector<10x32xf32>
    %158 = arith.mulf %157, %157 : vector<10x32xf32>
    %cst_91 = arith.constant dense<0.000000e+00> : vector<10xf32>
    %159 = vector.multi_reduction <add>, %158, %cst_91 [1] : vector<10x32xf32> to vector<10xf32>
    %160 = vector.shape_cast %159 : vector<10xf32> to vector<10x1xf32>
    %cst_92 = arith.constant 3.200000e+01 : f32
    %161 = vector.broadcast %cst_92 : f32 to vector<10x1xf32>
    %162 = arith.divf %160, %161 : vector<10x1xf32>
    %163 = vector.broadcast %155 : vector<10x1xf32> to vector<10x32xf32>
    %164 = arith.subf %149, %163 : vector<10x32xf32>
    %cst_93 = arith.constant 9.99999996E-13 : f32
    %165 = vector.broadcast %cst_93 : f32 to vector<10x1xf32>
    %166 = arith.addf %162, %165 : vector<10x1xf32>
    %167 = math.rsqrt %166 : vector<10x1xf32>
    %168 = vector.broadcast %167 : vector<10x1xf32> to vector<10x32xf32>
    %169 = arith.mulf %164, %168 : vector<10x32xf32>
    %170 = vector.broadcast %150 : vector<1x32xf32> to vector<10x32xf32>
    %171 = arith.mulf %169, %170 : vector<10x32xf32>
    %172 = vector.broadcast %151 : vector<1x32xf32> to vector<10x32xf32>
    %173 = arith.addf %171, %172 : vector<10x32xf32>
    %174 = arith.truncf %173 : vector<10x32xf32> to vector<10x32xbf16>
    %c0_94 = arith.constant 0 : index
    %c0_95 = arith.constant 0 : index
    %c0_96 = arith.constant 0 : index
    %175 = vector.load %arg8[%c0_94, %c0_95, %c0_96] : memref<1x10x32xbf16, #tpu.memory_space<vmem>>, vector<1x10x32xbf16>
    %176 = vector.shape_cast %175 : vector<1x10x32xbf16> to vector<10x32xbf16>
    %177 = vector.shape_cast %174 : vector<10x32xbf16> to vector<1x10x32xbf16>
    tpu.vector_store %arg8[%c0_94, %c0_95, %c0_96], %177 {strides = array<i32>} : memref<1x10x32xbf16, #tpu.memory_space<vmem>>, vector<1x10x32xbf16>,
    return
  }
  func.func @transform_0(%arg0: i32) -> (i32, i32, i32) {
    %c0_i32 = arith.constant 0 : i32
    %c0_i32_0 = arith.constant 0 : i32
    %c0_i32_1 = arith.constant 0 : i32
    return %arg0, %c0_i32, %c0_i32_0 : i32, i32, i32
  }
  func.func @transform_1(%arg0: i32) -> (i32, i32) {
    %c0_i32 = arith.constant 0 : i32
    %c0_i32_0 = arith.constant 0 : i32
    %c0_i32_1 = arith.constant 0 : i32
    return %c0_i32, %c0_i32_0 : i32, i32
  }
  func.func @transform_2(%arg0: i32) -> (i32, i32) {
    %c0_i32 = arith.constant 0 : i32
    %c0_i32_0 = arith.constant 0 : i32
    %c0_i32_1 = arith.constant 0 : i32
    return %c0_i32, %c0_i32_0 : i32, i32
  }
  func.func @transform_3(%arg0: i32) -> (i32, i32) {
    %c0_i32 = arith.constant 0 : i32
    %c0_i32_0 = arith.constant 0 : i32
    %c0_i32_1 = arith.constant 0 : i32
    return %c0_i32, %c0_i32_0 : i32, i32
  }
  func.func @transform_4(%arg0: i32) -> (i32, i32) {
    %c0_i32 = arith.constant 0 : i32
    %c0_i32_0 = arith.constant 0 : i32
    %c0_i32_1 = arith.constant 0 : i32
    return %c0_i32, %c0_i32_0 : i32, i32
  }
  func.func @transform_5(%arg0: i32) -> (i32, i32) {
    %c0_i32 = arith.constant 0 : i32
    %c0_i32_0 = arith.constant 0 : i32
    %c0_i32_1 = arith.constant 0 : i32
    return %c0_i32, %c0_i32_0 : i32, i32
  }
  func.func @transform_6(%arg0: i32) -> (i32, i32) {
    %c0_i32 = arith.constant 0 : i32
    %c0_i32_0 = arith.constant 0 : i32
    %c0_i32_1 = arith.constant 0 : i32
    return %c0_i32, %c0_i32_0 : i32, i32
  }
  func.func @transform_7(%arg0: i32) -> (i32, i32, i32) {
    %c0_i32 = arith.constant 0 : i32
    %c0_i32_0 = arith.constant 0 : i32
    %c0_i32_1 = arith.constant 0 : i32
    return %arg0, %c0_i32, %c0_i32_0 : i32, i32, i32
  }
}

module attributes {stable_mosaic.version = 11 : i64} {
  func.func @_ffn_block_kernel(%arg0: i32, %arg1: memref<20x32xbf16, #tpu.memory_space<vmem>>, %arg2: memref<32x128xbf16, #tpu.memory_space<vmem>>, %arg3: memref<1x128xf32, #tpu.memory_space<vmem>>, %arg4: memref<128x32xbf16, #tpu.memory_space<vmem>>, %arg5: memref<1x32xf32, #tpu.memory_space<vmem>>, %arg6: memref<1x32xf32, #tpu.memory_space<vmem>>, %arg7: memref<1x32xf32, #tpu.memory_space<vmem>>, %arg8: memref<20x32xf32, #tpu.memory_space<vmem>>, %arg9: memref<20x32xbf16, #tpu.memory_space<vmem>>, %arg10: memref<20x32xf32, #tpu.memory_space<vmem>>, %arg11: memref<20x128xbf16, #tpu.memory_space<vmem>>) attributes {dimension_semantics = [#tpu.dimension_semantics<parallel>], iteration_bounds = array<i64: 1>, scalar_prefetch = 0 : i64, scratch_operands = 1 : i64, tpu.core_type = #tpu.core_type<tc>, window_params = [{transform_indices = @transform_0, window_bounds = array<i64: 20, 32>}, {pipeline_mode = #tpu.pipeline_mode<synchronous>, transform_indices = @transform_1, window_bounds = array<i64: 32, 128>}, {pipeline_mode = #tpu.pipeline_mode<synchronous>, transform_indices = @transform_2, window_bounds = array<i64: 1, 128>}, {pipeline_mode = #tpu.pipeline_mode<synchronous>, transform_indices = @transform_3, window_bounds = array<i64: 128, 32>}, {pipeline_mode = #tpu.pipeline_mode<synchronous>, transform_indices = @transform_4, window_bounds = array<i64: 1, 32>}, {pipeline_mode = #tpu.pipeline_mode<synchronous>, transform_indices = @transform_5, window_bounds = array<i64: 1, 32>}, {pipeline_mode = #tpu.pipeline_mode<synchronous>, transform_indices = @transform_6, window_bounds = array<i64: 1, 32>}, {transform_indices = @transform_7, window_bounds = array<i64: 20, 32>}, {transform_indices = @transform_8, window_bounds = array<i64: 20, 32>}, {transform_indices = @transform_9, window_bounds = array<i64: 20, 32>}]} {
    %c0 = arith.constant 0 : index
    %c0_0 = arith.constant 0 : index
    %0 = vector.load %arg1[%c0, %c0_0] : memref<20x32xbf16, #tpu.memory_space<vmem>>, vector<20x32xbf16>
    %c0_1 = arith.constant 0 : index
    %c0_2 = arith.constant 0 : index
    %1 = vector.load %arg2[%c0_1, %c0_2] : memref<32x128xbf16, #tpu.memory_space<vmem>>, vector<32x128xbf16>
    %cst = arith.constant dense<0.000000e+00> : vector<20x128xf32>
    %2 = tpu.matmul %0, %1, %cst {dimension_numbers = #tpu.dot_dimension_numbers<[1], [0], [0], [1], [0, 0, 1, 1], [], []>} : vector<20x32xbf16>, vector<32x128xbf16>, vector<20x128xf32> -> vector<20x128xf32>
    %c0_3 = arith.constant 0 : index
    %c0_4 = arith.constant 0 : index
    %3 = vector.load %arg3[%c0_3, %c0_4] : memref<1x128xf32, #tpu.memory_space<vmem>>, vector<1x128xf32>
    %4 = vector.broadcast %3 : vector<1x128xf32> to vector<20x128xf32>
    %5 = arith.addf %2, %4 : vector<20x128xf32>
    %6 = arith.mulf %5, %5 : vector<20x128xf32>
    %7 = arith.mulf %5, %6 : vector<20x128xf32>
    %cst_5 = arith.constant 4.471500e-02 : f32
    %8 = vector.broadcast %cst_5 : f32 to vector<20x128xf32>
    %9 = arith.mulf %8, %7 : vector<20x128xf32>
    %10 = arith.addf %5, %9 : vector<20x128xf32>
    %cst_6 = arith.constant 0.797884583 : f32
    %11 = vector.broadcast %cst_6 : f32 to vector<20x128xf32>
    %12 = arith.mulf %11, %10 : vector<20x128xf32>
    %13 = math.tanh %12 : vector<20x128xf32>
    %cst_7 = arith.constant 1.000000e+00 : f32
    %14 = vector.broadcast %cst_7 : f32 to vector<20x128xf32>
    %15 = arith.addf %14, %13 : vector<20x128xf32>
    %cst_8 = arith.constant 5.000000e-01 : f32
    %16 = vector.broadcast %cst_8 : f32 to vector<20x128xf32>
    %17 = arith.mulf %16, %15 : vector<20x128xf32>
    %18 = arith.mulf %5, %17 : vector<20x128xf32>
    %19 = arith.truncf %18 : vector<20x128xf32> to vector<20x128xbf16>
    %c0_9 = arith.constant 0 : index
    %c0_10 = arith.constant 0 : index
    %20 = vector.load %arg11[%c0_9, %c0_10] : memref<20x128xbf16, #tpu.memory_space<vmem>>, vector<20x128xbf16>
    tpu.vector_store %arg11[%c0_9, %c0_10], %19 {strides = array<i32>} : memref<20x128xbf16, #tpu.memory_space<vmem>>, vector<20x128xbf16>,
    %c0_11 = arith.constant 0 : index
    %c0_12 = arith.constant 0 : index
    %21 = vector.load %arg11[%c0_11, %c0_12] : memref<20x128xbf16, #tpu.memory_space<vmem>>, vector<20x128xbf16>
    %c0_13 = arith.constant 0 : index
    %c0_14 = arith.constant 0 : index
    %22 = vector.load %arg4[%c0_13, %c0_14] : memref<128x32xbf16, #tpu.memory_space<vmem>>, vector<128x32xbf16>
    %cst_15 = arith.constant dense<0.000000e+00> : vector<20x32xf32>
    %23 = tpu.matmul %21, %22, %cst_15 {dimension_numbers = #tpu.dot_dimension_numbers<[1], [0], [0], [1], [0, 0, 1, 1], [], []>} : vector<20x128xbf16>, vector<128x32xbf16>, vector<20x32xf32> -> vector<20x32xf32>
    %c0_16 = arith.constant 0 : index
    %c0_17 = arith.constant 0 : index
    %24 = vector.load %arg5[%c0_16, %c0_17] : memref<1x32xf32, #tpu.memory_space<vmem>>, vector<1x32xf32>
    %25 = vector.broadcast %24 : vector<1x32xf32> to vector<20x32xf32>
    %26 = arith.addf %23, %25 : vector<20x32xf32>
    %27 = arith.extf %0 : vector<20x32xbf16> to vector<20x32xf32>
    %28 = arith.addf %26, %27 : vector<20x32xf32>
    %c0_18 = arith.constant 0 : index
    %c0_19 = arith.constant 0 : index
    %29 = vector.load %arg6[%c0_18, %c0_19] : memref<1x32xf32, #tpu.memory_space<vmem>>, vector<1x32xf32>
    %c0_20 = arith.constant 0 : index
    %c0_21 = arith.constant 0 : index
    %30 = vector.load %arg7[%c0_20, %c0_21] : memref<1x32xf32, #tpu.memory_space<vmem>>, vector<1x32xf32>
    %cst_22 = arith.constant dense<0.000000e+00> : vector<20xf32>
    %31 = vector.multi_reduction <add>, %28, %cst_22 [1] : vector<20x32xf32> to vector<20xf32>
    %32 = vector.shape_cast %31 : vector<20xf32> to vector<20x1xf32>
    %cst_23 = arith.constant 3.200000e+01 : f32
    %33 = vector.broadcast %cst_23 : f32 to vector<20x1xf32>
    %34 = arith.divf %32, %33 : vector<20x1xf32>
    %35 = vector.broadcast %34 : vector<20x1xf32> to vector<20x32xf32>
    %36 = arith.subf %28, %35 : vector<20x32xf32>
    %37 = arith.mulf %36, %36 : vector<20x32xf32>
    %cst_24 = arith.constant dense<0.000000e+00> : vector<20xf32>
    %38 = vector.multi_reduction <add>, %37, %cst_24 [1] : vector<20x32xf32> to vector<20xf32>
    %39 = vector.shape_cast %38 : vector<20xf32> to vector<20x1xf32>
    %cst_25 = arith.constant 3.200000e+01 : f32
    %40 = vector.broadcast %cst_25 : f32 to vector<20x1xf32>
    %41 = arith.divf %39, %40 : vector<20x1xf32>
    %42 = vector.broadcast %34 : vector<20x1xf32> to vector<20x32xf32>
    %43 = arith.subf %28, %42 : vector<20x32xf32>
    %cst_26 = arith.constant 9.99999996E-13 : f32
    %44 = vector.broadcast %cst_26 : f32 to vector<20x1xf32>
    %45 = arith.addf %41, %44 : vector<20x1xf32>
    %46 = math.rsqrt %45 : vector<20x1xf32>
    %47 = vector.broadcast %46 : vector<20x1xf32> to vector<20x32xf32>
    %48 = arith.mulf %43, %47 : vector<20x32xf32>
    %49 = vector.broadcast %29 : vector<1x32xf32> to vector<20x32xf32>
    %50 = arith.mulf %48, %49 : vector<20x32xf32>
    %51 = vector.broadcast %30 : vector<1x32xf32> to vector<20x32xf32>
    %52 = arith.addf %50, %51 : vector<20x32xf32>
    %53 = arith.truncf %52 : vector<20x32xf32> to vector<20x32xbf16>
    %c0_27 = arith.constant 0 : index
    %c0_28 = arith.constant 0 : index
    %54 = vector.load %arg9[%c0_27, %c0_28] : memref<20x32xbf16, #tpu.memory_space<vmem>>, vector<20x32xbf16>
    tpu.vector_store %arg9[%c0_27, %c0_28], %53 {strides = array<i32>} : memref<20x32xbf16, #tpu.memory_space<vmem>>, vector<20x32xbf16>,
    %c0_29 = arith.constant 0 : index
    %c0_30 = arith.constant 0 : index
    %55 = vector.load %arg8[%c0_29, %c0_30] : memref<20x32xf32, #tpu.memory_space<vmem>>, vector<20x32xf32>
    %56 = arith.addf %55, %52 : vector<20x32xf32>
    %c0_31 = arith.constant 0 : index
    %c0_32 = arith.constant 0 : index
    %57 = vector.load %arg10[%c0_31, %c0_32] : memref<20x32xf32, #tpu.memory_space<vmem>>, vector<20x32xf32>
    tpu.vector_store %arg10[%c0_31, %c0_32], %56 {strides = array<i32>} : memref<20x32xf32, #tpu.memory_space<vmem>>, vector<20x32xf32>,
    return
  }
  func.func @transform_0(%arg0: i32) -> (i32, i32) {
    %c0_i32 = arith.constant 0 : i32
    %c0_i32_0 = arith.constant 0 : i32
    return %arg0, %c0_i32 : i32, i32
  }
  func.func @transform_1(%arg0: i32) -> (i32, i32) {
    %c0_i32 = arith.constant 0 : i32
    %c0_i32_0 = arith.constant 0 : i32
    %c0_i32_1 = arith.constant 0 : i32
    return %c0_i32, %c0_i32_0 : i32, i32
  }
  func.func @transform_2(%arg0: i32) -> (i32, i32) {
    %c0_i32 = arith.constant 0 : i32
    %c0_i32_0 = arith.constant 0 : i32
    %c0_i32_1 = arith.constant 0 : i32
    return %c0_i32, %c0_i32_0 : i32, i32
  }
  func.func @transform_3(%arg0: i32) -> (i32, i32) {
    %c0_i32 = arith.constant 0 : i32
    %c0_i32_0 = arith.constant 0 : i32
    %c0_i32_1 = arith.constant 0 : i32
    return %c0_i32, %c0_i32_0 : i32, i32
  }
  func.func @transform_4(%arg0: i32) -> (i32, i32) {
    %c0_i32 = arith.constant 0 : i32
    %c0_i32_0 = arith.constant 0 : i32
    %c0_i32_1 = arith.constant 0 : i32
    return %c0_i32, %c0_i32_0 : i32, i32
  }
  func.func @transform_5(%arg0: i32) -> (i32, i32) {
    %c0_i32 = arith.constant 0 : i32
    %c0_i32_0 = arith.constant 0 : i32
    %c0_i32_1 = arith.constant 0 : i32
    return %c0_i32, %c0_i32_0 : i32, i32
  }
  func.func @transform_6(%arg0: i32) -> (i32, i32) {
    %c0_i32 = arith.constant 0 : i32
    %c0_i32_0 = arith.constant 0 : i32
    %c0_i32_1 = arith.constant 0 : i32
    return %c0_i32, %c0_i32_0 : i32, i32
  }
  func.func @transform_7(%arg0: i32) -> (i32, i32) {
    %c0_i32 = arith.constant 0 : i32
    %c0_i32_0 = arith.constant 0 : i32
    return %arg0, %c0_i32 : i32, i32
  }
  func.func @transform_8(%arg0: i32) -> (i32, i32) {
    %c0_i32 = arith.constant 0 : i32
    %c0_i32_0 = arith.constant 0 : i32
    return %arg0, %c0_i32 : i32, i32
  }
  func.func @transform_9(%arg0: i32) -> (i32, i32) {
    %c0_i32 = arith.constant 0 : i32
    %c0_i32_0 = arith.constant 0 : i32
    return %arg0, %c0_i32 : i32, i32
  }
}

module attributes {stable_mosaic.version = 11 : i64} {
  func.func @_ffn_block_kernel(%arg0: i32, %arg1: memref<20x32xbf16, #tpu.memory_space<vmem>>, %arg2: memref<32x128xbf16, #tpu.memory_space<vmem>>, %arg3: memref<1x128xf32, #tpu.memory_space<vmem>>, %arg4: memref<128x32xbf16, #tpu.memory_space<vmem>>, %arg5: memref<1x32xf32, #tpu.memory_space<vmem>>, %arg6: memref<1x32xf32, #tpu.memory_space<vmem>>, %arg7: memref<1x32xf32, #tpu.memory_space<vmem>>, %arg8: memref<20x32xf32, #tpu.memory_space<vmem>>, %arg9: memref<20x32xf32, #tpu.memory_space<vmem>>, %arg10: memref<20x128xbf16, #tpu.memory_space<vmem>>) attributes {dimension_semantics = [#tpu.dimension_semantics<parallel>], iteration_bounds = array<i64: 1>, scalar_prefetch = 0 : i64, scratch_operands = 1 : i64, tpu.core_type = #tpu.core_type<tc>, window_params = [{transform_indices = @transform_0, window_bounds = array<i64: 20, 32>}, {pipeline_mode = #tpu.pipeline_mode<synchronous>, transform_indices = @transform_1, window_bounds = array<i64: 32, 128>}, {pipeline_mode = #tpu.pipeline_mode<synchronous>, transform_indices = @transform_2, window_bounds = array<i64: 1, 128>}, {pipeline_mode = #tpu.pipeline_mode<synchronous>, transform_indices = @transform_3, window_bounds = array<i64: 128, 32>}, {pipeline_mode = #tpu.pipeline_mode<synchronous>, transform_indices = @transform_4, window_bounds = array<i64: 1, 32>}, {pipeline_mode = #tpu.pipeline_mode<synchronous>, transform_indices = @transform_5, window_bounds = array<i64: 1, 32>}, {pipeline_mode = #tpu.pipeline_mode<synchronous>, transform_indices = @transform_6, window_bounds = array<i64: 1, 32>}, {transform_indices = @transform_7, window_bounds = array<i64: 20, 32>}, {transform_indices = @transform_8, window_bounds = array<i64: 20, 32>}]} {
    %c0 = arith.constant 0 : index
    %c0_0 = arith.constant 0 : index
    %0 = vector.load %arg1[%c0, %c0_0] : memref<20x32xbf16, #tpu.memory_space<vmem>>, vector<20x32xbf16>
    %c0_1 = arith.constant 0 : index
    %c0_2 = arith.constant 0 : index
    %1 = vector.load %arg2[%c0_1, %c0_2] : memref<32x128xbf16, #tpu.memory_space<vmem>>, vector<32x128xbf16>
    %cst = arith.constant dense<0.000000e+00> : vector<20x128xf32>
    %2 = tpu.matmul %0, %1, %cst {dimension_numbers = #tpu.dot_dimension_numbers<[1], [0], [0], [1], [0, 0, 1, 1], [], []>} : vector<20x32xbf16>, vector<32x128xbf16>, vector<20x128xf32> -> vector<20x128xf32>
    %c0_3 = arith.constant 0 : index
    %c0_4 = arith.constant 0 : index
    %3 = vector.load %arg3[%c0_3, %c0_4] : memref<1x128xf32, #tpu.memory_space<vmem>>, vector<1x128xf32>
    %4 = vector.broadcast %3 : vector<1x128xf32> to vector<20x128xf32>
    %5 = arith.addf %2, %4 : vector<20x128xf32>
    %6 = arith.mulf %5, %5 : vector<20x128xf32>
    %7 = arith.mulf %5, %6 : vector<20x128xf32>
    %cst_5 = arith.constant 4.471500e-02 : f32
    %8 = vector.broadcast %cst_5 : f32 to vector<20x128xf32>
    %9 = arith.mulf %8, %7 : vector<20x128xf32>
    %10 = arith.addf %5, %9 : vector<20x128xf32>
    %cst_6 = arith.constant 0.797884583 : f32
    %11 = vector.broadcast %cst_6 : f32 to vector<20x128xf32>
    %12 = arith.mulf %11, %10 : vector<20x128xf32>
    %13 = math.tanh %12 : vector<20x128xf32>
    %cst_7 = arith.constant 1.000000e+00 : f32
    %14 = vector.broadcast %cst_7 : f32 to vector<20x128xf32>
    %15 = arith.addf %14, %13 : vector<20x128xf32>
    %cst_8 = arith.constant 5.000000e-01 : f32
    %16 = vector.broadcast %cst_8 : f32 to vector<20x128xf32>
    %17 = arith.mulf %16, %15 : vector<20x128xf32>
    %18 = arith.mulf %5, %17 : vector<20x128xf32>
    %19 = arith.truncf %18 : vector<20x128xf32> to vector<20x128xbf16>
    %c0_9 = arith.constant 0 : index
    %c0_10 = arith.constant 0 : index
    %20 = vector.load %arg10[%c0_9, %c0_10] : memref<20x128xbf16, #tpu.memory_space<vmem>>, vector<20x128xbf16>
    tpu.vector_store %arg10[%c0_9, %c0_10], %19 {strides = array<i32>} : memref<20x128xbf16, #tpu.memory_space<vmem>>, vector<20x128xbf16>,
    %c0_11 = arith.constant 0 : index
    %c0_12 = arith.constant 0 : index
    %21 = vector.load %arg10[%c0_11, %c0_12] : memref<20x128xbf16, #tpu.memory_space<vmem>>, vector<20x128xbf16>
    %c0_13 = arith.constant 0 : index
    %c0_14 = arith.constant 0 : index
    %22 = vector.load %arg4[%c0_13, %c0_14] : memref<128x32xbf16, #tpu.memory_space<vmem>>, vector<128x32xbf16>
    %cst_15 = arith.constant dense<0.000000e+00> : vector<20x32xf32>
    %23 = tpu.matmul %21, %22, %cst_15 {dimension_numbers = #tpu.dot_dimension_numbers<[1], [0], [0], [1], [0, 0, 1, 1], [], []>} : vector<20x128xbf16>, vector<128x32xbf16>, vector<20x32xf32> -> vector<20x32xf32>
    %c0_16 = arith.constant 0 : index
    %c0_17 = arith.constant 0 : index
    %24 = vector.load %arg5[%c0_16, %c0_17] : memref<1x32xf32, #tpu.memory_space<vmem>>, vector<1x32xf32>
    %25 = vector.broadcast %24 : vector<1x32xf32> to vector<20x32xf32>
    %26 = arith.addf %23, %25 : vector<20x32xf32>
    %27 = arith.extf %0 : vector<20x32xbf16> to vector<20x32xf32>
    %28 = arith.addf %26, %27 : vector<20x32xf32>
    %c0_18 = arith.constant 0 : index
    %c0_19 = arith.constant 0 : index
    %29 = vector.load %arg6[%c0_18, %c0_19] : memref<1x32xf32, #tpu.memory_space<vmem>>, vector<1x32xf32>
    %c0_20 = arith.constant 0 : index
    %c0_21 = arith.constant 0 : index
    %30 = vector.load %arg7[%c0_20, %c0_21] : memref<1x32xf32, #tpu.memory_space<vmem>>, vector<1x32xf32>
    %cst_22 = arith.constant dense<0.000000e+00> : vector<20xf32>
    %31 = vector.multi_reduction <add>, %28, %cst_22 [1] : vector<20x32xf32> to vector<20xf32>
    %32 = vector.shape_cast %31 : vector<20xf32> to vector<20x1xf32>
    %cst_23 = arith.constant 3.200000e+01 : f32
    %33 = vector.broadcast %cst_23 : f32 to vector<20x1xf32>
    %34 = arith.divf %32, %33 : vector<20x1xf32>
    %35 = vector.broadcast %34 : vector<20x1xf32> to vector<20x32xf32>
    %36 = arith.subf %28, %35 : vector<20x32xf32>
    %37 = arith.mulf %36, %36 : vector<20x32xf32>
    %cst_24 = arith.constant dense<0.000000e+00> : vector<20xf32>
    %38 = vector.multi_reduction <add>, %37, %cst_24 [1] : vector<20x32xf32> to vector<20xf32>
    %39 = vector.shape_cast %38 : vector<20xf32> to vector<20x1xf32>
    %cst_25 = arith.constant 3.200000e+01 : f32
    %40 = vector.broadcast %cst_25 : f32 to vector<20x1xf32>
    %41 = arith.divf %39, %40 : vector<20x1xf32>
    %42 = vector.broadcast %34 : vector<20x1xf32> to vector<20x32xf32>
    %43 = arith.subf %28, %42 : vector<20x32xf32>
    %cst_26 = arith.constant 9.99999996E-13 : f32
    %44 = vector.broadcast %cst_26 : f32 to vector<20x1xf32>
    %45 = arith.addf %41, %44 : vector<20x1xf32>
    %46 = math.rsqrt %45 : vector<20x1xf32>
    %47 = vector.broadcast %46 : vector<20x1xf32> to vector<20x32xf32>
    %48 = arith.mulf %43, %47 : vector<20x32xf32>
    %49 = vector.broadcast %29 : vector<1x32xf32> to vector<20x32xf32>
    %50 = arith.mulf %48, %49 : vector<20x32xf32>
    %51 = vector.broadcast %30 : vector<1x32xf32> to vector<20x32xf32>
    %52 = arith.addf %50, %51 : vector<20x32xf32>
    %c0_27 = arith.constant 0 : index
    %c0_28 = arith.constant 0 : index
    %53 = vector.load %arg8[%c0_27, %c0_28] : memref<20x32xf32, #tpu.memory_space<vmem>>, vector<20x32xf32>
    %54 = arith.addf %53, %52 : vector<20x32xf32>
    %c0_29 = arith.constant 0 : index
    %c0_30 = arith.constant 0 : index
    %55 = vector.load %arg9[%c0_29, %c0_30] : memref<20x32xf32, #tpu.memory_space<vmem>>, vector<20x32xf32>
    tpu.vector_store %arg9[%c0_29, %c0_30], %54 {strides = array<i32>} : memref<20x32xf32, #tpu.memory_space<vmem>>, vector<20x32xf32>,
    return
  }
  func.func @transform_0(%arg0: i32) -> (i32, i32) {
    %c0_i32 = arith.constant 0 : i32
    %c0_i32_0 = arith.constant 0 : i32
    return %arg0, %c0_i32 : i32, i32
  }
  func.func @transform_1(%arg0: i32) -> (i32, i32) {
    %c0_i32 = arith.constant 0 : i32
    %c0_i32_0 = arith.constant 0 : i32
    %c0_i32_1 = arith.constant 0 : i32
    return %c0_i32, %c0_i32_0 : i32, i32
  }
  func.func @transform_2(%arg0: i32) -> (i32, i32) {
    %c0_i32 = arith.constant 0 : i32
    %c0_i32_0 = arith.constant 0 : i32
    %c0_i32_1 = arith.constant 0 : i32
    return %c0_i32, %c0_i32_0 : i32, i32
  }
  func.func @transform_3(%arg0: i32) -> (i32, i32) {
    %c0_i32 = arith.constant 0 : i32
    %c0_i32_0 = arith.constant 0 : i32
    %c0_i32_1 = arith.constant 0 : i32
    return %c0_i32, %c0_i32_0 : i32, i32
  }
  func.func @transform_4(%arg0: i32) -> (i32, i32) {
    %c0_i32 = arith.constant 0 : i32
    %c0_i32_0 = arith.constant 0 : i32
    %c0_i32_1 = arith.constant 0 : i32
    return %c0_i32, %c0_i32_0 : i32, i32
  }
  func.func @transform_5(%arg0: i32) -> (i32, i32) {
    %c0_i32 = arith.constant 0 : i32
    %c0_i32_0 = arith.constant 0 : i32
    %c0_i32_1 = arith.constant 0 : i32
    return %c0_i32, %c0_i32_0 : i32, i32
  }
  func.func @transform_6(%arg0: i32) -> (i32, i32) {
    %c0_i32 = arith.constant 0 : i32
    %c0_i32_0 = arith.constant 0 : i32
    %c0_i32_1 = arith.constant 0 : i32
    return %c0_i32, %c0_i32_0 : i32, i32
  }
  func.func @transform_7(%arg0: i32) -> (i32, i32) {
    %c0_i32 = arith.constant 0 : i32
    %c0_i32_0 = arith.constant 0 : i32
    return %arg0, %c0_i32 : i32, i32
  }
  func.func @transform_8(%arg0: i32) -> (i32, i32) {
    %c0_i32 = arith.constant 0 : i32
    %c0_i32_0 = arith.constant 0 : i32
    return %arg0, %c0_i32 : i32, i32
  }
}

module attributes {stable_mosaic.version = 11 : i64} {
  func.func @_gather_kernel(%arg0: i32, %arg1: memref<1x1x6xi32, #tpu.memory_space<vmem>>, %arg2: memref<1x10x32xf32, #tpu.memory_space<vmem>>, %arg3: memref<1x6x32xf32, #tpu.memory_space<vmem>>) attributes {dimension_semantics = [#tpu.dimension_semantics<parallel>], iteration_bounds = array<i64: 2>, scalar_prefetch = 0 : i64, scratch_operands = 0 : i64, tpu.core_type = #tpu.core_type<tc>, window_params = [{transform_indices = @transform_0, window_bounds = array<i64: 1, 1, 6>}, {transform_indices = @transform_1, window_bounds = array<i64: 1, 10, 32>}, {transform_indices = @transform_2, window_bounds = array<i64: 1, 6, 32>}]} {
    %c0 = arith.constant 0 : index
    %c0_0 = arith.constant 0 : index
    %c0_1 = arith.constant 0 : index
    %0 = vector.load %arg2[%c0, %c0_0, %c0_1] : memref<1x10x32xf32, #tpu.memory_space<vmem>>, vector<1x10x32xf32>
    %1 = vector.shape_cast %0 : vector<1x10x32xf32> to vector<10x32xf32>
    %c0_2 = arith.constant 0 : index
    %c0_3 = arith.constant 0 : index
    %c0_4 = arith.constant 0 : index
    %2 = vector.load %arg1[%c0_2, %c0_3, %c0_4] : memref<1x1x6xi32, #tpu.memory_space<vmem>>, vector<1x1x6xi32>
    %3 = vector.shape_cast %2 : vector<1x1x6xi32> to vector<1x6xi32>
    %4 = tpu.iota {dimensions = array<i32: 0>} : vector<10x6xi32>
    %5 = vector.broadcast %3 : vector<1x6xi32> to vector<10x6xi32>
    %6 = arith.cmpi eq, %4, %5 : vector<10x6xi32>
    %7 = arith.extui %6 : vector<10x6xi1> to vector<10x6xi32>
    %8 = arith.sitofp %7 : vector<10x6xi32> to vector<10x6xf32>
    %cst = arith.constant dense<0.000000e+00> : vector<6x32xf32>
    %9 = tpu.matmul %8, %1, %cst {dimension_numbers = #tpu.dot_dimension_numbers<[0], [0], [1], [1], [0, 1, 1, 1], [], []>} : vector<10x6xf32>, vector<10x32xf32>, vector<6x32xf32> -> vector<6x32xf32>
    %c0_5 = arith.constant 0 : index
    %c0_6 = arith.constant 0 : index
    %c0_7 = arith.constant 0 : index
    %10 = vector.load %arg3[%c0_5, %c0_6, %c0_7] : memref<1x6x32xf32, #tpu.memory_space<vmem>>, vector<1x6x32xf32>
    %11 = vector.shape_cast %10 : vector<1x6x32xf32> to vector<6x32xf32>
    %12 = vector.shape_cast %9 : vector<6x32xf32> to vector<1x6x32xf32>
    tpu.vector_store %arg3[%c0_5, %c0_6, %c0_7], %12 {strides = array<i32>} : memref<1x6x32xf32, #tpu.memory_space<vmem>>, vector<1x6x32xf32>,
    return
  }
  func.func @transform_0(%arg0: i32) -> (i32, i32, i32) {
    %c0_i32 = arith.constant 0 : i32
    %c0_i32_0 = arith.constant 0 : i32
    %c0_i32_1 = arith.constant 0 : i32
    return %arg0, %c0_i32, %c0_i32_0 : i32, i32, i32
  }
  func.func @transform_1(%arg0: i32) -> (i32, i32, i32) {
    %c0_i32 = arith.constant 0 : i32
    %c0_i32_0 = arith.constant 0 : i32
    %c0_i32_1 = arith.constant 0 : i32
    return %arg0, %c0_i32, %c0_i32_0 : i32, i32, i32
  }
  func.func @transform_2(%arg0: i32) -> (i32, i32, i32) {
    %c0_i32 = arith.constant 0 : i32
    %c0_i32_0 = arith.constant 0 : i32
    %c0_i32_1 = arith.constant 0 : i32
    return %arg0, %c0_i32, %c0_i32_0 : i32, i32, i32
  }
}

</mosaic_0001>

<llo_original>
// kernel: bert_embedder_forward.26
$region0: #{bert_embedder_forward.26}
  #allocation0 [shape = 'u32[]', space=smem, size = 0x4, offset = 0x4, fixed_abs, tag = 'smem constant byte address 0x4 - core index']
  #allocation1 [shape = 'u32[144,128]{1,0:T(1,128)}', space=vmem, size = 0x12000, scoped, tag = 'internal scratch']
  %s0 = inlined_call_operand.vmem [shape: f32[20,32], index: 0, kind: input, shape index: {}]
  %s1 = inlined_call_operand.vmem [shape: f32[1,32], index: 1, kind: input, shape index: {}]
  %s2 = inlined_call_operand.vmem [shape: f32[1,32], index: 2, kind: input, shape index: {}]
  %s3 = inlined_call_operand.vmem [shape: bf16[20,32], index: 3, kind: output, shape index: {}]
  %s4 = sld [smem:[#allocation0]]
  $region22: #{bert_embedder_forward.26} parent=0
    _
  %s6 = ssub.s32 1, %s4
  %s7 = scalar_select 0, %s6, %s4
  // Predicated region
  $region2: #{bert_embedder_forward.26} parent=0 // pred_check
    _
  $region3: #{bert_embedder_forward.26} parent=0 // pred_check_branch
    %9 = sbr.rel (0) target = $region5
  $region4: #{bert_embedder_forward.26} parent=0 // pred_region
    _
  $region5: #{bert_embedder_forward.26} parent=0 // pred_fallthru
    _
  // Predicated region
  $region6: #{bert_embedder_forward.26} parent=0 // pred_check
    _
  $region7: #{bert_embedder_forward.26} parent=0 // pred_check_branch
    %11 = sbr.rel (0) target = $region9
  $region8: #{bert_embedder_forward.26} parent=0 // pred_region
    _
  $region9: #{bert_embedder_forward.26} parent=0 // pred_fallthru
    _
  // Predicated region
  $region10: #{bert_embedder_forward.26} parent=0 // pred_check
    _
  $region11: #{bert_embedder_forward.26} parent=0 // pred_check_branch
    %13 = sbr.rel (0) target = $region13
  $region12: #{bert_embedder_forward.26} parent=0 // pred_region
    _
  $region13: #{bert_embedder_forward.26} parent=0 // pred_fallthru
    _
  %v14 = vld [vmem:[%s0] sm:$0xff]
  %v15 = vld [vmem:[%s0 + $0x8] sm:$0xff]
  %v16 = vld [vmem:[%s0 + $0x10] sm:$0xf]
  %v17 = vld [vmem:[%s1] sm:$0x1]
  %v18 = vld [vmem:[%s2] sm:$0x1]
  %vm19 = vcmask 261120
  %v20 = vsel %vm19, %v14, 0.0
  %21 = vadd.xlane.f32.xlu0 %v20
  %v22 = vpop.xlane.xlu0 %21
  %v23 = vsel %vm19, %v15, 0.0
  %24 = vadd.xlane.f32.xlu0 %v23
  %v25 = vpop.xlane.xlu0 %24
  %vm26 = vcmask 257024
  %v27 = vsel %vm26, %v16, 0.0
  %28 = vadd.xlane.f32.xlu0 %v27
  %v29 = vpop.xlane.xlu0 %28
  %v30 = vrcp.pop 32.0
  %v31 = vmul.f32 %v22, %v30
  %v32 = vmul.f32 %v25, %v30
  %v33 = vmul.f32 %v29, %v30
  %v34 = vsub.f32 %v14, %v31
  %v35 = vsub.f32 %v15, %v32
  %v36 = vsub.f32 %v16, %v33
  %v37 = vmul.f32 %v34, %v34
  %v38 = vmul.f32 %v35, %v35
  %v39 = vmul.f32 %v36, %v36
  %v40 = vsel %vm19, %v37, 0.0
  %41 = vadd.xlane.f32.xlu0 %v40
  %v42 = vpop.xlane.xlu0 %41
  %v43 = vsel %vm19, %v38, 0.0
  %44 = vadd.xlane.f32.xlu0 %v43
  %v45 = vpop.xlane.xlu0 %44
  %v46 = vsel %vm26, %v39, 0.0
  %47 = vadd.xlane.f32.xlu0 %v46
  %v48 = vpop.xlane.xlu0 %47
  %v49 = vmul.f32 %v42, %v30
  %v50 = vmul.f32 %v45, %v30
  %v51 = vmul.f32 %v48, %v30
  %v52 = vadd.f32 %v49, 1e-12
  %v53 = vadd.f32 %v50, 1e-12
  %v54 = vadd.f32 %v51, 1e-12
  %v55 = vrsqrt.pop %v52
  %v56 = vrsqrt.pop %v53
  %v57 = vrsqrt.pop %v54
  %v58 = vmul.f32 %v34, %v55
  %v59 = vmul.f32 %v35, %v56
  %v60 = vmul.f32 %v36, %v57
  %v62 = vlaneseq
  %v63 = vshrl.u32 %v62, 7
  %v64 = vsub.s32 0, %v63
  %v65 = vrot.slane %v17, %v64
  %v67 = vmul.f32 %v58, %v65
  %v68 = vmul.f32 %v59, %v65
  %v69 = vmul.f32 %v60, %v65
  %v71 = vlaneseq
  %v72 = vshrl.u32 %v71, 7
  %v73 = vsub.s32 0, %v72
  %v74 = vrot.slane %v18, %v73
  %v76 = vadd.f32 %v67, %v74
  %v77 = vadd.f32 %v68, %v74
  %v78 = vadd.f32 %v69, %v74
  %v79 = vpack.c.bf16 %v77, %v76
  %v80 = vpack.c.bf16 %v78, %v78
  %v83 = vunpack.c.l.b16 %v79
  %v84 = vunpack.c.h.b16 %v79
  %v85 = vunpack.c.l.b16 %v80
  %v86 = vpack.c.b16 %v83, %v83
  %v87 = vpack.c.b16 %v84, %v84
  %v88 = vpack.c.b16 %v85, %v85
  %92 = vst.msk [vmem:[%s3] sm:$0xf] %vm26, %v86
  %93 = vst.msk [vmem:[%s3 + $0x4] sm:$0xf] %vm26, %v87
  %vm94 = vcmask 254976
  %95 = vst.msk [vmem:[%s3 + $0x8] sm:$0x3] %vm94, %v88
  // Predicated region
  $region14: #{bert_embedder_forward.26} parent=0 // pred_check
    _
  $region15: #{bert_embedder_forward.26} parent=0 // pred_check_branch
    %97 = sbr.rel (0) target = $region17
  $region16: #{bert_embedder_forward.26} parent=0 // pred_region
    _
  $region17: #{bert_embedder_forward.26} parent=0 // pred_fallthru
    _
  // Predicated region
  $region18: #{bert_embedder_forward.26} parent=0 // pred_check
    _
  $region19: #{bert_embedder_forward.26} parent=0 // pred_check_branch
    %99 = sbr.rel (0) target = $region21
  $region20: #{bert_embedder_forward.26} parent=0 // pred_region
    _
  $region21: #{bert_embedder_forward.26} parent=0 // pred_fallthru
    _

// kernel: bert_embedder_forward.28
$region0: #{bert_embedder_forward.28}
  #allocation0 [shape = 'u32[]', space=smem, size = 0x4, offset = 0x4, fixed_abs, tag = 'smem constant byte address 0x4 - core index']
  #allocation1 [shape = 'u32[144,128]{1,0:T(1,128)}', space=vmem, size = 0x12000, scoped, tag = 'internal scratch']
  #allocation2 [shape = 'bf16[20,128]{1,0:T(8,128)(2,1)}', space=vmem, size = 0x1800, scoped, tag = 'scratch operand']
  %s0 = inlined_call_operand.vmem [shape: bf16[20,32], index: 0, kind: input, shape index: {}]
  %s1 = inlined_call_operand.vmem [shape: bf16[32,128], index: 1, kind: input, shape index: {}]
  %s2 = inlined_call_operand.vmem [shape: f32[1,128], index: 2, kind: input, shape index: {}]
  %s3 = inlined_call_operand.vmem [shape: bf16[128,32], index: 3, kind: input, shape index: {}]
  %s4 = inlined_call_operand.vmem [shape: f32[1,32], index: 4, kind: input, shape index: {}]
  %s5 = inlined_call_operand.vmem [shape: f32[1,32], index: 5, kind: input, shape index: {}]
  %s6 = inlined_call_operand.vmem [shape: f32[1,32], index: 6, kind: input, shape index: {}]
  %s7 = inlined_call_operand.vmem [shape: f32[20,32], index: 7, kind: input, shape index: {}, may-alias: {7,9}]
  %s8 = inlined_call_operand.vmem [shape: bf16[20,32], index: 8, kind: output, shape index: {0}]
  %s9 = inlined_call_operand.vmem [shape: f32[20,32], index: 9, kind: output, shape index: {1}, may-alias: {7,9}]
  %10 = xla_tuple %s8, %s9
  %s11 = sld [smem:[#allocation0]]
  $region50: #{bert_embedder_forward.28} parent=0
    _
  %s13 = ssub.s32 1, %s11
  %s14 = scalar_select 0, %s13, %s11
  // Predicated region
  $region2: #{bert_embedder_forward.28} parent=0 // pred_check
    _
  $region3: #{bert_embedder_forward.28} parent=0 // pred_check_branch
    %16 = sbr.rel (0) target = $region5
  $region4: #{bert_embedder_forward.28} parent=0 // pred_region
    _
  $region5: #{bert_embedder_forward.28} parent=0 // pred_fallthru
    _
  // Predicated region
  $region6: #{bert_embedder_forward.28} parent=0 // pred_check
    _
  $region7: #{bert_embedder_forward.28} parent=0 // pred_check_branch
    %18 = sbr.rel (0) target = $region9
  $region8: #{bert_embedder_forward.28} parent=0 // pred_region
    _
  $region9: #{bert_embedder_forward.28} parent=0 // pred_fallthru
    _
  // Predicated region
  $region10: #{bert_embedder_forward.28} parent=0 // pred_check
    _
  $region11: #{bert_embedder_forward.28} parent=0 // pred_check_branch
    %20 = sbr.rel (0) target = $region13
  $region12: #{bert_embedder_forward.28} parent=0 // pred_region
    _
  $region13: #{bert_embedder_forward.28} parent=0 // pred_fallthru
    _
  // Predicated region
  $region14: #{bert_embedder_forward.28} parent=0 // pred_check
    _
  $region15: #{bert_embedder_forward.28} parent=0 // pred_check_branch
    %22 = sbr.rel (0) target = $region17
  $region16: #{bert_embedder_forward.28} parent=0 // pred_region
    _
  $region17: #{bert_embedder_forward.28} parent=0 // pred_fallthru
    _
  // Predicated region
  $region18: #{bert_embedder_forward.28} parent=0 // pred_check
    _
  $region19: #{bert_embedder_forward.28} parent=0 // pred_check_branch
    %24 = sbr.rel (0) target = $region21
  $region20: #{bert_embedder_forward.28} parent=0 // pred_region
    _
  $region21: #{bert_embedder_forward.28} parent=0 // pred_fallthru
    _
  // Predicated region
  $region22: #{bert_embedder_forward.28} parent=0 // pred_check
    _
  $region23: #{bert_embedder_forward.28} parent=0 // pred_check_branch
    %26 = sbr.rel (0) target = $region25
  $region24: #{bert_embedder_forward.28} parent=0 // pred_region
    _
  $region25: #{bert_embedder_forward.28} parent=0 // pred_fallthru
    _
  // Predicated region
  $region26: #{bert_embedder_forward.28} parent=0 // pred_check
    _
  $region27: #{bert_embedder_forward.28} parent=0 // pred_check_branch
    %28 = sbr.rel (0) target = $region29
  $region28: #{bert_embedder_forward.28} parent=0 // pred_region
    _
  $region29: #{bert_embedder_forward.28} parent=0 // pred_fallthru
    _
  // Predicated region
  $region30: #{bert_embedder_forward.28} parent=0 // pred_check
    _
  $region31: #{bert_embedder_forward.28} parent=0 // pred_check_branch
    %30 = sbr.rel (0) target = $region33
  $region32: #{bert_embedder_forward.28} parent=0 // pred_region
    _
  $region33: #{bert_embedder_forward.28} parent=0 // pred_fallthru
    _
  %v32 = vld [vmem:[%s0] sm:$0xf]
  %v33 = vld [vmem:[%s0 + $0x4] sm:$0xf]
  %v34 = vld [vmem:[%s0 + $0x8] sm:$0x3]
  %v35 = vld [vmem:[%s1] sm:$0xf]
  %v36 = vld [vmem:[%s1 + $0x4] sm:$0xf]
  %v37 = vld [vmem:[%s1 + $0x8] sm:$0xf]
  %v38 = vld [vmem:[%s1 + $0xc] sm:$0xf]
  %v39 = vld [vmem:[%s2] sm:$0x1]
  %v41 = vlaneseq
  %v42 = vshrl.u32 %v41, 7
  %v43 = vsub.s32 0, %v42
  %v44 = vrot.slane %v39, %v43
  %v49 = vunpack.c.l.b16 %v32
  %v50 = vunpack.c.l.b16 %v33
  %v51 = vunpack.c.l.b16 %v34
  %v52 = vpack.c.b16 %v50, %v49
  %v53 = vpack.c.b16 %v51, %v51
  %v58 = vunpack.c.l.b16 %v35
  %v59 = vunpack.c.l.b16 %v36
  %v60 = vunpack.c.l.b16 %v37
  %v61 = vunpack.c.l.b16 %v38
  %v62 = vpack.c.b16 %v59, %v58
  %v63 = vpack.c.b16 %v61, %v60
  %vm66 = vcmask 261120
  %v68 = vsel %vm66, %v52, 0
  %v71 = vsel %vm66, %v53, 0
  %73 = vmatprep.subr.bf16.mxu0 0
  %74 = vmatpush1.bf16.msra.mxu0 0
  %75 = vmatprep.subr.bf16.mxu0 0
  %76 = vmatpush1.bf16.msra.mxu0 0
  %77 = vmatprep.subr.bf16.mxu0 0
  %78 = vmatpush1.bf16.msra.mxu0 0
  %79 = vmatprep.subr.bf16.mxu0 0
  %80 = vmatpush1.bf16.msra.mxu0 0
  %81 = vmatprep.subr.bf16.mxu0 0
  %82 = vmatpush1.bf16.msra.mxu0 0
  %83 = vmatprep.subr.bf16.mxu0 0
  %84 = vmatpush1.bf16.msra.mxu0 0
  %85 = vmatprep.subr.bf16.mxu0 0
  %86 = vmatpush1.bf16.msra.mxu0 %v63
  %87 = vmatprep.subr.bf16.mxu0 0
  %88 = vmatpush1.bf16.msra.mxu0 %v62
  %89 = vmatprep.subr.bf16.mxu0 0
  %90 = vmatpush2.bf16.msra.mxu0 0
  %91 = vmatprep.subr.bf16.mxu0 0
  %92 = vmatpush2.bf16.msra.mxu0 0
  %93 = vmatprep.subr.bf16.mxu0 0
  %94 = vmatpush2.bf16.msra.mxu0 0
  %95 = vmatprep.subr.bf16.mxu0 0
  %96 = vmatpush2.bf16.msra.mxu0 0
  %97 = vmatprep.subr.bf16.mxu0 0
  %98 = vmatpush2.bf16.msra.mxu0 0
  %99 = vmatprep.subr.bf16.mxu0 0
  %100 = vmatpush2.bf16.msra.mxu0 0
  %101 = vmatprep.subr.bf16.mxu0 0
  %102 = vmatpush2.bf16.msra.mxu0 0
  %103 = vmatprep.subr.bf16.mxu0 0
  %104 = vmatpush2.bf16.msra.mxu0 0
  %105 = vmatprep.mubr.bf16.mxu0 0
  %106 = vmatmul.mubr.bf16.gmra.mxu0 %v68
  %v107 = vpop.f32.mrf.mxu0
  %v108 = vadd.f32 %v44, %v107
  %v109 = vpop.f32.mrf.mxu0
  %v110 = vpop.f32.mrf.mxu0
  %v111 = vadd.f32 %v44, %v110
  %v112 = vpop.f32.mrf.mxu0
  %113 = vmatprep.mubr.bf16.mxu0 0
  %114 = vmatmul.mubr.bf16.gmra.mxu0 %v71
  %v115 = vpop.f32.mrf.mxu0
  %v116 = vadd.f32 %v44, %v115
  %v117 = vpop.f32.mrf.mxu0
  %v118 = vpop.f32.mrf.mxu0
  %v119 = vpop.f32.mrf.mxu0
  %120 = vdwg.mxu0
  %v121 = vmul.f32 %v108, %v108
  %v122 = vmul.f32 %v111, %v111
  %v123 = vmul.f32 %v116, %v116
  %v124 = vmul.f32 %v108, %v121
  %v125 = vmul.f32 %v111, %v122
  %v126 = vmul.f32 %v116, %v123
  %v127 = vmul.f32 %v124, 0.044715
  %v128 = vmul.f32 %v125, 0.044715
  %v129 = vmul.f32 %v126, 0.044715
  %v130 = vadd.f32 %v108, %v127
  %v131 = vadd.f32 %v111, %v128
  %v132 = vadd.f32 %v116, %v129
  %v133 = vmul.f32 %v130, 0.7978846
  %v134 = vmul.f32 %v131, 0.7978846
  %v135 = vmul.f32 %v132, 0.7978846
  %v136 = vtanh.pop %v133
  %v137 = vtanh.pop %v134
  %v138 = vtanh.pop %v135
  %v139 = vadd.f32 %v136, 1.0
  %v140 = vadd.f32 %v137, 1.0
  %v141 = vadd.f32 %v138, 1.0
  %v142 = vmul.f32 %v139, 0.5
  %v143 = vmul.f32 %v140, 0.5
  %v144 = vmul.f32 %v141, 0.5
  %v145 = vmul.f32 %v108, %v142
  %v146 = vmul.f32 %v111, %v143
  %v147 = vmul.f32 %v116, %v144
  %v148 = vpack.c.bf16 %v146, %v145
  %v149 = vpack.c.bf16 %v147, %v147
  %v152 = vunpack.c.l.b16 %v148
  %v153 = vunpack.c.h.b16 %v148
  %v154 = vunpack.c.l.b16 %v149
  %v155 = vpack.c.b16 %v152, %v152
  %v156 = vpack.c.b16 %v153, %v153
  %v157 = vpack.c.b16 %v154, %v154
  %161 = vst [vmem:[#allocation2] sm:$0xf] %v155
  %162 = vst [vmem:[#allocation2 + $0x4] sm:$0xf] %v156
  %163 = vst [vmem:[#allocation2 + $0x8] sm:$0x3] %v157
  %v164 = vld [vmem:[#allocation2] sm:$0xf]
  %v165 = vld [vmem:[#allocation2 + $0x4] sm:$0xf]
  %v166 = vld [vmem:[#allocation2 + $0x8] sm:$0x3]
  %v167 = vld [vmem:[%s3] sm:$0xf]
  %v168 = vld [vmem:[%s3 + $0x4] sm:$0xf]
  %v169 = vld [vmem:[%s3 + $0x8] sm:$0xf]
  %v170 = vld [vmem:[%s3 + $0xc] sm:$0xf]
  %v171 = vld [vmem:[%s3 + $0x10] sm:$0xf]
  %v172 = vld [vmem:[%s3 + $0x14] sm:$0xf]
  %v173 = vld [vmem:[%s3 + $0x18] sm:$0xf]
  %v174 = vld [vmem:[%s3 + $0x1c] sm:$0xf]
  %v175 = vld [vmem:[%s3 + $0x20] sm:$0xf]
  %v176 = vld [vmem:[%s3 + $0x24] sm:$0xf]
  %v177 = vld [vmem:[%s3 + $0x28] sm:$0xf]
  %v178 = vld [vmem:[%s3 + $0x2c] sm:$0xf]
  %v179 = vld [vmem:[%s3 + $0x30] sm:$0xf]
  %v180 = vld [vmem:[%s3 + $0x34] sm:$0xf]
  %v181 = vld [vmem:[%s3 + $0x38] sm:$0xf]
  %v182 = vld [vmem:[%s3 + $0x3c] sm:$0xf]
  %v183 = vld [vmem:[%s4] sm:$0x1]
  %v185 = vlaneseq
  %v186 = vshrl.u32 %v185, 7
  %v187 = vsub.s32 0, %v186
  %v188 = vrot.slane %v183, %v187
  %v193 = vunpack.c.l.b16 %v164
  %v194 = vunpack.c.l.b16 %v165
  %v195 = vunpack.c.l.b16 %v166
  %v196 = vpack.c.b16 %v194, %v193
  %v197 = vpack.c.b16 %v195, %v195
  %v216 = vunpack.c.l.b16 %v167
  %v217 = vunpack.c.l.b16 %v168
  %v218 = vunpack.c.l.b16 %v169
  %v219 = vunpack.c.l.b16 %v170
  %v220 = vunpack.c.l.b16 %v171
  %v221 = vunpack.c.l.b16 %v172
  %v222 = vunpack.c.l.b16 %v173
  %v223 = vunpack.c.l.b16 %v174
  %v224 = vunpack.c.l.b16 %v175
  %v225 = vunpack.c.l.b16 %v176
  %v226 = vunpack.c.l.b16 %v177
  %v227 = vunpack.c.l.b16 %v178
  %v228 = vunpack.c.l.b16 %v179
  %v229 = vunpack.c.l.b16 %v180
  %v230 = vunpack.c.l.b16 %v181
  %v231 = vunpack.c.l.b16 %v182
  %v232 = vpack.c.b16 %v217, %v216
  %v233 = vpack.c.b16 %v219, %v218
  %v234 = vpack.c.b16 %v221, %v220
  %v235 = vpack.c.b16 %v223, %v222
  %v236 = vpack.c.b16 %v225, %v224
  %v237 = vpack.c.b16 %v227, %v226
  %v238 = vpack.c.b16 %v229, %v228
  %v239 = vpack.c.b16 %v231, %v230
  %248 = vmatprep.subr.bf16.mxu0 0
  %249 = vmatpush1.bf16.msra.mxu0 %v239
  %250 = vmatprep.subr.bf16.mxu0 0
  %251 = vmatpush1.bf16.msra.mxu0 %v238
  %252 = vmatprep.subr.bf16.mxu0 0
  %253 = vmatpush1.bf16.msra.mxu0 %v237
  %254 = vmatprep.subr.bf16.mxu0 0
  %255 = vmatpush1.bf16.msra.mxu0 %v236
  %256 = vmatprep.subr.bf16.mxu0 0
  %257 = vmatpush1.bf16.msra.mxu0 %v235
  %258 = vmatprep.subr.bf16.mxu0 0
  %259 = vmatpush1.bf16.msra.mxu0 %v234
  %260 = vmatprep.subr.bf16.mxu0 0
  %261 = vmatpush1.bf16.msra.mxu0 %v233
  %262 = vmatprep.subr.bf16.mxu0 0
  %263 = vmatpush1.bf16.msra.mxu0 %v232
  %264 = vmatprep.subr.bf16.mxu0 0
  %265 = vmatpush2.bf16.msra.mxu0 0
  %266 = vmatprep.subr.bf16.mxu0 0
  %267 = vmatpush2.bf16.msra.mxu0 0
  %268 = vmatprep.subr.bf16.mxu0 0
  %269 = vmatpush2.bf16.msra.mxu0 0
  %270 = vmatprep.subr.bf16.mxu0 0
  %271 = vmatpush2.bf16.msra.mxu0 0
  %272 = vmatprep.subr.bf16.mxu0 0
  %273 = vmatpush2.bf16.msra.mxu0 0
  %274 = vmatprep.subr.bf16.mxu0 0
  %275 = vmatpush2.bf16.msra.mxu0 0
  %276 = vmatprep.subr.bf16.mxu0 0
  %277 = vmatpush2.bf16.msra.mxu0 0
  %278 = vmatprep.subr.bf16.mxu0 0
  %279 = vmatpush2.bf16.msra.mxu0 0
  %280 = vmatprep.mubr.bf16.mxu0 0
  %281 = vmatmul.mubr.bf16.gmra.mxu0 %v196
  %v282 = vpop.f32.mrf.mxu0
  %v283 = vadd.f32 %v188, %v282
  %v284 = vpop.f32.mrf.mxu0
  %v285 = vpop.f32.mrf.mxu0
  %v286 = vadd.f32 %v188, %v285
  %v287 = vpop.f32.mrf.mxu0
  %288 = vmatprep.mubr.bf16.mxu0 0
  %289 = vmatmul.mubr.bf16.gmra.mxu0 %v197
  %v290 = vpop.f32.mrf.mxu0
  %v291 = vadd.f32 %v188, %v290
  %v292 = vpop.f32.mrf.mxu0
  %v293 = vpop.f32.mrf.mxu0
  %v294 = vpop.f32.mrf.mxu0
  %295 = vdwg.mxu0
  %v296 = vunpack.c.l.bf16 %v32
  %v297 = vunpack.c.l.bf16 %v33
  %v298 = vunpack.c.l.bf16 %v34
  %v299 = vadd.f32 %v283, %v296
  %v300 = vadd.f32 %v286, %v297
  %v301 = vadd.f32 %v291, %v298
  %v302 = vld [vmem:[%s5] sm:$0x1]
  %v303 = vld [vmem:[%s6] sm:$0x1]
  %v304 = vsel %vm66, %v299, 0.0
  %305 = vadd.xlane.f32.xlu0 %v304
  %v306 = vpop.xlane.xlu0 %305
  %v307 = vsel %vm66, %v300, 0.0
  %308 = vadd.xlane.f32.xlu0 %v307
  %v309 = vpop.xlane.xlu0 %308
  %vm310 = vcmask 257024
  %v311 = vsel %vm310, %v301, 0.0
  %312 = vadd.xlane.f32.xlu0 %v311
  %v313 = vpop.xlane.xlu0 %312
  %v314 = vrcp.pop 32.0
  %v315 = vmul.f32 %v306, %v314
  %v316 = vmul.f32 %v309, %v314
  %v317 = vmul.f32 %v313, %v314
  %v318 = vsub.f32 %v299, %v315
  %v319 = vsub.f32 %v300, %v316
  %v320 = vsub.f32 %v301, %v317
  %v321 = vmul.f32 %v318, %v318
  %v322 = vmul.f32 %v319, %v319
  %v323 = vmul.f32 %v320, %v320
  %v324 = vsel %vm66, %v321, 0.0
  %325 = vadd.xlane.f32.xlu0 %v324
  %v326 = vpop.xlane.xlu0 %325
  %v327 = vsel %vm66, %v322, 0.0
  %328 = vadd.xlane.f32.xlu0 %v327
  %v329 = vpop.xlane.xlu0 %328
  %v330 = vsel %vm310, %v323, 0.0
  %331 = vadd.xlane.f32.xlu0 %v330
  %v332 = vpop.xlane.xlu0 %331
  %v333 = vmul.f32 %v326, %v314
  %v334 = vmul.f32 %v329, %v314
  %v335 = vmul.f32 %v332, %v314
  %v336 = vadd.f32 %v333, 1e-12
  %v337 = vadd.f32 %v334, 1e-12
  %v338 = vadd.f32 %v335, 1e-12
  %v339 = vrsqrt.pop %v336
  %v340 = vrsqrt.pop %v337
  %v341 = vrsqrt.pop %v338
  %v342 = vmul.f32 %v318, %v339
  %v343 = vmul.f32 %v319, %v340
  %v344 = vmul.f32 %v320, %v341
  %v346 = vlaneseq
  %v347 = vshrl.u32 %v346, 7
  %v348 = vsub.s32 0, %v347
  %v349 = vrot.slane %v302, %v348
  %v351 = vmul.f32 %v342, %v349
  %v352 = vmul.f32 %v343, %v349
  %v353 = vmul.f32 %v344, %v349
  %v355 = vlaneseq
  %v356 = vshrl.u32 %v355, 7
  %v357 = vsub.s32 0, %v356
  %v358 = vrot.slane %v303, %v357
  %v360 = vadd.f32 %v351, %v358
  %v361 = vadd.f32 %v352, %v358
  %v362 = vadd.f32 %v353, %v358
  %v363 = vpack.c.bf16 %v361, %v360
  %v364 = vpack.c.bf16 %v362, %v362
  %v367 = vunpack.c.l.b16 %v363
  %v368 = vunpack.c.h.b16 %v363
  %v369 = vunpack.c.l.b16 %v364
  %v370 = vpack.c.b16 %v367, %v367
  %v371 = vpack.c.b16 %v368, %v368
  %v372 = vpack.c.b16 %v369, %v369
  %376 = vst.msk [vmem:[%s8] sm:$0xf] %vm310, %v370
  %377 = vst.msk [vmem:[%s8 + $0x4] sm:$0xf] %vm310, %v371
  %vm378 = vcmask 254976
  %379 = vst.msk [vmem:[%s8 + $0x8] sm:$0x3] %vm378, %v372
  %v380 = vld [vmem:[%s7] sm:$0xff]
  %v381 = vld [vmem:[%s7 + $0x8] sm:$0xff]
  %v382 = vld [vmem:[%s7 + $0x10] sm:$0xf]
  %v383 = vadd.f32 %v380, %v360
  %v384 = vadd.f32 %v381, %v361
  %v385 = vadd.f32 %v382, %v362
  %386 = vst.msk [vmem:[%s9] sm:$0xff] %vm66, %v383
  %387 = vst.msk [vmem:[%s9 + $0x8] sm:$0xff] %vm66, %v384
  %388 = vst.msk [vmem:[%s9 + $0x10] sm:$0xf] %vm310, %v385
  // Predicated region
  $region34: #{bert_embedder_forward.28} parent=0 // pred_check
    _
  $region35: #{bert_embedder_forward.28} parent=0 // pred_check_branch
    %390 = sbr.rel (0) target = $region37
  $region36: #{bert_embedder_forward.28} parent=0 // pred_region
    _
  $region37: #{bert_embedder_forward.28} parent=0 // pred_fallthru
    _
  // Predicated region
  $region38: #{bert_embedder_forward.28} parent=0 // pred_check
    _
  $region39: #{bert_embedder_forward.28} parent=0 // pred_check_branch
    %392 = sbr.rel (0) target = $region41
  $region40: #{bert_embedder_forward.28} parent=0 // pred_region
    _
  $region41: #{bert_embedder_forward.28} parent=0 // pred_fallthru
    _
  // Predicated region
  $region42: #{bert_embedder_forward.28} parent=0 // pred_check
    _
  $region43: #{bert_embedder_forward.28} parent=0 // pred_check_branch
    %394 = sbr.rel (0) target = $region45
  $region44: #{bert_embedder_forward.28} parent=0 // pred_region
    _
  $region45: #{bert_embedder_forward.28} parent=0 // pred_fallthru
    _
  // Predicated region
  $region46: #{bert_embedder_forward.28} parent=0 // pred_check
    _
  $region47: #{bert_embedder_forward.28} parent=0 // pred_check_branch
    %396 = sbr.rel (0) target = $region49
  $region48: #{bert_embedder_forward.28} parent=0 // pred_region
    _
  $region49: #{bert_embedder_forward.28} parent=0 // pred_fallthru
    _

// kernel: bert_embedder_forward.50
$region0: #{bert_embedder_forward.50}
  #allocation0 [shape = 'u32[]', space=smem, size = 0x4, offset = 0x4, fixed_abs, tag = 'smem constant byte address 0x4 - core index']
  #allocation1 [shape = 'u32[144,128]{1,0:T(1,128)}', space=vmem, size = 0x12000, scoped, tag = 'internal scratch']
  #allocation2 [shape = 'bf16[20,128]{1,0:T(8,128)(2,1)}', space=vmem, size = 0x1800, scoped, tag = 'scratch operand']
  %s0 = inlined_call_operand.vmem [shape: bf16[20,32], index: 0, kind: input, shape index: {}]
  %s1 = inlined_call_operand.vmem [shape: bf16[32,128], index: 1, kind: input, shape index: {}]
  %s2 = inlined_call_operand.vmem [shape: f32[1,128], index: 2, kind: input, shape index: {}]
  %s3 = inlined_call_operand.vmem [shape: bf16[128,32], index: 3, kind: input, shape index: {}]
  %s4 = inlined_call_operand.vmem [shape: f32[1,32], index: 4, kind: input, shape index: {}]
  %s5 = inlined_call_operand.vmem [shape: f32[1,32], index: 5, kind: input, shape index: {}]
  %s6 = inlined_call_operand.vmem [shape: f32[1,32], index: 6, kind: input, shape index: {}]
  %s7 = inlined_call_operand.vmem [shape: f32[20,32], index: 7, kind: input, shape index: {}, may-alias: {7,8}]
  %s8 = inlined_call_operand.vmem [shape: f32[20,32], index: 8, kind: output, shape index: {}, may-alias: {7,8}]
  %s9 = sld [smem:[#allocation0]]
  $region42: #{bert_embedder_forward.50} parent=0
    _
  %s11 = ssub.s32 1, %s9
  %s12 = scalar_select 0, %s11, %s9
  // Predicated region
  $region2: #{bert_embedder_forward.50} parent=0 // pred_check
    _
  $region3: #{bert_embedder_forward.50} parent=0 // pred_check_branch
    %14 = sbr.rel (0) target = $region5
  $region4: #{bert_embedder_forward.50} parent=0 // pred_region
    _
  $region5: #{bert_embedder_forward.50} parent=0 // pred_fallthru
    _
  // Predicated region
  $region6: #{bert_embedder_forward.50} parent=0 // pred_check
    _
  $region7: #{bert_embedder_forward.50} parent=0 // pred_check_branch
    %16 = sbr.rel (0) target = $region9
  $region8: #{bert_embedder_forward.50} parent=0 // pred_region
    _
  $region9: #{bert_embedder_forward.50} parent=0 // pred_fallthru
    _
  // Predicated region
  $region10: #{bert_embedder_forward.50} parent=0 // pred_check
    _
  $region11: #{bert_embedder_forward.50} parent=0 // pred_check_branch
    %18 = sbr.rel (0) target = $region13
  $region12: #{bert_embedder_forward.50} parent=0 // pred_region
    _
  $region13: #{bert_embedder_forward.50} parent=0 // pred_fallthru
    _
  // Predicated region
  $region14: #{bert_embedder_forward.50} parent=0 // pred_check
    _
  $region15: #{bert_embedder_forward.50} parent=0 // pred_check_branch
    %20 = sbr.rel (0) target = $region17
  $region16: #{bert_embedder_forward.50} parent=0 // pred_region
    _
  $region17: #{bert_embedder_forward.50} parent=0 // pred_fallthru
    _
  // Predicated region
  $region18: #{bert_embedder_forward.50} parent=0 // pred_check
    _
  $region19: #{bert_embedder_forward.50} parent=0 // pred_check_branch
    %22 = sbr.rel (0) target = $region21
  $region20: #{bert_embedder_forward.50} parent=0 // pred_region
    _
  $region21: #{bert_embedder_forward.50} parent=0 // pred_fallthru
    _
  // Predicated region
  $region22: #{bert_embedder_forward.50} parent=0 // pred_check
    _
  $region23: #{bert_embedder_forward.50} parent=0 // pred_check_branch
    %24 = sbr.rel (0) target = $region25
  $region24: #{bert_embedder_forward.50} parent=0 // pred_region
    _
  $region25: #{bert_embedder_forward.50} parent=0 // pred_fallthru
    _
  // Predicated region
  $region26: #{bert_embedder_forward.50} parent=0 // pred_check
    _
  $region27: #{bert_embedder_forward.50} parent=0 // pred_check_branch
    %26 = sbr.rel (0) target = $region29
  $region28: #{bert_embedder_forward.50} parent=0 // pred_region
    _
  $region29: #{bert_embedder_forward.50} parent=0 // pred_fallthru
    _
  // Predicated region
  $region30: #{bert_embedder_forward.50} parent=0 // pred_check
    _
  $region31: #{bert_embedder_forward.50} parent=0 // pred_check_branch
    %28 = sbr.rel (0) target = $region33
  $region32: #{bert_embedder_forward.50} parent=0 // pred_region
    _
  $region33: #{bert_embedder_forward.50} parent=0 // pred_fallthru
    _
  %v30 = vld [vmem:[%s0] sm:$0xf]
  %v31 = vld [vmem:[%s0 + $0x4] sm:$0xf]
  %v32 = vld [vmem:[%s0 + $0x8] sm:$0x3]
  %v33 = vld [vmem:[%s1] sm:$0xf]
  %v34 = vld [vmem:[%s1 + $0x4] sm:$0xf]
  %v35 = vld [vmem:[%s1 + $0x8] sm:$0xf]
  %v36 = vld [vmem:[%s1 + $0xc] sm:$0xf]
  %v37 = vld [vmem:[%s2] sm:$0x1]
  %v39 = vlaneseq
  %v40 = vshrl.u32 %v39, 7
  %v41 = vsub.s32 0, %v40
  %v42 = vrot.slane %v37, %v41
  %v47 = vunpack.c.l.b16 %v30
  %v48 = vunpack.c.l.b16 %v31
  %v49 = vunpack.c.l.b16 %v32
  %v50 = vpack.c.b16 %v48, %v47
  %v51 = vpack.c.b16 %v49, %v49
  %v56 = vunpack.c.l.b16 %v33
  %v57 = vunpack.c.l.b16 %v34
  %v58 = vunpack.c.l.b16 %v35
  %v59 = vunpack.c.l.b16 %v36
  %v60 = vpack.c.b16 %v57, %v56
  %v61 = vpack.c.b16 %v59, %v58
  %vm64 = vcmask 261120
  %v66 = vsel %vm64, %v50, 0
  %v69 = vsel %vm64, %v51, 0
  %71 = vmatprep.subr.bf16.mxu0 0
  %72 = vmatpush1.bf16.msra.mxu0 0
  %73 = vmatprep.subr.bf16.mxu0 0
  %74 = vmatpush1.bf16.msra.mxu0 0
  %75 = vmatprep.subr.bf16.mxu0 0
  %76 = vmatpush1.bf16.msra.mxu0 0
  %77 = vmatprep.subr.bf16.mxu0 0
  %78 = vmatpush1.bf16.msra.mxu0 0
  %79 = vmatprep.subr.bf16.mxu0 0
  %80 = vmatpush1.bf16.msra.mxu0 0
  %81 = vmatprep.subr.bf16.mxu0 0
  %82 = vmatpush1.bf16.msra.mxu0 0
  %83 = vmatprep.subr.bf16.mxu0 0
  %84 = vmatpush1.bf16.msra.mxu0 %v61
  %85 = vmatprep.subr.bf16.mxu0 0
  %86 = vmatpush1.bf16.msra.mxu0 %v60
  %87 = vmatprep.subr.bf16.mxu0 0
  %88 = vmatpush2.bf16.msra.mxu0 0
  %89 = vmatprep.subr.bf16.mxu0 0
  %90 = vmatpush2.bf16.msra.mxu0 0
  %91 = vmatprep.subr.bf16.mxu0 0
  %92 = vmatpush2.bf16.msra.mxu0 0
  %93 = vmatprep.subr.bf16.mxu0 0
  %94 = vmatpush2.bf16.msra.mxu0 0
  %95 = vmatprep.subr.bf16.mxu0 0
  %96 = vmatpush2.bf16.msra.mxu0 0
  %97 = vmatprep.subr.bf16.mxu0 0
  %98 = vmatpush2.bf16.msra.mxu0 0
  %99 = vmatprep.subr.bf16.mxu0 0
  %100 = vmatpush2.bf16.msra.mxu0 0
  %101 = vmatprep.subr.bf16.mxu0 0
  %102 = vmatpush2.bf16.msra.mxu0 0
  %103 = vmatprep.mubr.bf16.mxu0 0
  %104 = vmatmul.mubr.bf16.gmra.mxu0 %v66
  %v105 = vpop.f32.mrf.mxu0
  %v106 = vadd.f32 %v42, %v105
  %v107 = vpop.f32.mrf.mxu0
  %v108 = vpop.f32.mrf.mxu0
  %v109 = vadd.f32 %v42, %v108
  %v110 = vpop.f32.mrf.mxu0
  %111 = vmatprep.mubr.bf16.mxu0 0
  %112 = vmatmul.mubr.bf16.gmra.mxu0 %v69
  %v113 = vpop.f32.mrf.mxu0
  %v114 = vadd.f32 %v42, %v113
  %v115 = vpop.f32.mrf.mxu0
  %v116 = vpop.f32.mrf.mxu0
  %v117 = vpop.f32.mrf.mxu0
  %118 = vdwg.mxu0
  %v119 = vmul.f32 %v106, %v106
  %v120 = vmul.f32 %v109, %v109
  %v121 = vmul.f32 %v114, %v114
  %v122 = vmul.f32 %v106, %v119
  %v123 = vmul.f32 %v109, %v120
  %v124 = vmul.f32 %v114, %v121
  %v125 = vmul.f32 %v122, 0.044715
  %v126 = vmul.f32 %v123, 0.044715
  %v127 = vmul.f32 %v124, 0.044715
  %v128 = vadd.f32 %v106, %v125
  %v129 = vadd.f32 %v109, %v126
  %v130 = vadd.f32 %v114, %v127
  %v131 = vmul.f32 %v128, 0.7978846
  %v132 = vmul.f32 %v129, 0.7978846
  %v133 = vmul.f32 %v130, 0.7978846
  %v134 = vtanh.pop %v131
  %v135 = vtanh.pop %v132
  %v136 = vtanh.pop %v133
  %v137 = vadd.f32 %v134, 1.0
  %v138 = vadd.f32 %v135, 1.0
  %v139 = vadd.f32 %v136, 1.0
  %v140 = vmul.f32 %v137, 0.5
  %v141 = vmul.f32 %v138, 0.5
  %v142 = vmul.f32 %v139, 0.5
  %v143 = vmul.f32 %v106, %v140
  %v144 = vmul.f32 %v109, %v141
  %v145 = vmul.f32 %v114, %v142
  %v146 = vpack.c.bf16 %v144, %v143
  %v147 = vpack.c.bf16 %v145, %v145
  %v150 = vunpack.c.l.b16 %v146
  %v151 = vunpack.c.h.b16 %v146
  %v152 = vunpack.c.l.b16 %v147
  %v153 = vpack.c.b16 %v150, %v150
  %v154 = vpack.c.b16 %v151, %v151
  %v155 = vpack.c.b16 %v152, %v152
  %159 = vst [vmem:[#allocation2] sm:$0xf] %v153
  %160 = vst [vmem:[#allocation2 + $0x4] sm:$0xf] %v154
  %161 = vst [vmem:[#allocation2 + $0x8] sm:$0x3] %v155
  %v162 = vld [vmem:[#allocation2] sm:$0xf]
  %v163 = vld [vmem:[#allocation2 + $0x4] sm:$0xf]
  %v164 = vld [vmem:[#allocation2 + $0x8] sm:$0x3]
  %v165 = vld [vmem:[%s3] sm:$0xf]
  %v166 = vld [vmem:[%s3 + $0x4] sm:$0xf]
  %v167 = vld [vmem:[%s3 + $0x8] sm:$0xf]
  %v168 = vld [vmem:[%s3 + $0xc] sm:$0xf]
  %v169 = vld [vmem:[%s3 + $0x10] sm:$0xf]
  %v170 = vld [vmem:[%s3 + $0x14] sm:$0xf]
  %v171 = vld [vmem:[%s3 + $0x18] sm:$0xf]
  %v172 = vld [vmem:[%s3 + $0x1c] sm:$0xf]
  %v173 = vld [vmem:[%s3 + $0x20] sm:$0xf]
  %v174 = vld [vmem:[%s3 + $0x24] sm:$0xf]
  %v175 = vld [vmem:[%s3 + $0x28] sm:$0xf]
  %v176 = vld [vmem:[%s3 + $0x2c] sm:$0xf]
  %v177 = vld [vmem:[%s3 + $0x30] sm:$0xf]
  %v178 = vld [vmem:[%s3 + $0x34] sm:$0xf]
  %v179 = vld [vmem:[%s3 + $0x38] sm:$0xf]
  %v180 = vld [vmem:[%s3 + $0x3c] sm:$0xf]
  %v181 = vld [vmem:[%s4] sm:$0x1]
  %v183 = vlaneseq
  %v184 = vshrl.u32 %v183, 7
  %v185 = vsub.s32 0, %v184
  %v186 = vrot.slane %v181, %v185
  %v191 = vunpack.c.l.b16 %v162
  %v192 = vunpack.c.l.b16 %v163
  %v193 = vunpack.c.l.b16 %v164
  %v194 = vpack.c.b16 %v192, %v191
  %v195 = vpack.c.b16 %v193, %v193
  %v214 = vunpack.c.l.b16 %v165
  %v215 = vunpack.c.l.b16 %v166
  %v216 = vunpack.c.l.b16 %v167
  %v217 = vunpack.c.l.b16 %v168
  %v218 = vunpack.c.l.b16 %v169
  %v219 = vunpack.c.l.b16 %v170
  %v220 = vunpack.c.l.b16 %v171
  %v221 = vunpack.c.l.b16 %v172
  %v222 = vunpack.c.l.b16 %v173
  %v223 = vunpack.c.l.b16 %v174
  %v224 = vunpack.c.l.b16 %v175
  %v225 = vunpack.c.l.b16 %v176
  %v226 = vunpack.c.l.b16 %v177
  %v227 = vunpack.c.l.b16 %v178
  %v228 = vunpack.c.l.b16 %v179
  %v229 = vunpack.c.l.b16 %v180
  %v230 = vpack.c.b16 %v215, %v214
  %v231 = vpack.c.b16 %v217, %v216
  %v232 = vpack.c.b16 %v219, %v218
  %v233 = vpack.c.b16 %v221, %v220
  %v234 = vpack.c.b16 %v223, %v222
  %v235 = vpack.c.b16 %v225, %v224
  %v236 = vpack.c.b16 %v227, %v226
  %v237 = vpack.c.b16 %v229, %v228
  %246 = vmatprep.subr.bf16.mxu0 0
  %247 = vmatpush1.bf16.msra.mxu0 %v237
  %248 = vmatprep.subr.bf16.mxu0 0
  %249 = vmatpush1.bf16.msra.mxu0 %v236
  %250 = vmatprep.subr.bf16.mxu0 0
  %251 = vmatpush1.bf16.msra.mxu0 %v235
  %252 = vmatprep.subr.bf16.mxu0 0
  %253 = vmatpush1.bf16.msra.mxu0 %v234
  %254 = vmatprep.subr.bf16.mxu0 0
  %255 = vmatpush1.bf16.msra.mxu0 %v233
  %256 = vmatprep.subr.bf16.mxu0 0
  %257 = vmatpush1.bf16.msra.mxu0 %v232
  %258 = vmatprep.subr.bf16.mxu0 0
  %259 = vmatpush1.bf16.msra.mxu0 %v231
  %260 = vmatprep.subr.bf16.mxu0 0
  %261 = vmatpush1.bf16.msra.mxu0 %v230
  %262 = vmatprep.subr.bf16.mxu0 0
  %263 = vmatpush2.bf16.msra.mxu0 0
  %264 = vmatprep.subr.bf16.mxu0 0
  %265 = vmatpush2.bf16.msra.mxu0 0
  %266 = vmatprep.subr.bf16.mxu0 0
  %267 = vmatpush2.bf16.msra.mxu0 0
  %268 = vmatprep.subr.bf16.mxu0 0
  %269 = vmatpush2.bf16.msra.mxu0 0
  %270 = vmatprep.subr.bf16.mxu0 0
  %271 = vmatpush2.bf16.msra.mxu0 0
  %272 = vmatprep.subr.bf16.mxu0 0
  %273 = vmatpush2.bf16.msra.mxu0 0
  %274 = vmatprep.subr.bf16.mxu0 0
  %275 = vmatpush2.bf16.msra.mxu0 0
  %276 = vmatprep.subr.bf16.mxu0 0
  %277 = vmatpush2.bf16.msra.mxu0 0
  %278 = vmatprep.mubr.bf16.mxu0 0
  %279 = vmatmul.mubr.bf16.gmra.mxu0 %v194
  %v280 = vpop.f32.mrf.mxu0
  %v281 = vadd.f32 %v186, %v280
  %v282 = vpop.f32.mrf.mxu0
  %v283 = vpop.f32.mrf.mxu0
  %v284 = vadd.f32 %v186, %v283
  %v285 = vpop.f32.mrf.mxu0
  %286 = vmatprep.mubr.bf16.mxu0 0
  %287 = vmatmul.mubr.bf16.gmra.mxu0 %v195
  %v288 = vpop.f32.mrf.mxu0
  %v289 = vadd.f32 %v186, %v288
  %v290 = vpop.f32.mrf.mxu0
  %v291 = vpop.f32.mrf.mxu0
  %v292 = vpop.f32.mrf.mxu0
  %293 = vdwg.mxu0
  %v294 = vunpack.c.l.bf16 %v30
  %v295 = vunpack.c.l.bf16 %v31
  %v296 = vunpack.c.l.bf16 %v32
  %v297 = vadd.f32 %v281, %v294
  %v298 = vadd.f32 %v284, %v295
  %v299 = vadd.f32 %v289, %v296
  %v300 = vld [vmem:[%s5] sm:$0x1]
  %v301 = vld [vmem:[%s6] sm:$0x1]
  %v302 = vsel %vm64, %v297, 0.0
  %303 = vadd.xlane.f32.xlu0 %v302
  %v304 = vpop.xlane.xlu0 %303
  %v305 = vsel %vm64, %v298, 0.0
  %306 = vadd.xlane.f32.xlu0 %v305
  %v307 = vpop.xlane.xlu0 %306
  %vm308 = vcmask 257024
  %v309 = vsel %vm308, %v299, 0.0
  %310 = vadd.xlane.f32.xlu0 %v309
  %v311 = vpop.xlane.xlu0 %310
  %v312 = vrcp.pop 32.0
  %v313 = vmul.f32 %v304, %v312
  %v314 = vmul.f32 %v307, %v312
  %v315 = vmul.f32 %v311, %v312
  %v316 = vsub.f32 %v297, %v313
  %v317 = vsub.f32 %v298, %v314
  %v318 = vsub.f32 %v299, %v315
  %v319 = vmul.f32 %v316, %v316
  %v320 = vmul.f32 %v317, %v317
  %v321 = vmul.f32 %v318, %v318
  %v322 = vsel %vm64, %v319, 0.0
  %323 = vadd.xlane.f32.xlu0 %v322
  %v324 = vpop.xlane.xlu0 %323
  %v325 = vsel %vm64, %v320, 0.0
  %326 = vadd.xlane.f32.xlu0 %v325
  %v327 = vpop.xlane.xlu0 %326
  %v328 = vsel %vm308, %v321, 0.0
  %329 = vadd.xlane.f32.xlu0 %v328
  %v330 = vpop.xlane.xlu0 %329
  %v331 = vmul.f32 %v324, %v312
  %v332 = vmul.f32 %v327, %v312
  %v333 = vmul.f32 %v330, %v312
  %v334 = vadd.f32 %v331, 1e-12
  %v335 = vadd.f32 %v332, 1e-12
  %v336 = vadd.f32 %v333, 1e-12
  %v337 = vrsqrt.pop %v334
  %v338 = vrsqrt.pop %v335
  %v339 = vrsqrt.pop %v336
  %v340 = vmul.f32 %v316, %v337
  %v341 = vmul.f32 %v317, %v338
  %v342 = vmul.f32 %v318, %v339
  %v344 = vlaneseq
  %v345 = vshrl.u32 %v344, 7
  %v346 = vsub.s32 0, %v345
  %v347 = vrot.slane %v300, %v346
  %v349 = vmul.f32 %v340, %v347
  %v350 = vmul.f32 %v341, %v347
  %v351 = vmul.f32 %v342, %v347
  %v353 = vlaneseq
  %v354 = vshrl.u32 %v353, 7
  %v355 = vsub.s32 0, %v354
  %v356 = vrot.slane %v301, %v355
  %v358 = vadd.f32 %v349, %v356
  %v359 = vadd.f32 %v350, %v356
  %v360 = vadd.f32 %v351, %v356
  %v361 = vld [vmem:[%s7] sm:$0xff]
  %v362 = vld [vmem:[%s7 + $0x8] sm:$0xff]
  %v363 = vld [vmem:[%s7 + $0x10] sm:$0xf]
  %v364 = vadd.f32 %v361, %v358
  %v365 = vadd.f32 %v362, %v359
  %v366 = vadd.f32 %v363, %v360
  %367 = vst.msk [vmem:[%s8] sm:$0xff] %vm64, %v364
  %368 = vst.msk [vmem:[%s8 + $0x8] sm:$0xff] %vm64, %v365
  %369 = vst.msk [vmem:[%s8 + $0x10] sm:$0xf] %vm308, %v366
  // Predicated region
  $region34: #{bert_embedder_forward.50} parent=0 // pred_check
    _
  $region35: #{bert_embedder_forward.50} parent=0 // pred_check_branch
    %371 = sbr.rel (0) target = $region37
  $region36: #{bert_embedder_forward.50} parent=0 // pred_region
    _
  $region37: #{bert_embedder_forward.50} parent=0 // pred_fallthru
    _
  // Predicated region
  $region38: #{bert_embedder_forward.50} parent=0 // pred_check
    _
  $region39: #{bert_embedder_forward.50} parent=0 // pred_check_branch
    %373 = sbr.rel (0) target = $region41
  $region40: #{bert_embedder_forward.50} parent=0 // pred_region
    _
  $region41: #{bert_embedder_forward.50} parent=0 // pred_fallthru
    _

// kernel: bert_embedder_forward.27
$region0: #{bert_embedder_forward.27}
  #allocation0 [shape = 'u32[]', space=smem, size = 0x4, offset = 0x4, fixed_abs, tag = 'smem constant byte address 0x4 - core index']
  #allocation1 [shape = 'u32[144,128]{1,0:T(1,128)}', space=vmem, size = 0x12000, scoped, tag = 'internal scratch']
  #allocation2 [shape = 'bf16[10,32]{1,0:T(8,128)(2,1)}', space=vmem, size = 0x1000, scoped, tag = 'scratch operand']
  %s0 = inlined_call_operand.vmem [shape: bf16[2,10,32], index: 0, kind: input, shape index: {}]
  %s1 = inlined_call_operand.vmem [shape: bf16[32,96], index: 1, kind: input, shape index: {}]
  %s2 = inlined_call_operand.vmem [shape: f32[1,96], index: 2, kind: input, shape index: {}]
  %s3 = inlined_call_operand.vmem [shape: bf16[32,32], index: 3, kind: input, shape index: {}]
  %s4 = inlined_call_operand.vmem [shape: f32[1,32], index: 4, kind: input, shape index: {}]
  %s5 = inlined_call_operand.vmem [shape: f32[1,32], index: 5, kind: input, shape index: {}]
  %s6 = inlined_call_operand.vmem [shape: f32[1,32], index: 6, kind: input, shape index: {}]
  %s7 = inlined_call_operand.vmem [shape: bf16[2,10,32], index: 7, kind: output, shape index: {}]
  %s8 = sld [smem:[#allocation0]]
  $region61: #{bert_embedder_forward.27} parent=0
    _
  %s10 = ssub.s32 1, %s8
  %s11 = scalar_select 0, %s10, %s8
  loop: start=0, step=1, limit=4
  $region2: #{bert_embedder_forward.27} parent=0 // loop_pre_header
    _
  $region3: #{bert_embedder_forward.27} parent=0 // loop_header
    %s13 = sphi 0, %s17
    %p14 = scmp.ge.s32.totalorder %s13, 4
    %s23 = sphi 0, %s25
    %s26 = sphi 0, %s23
    %s27 = sphi 0, %s26
    %s43 = sphi 0, %s27
    %s47 = sphi 0, %s47
    %s49 = sphi 0, %s47
    %s50 = sphi 0, %s49
    %s64 = sphi 0, %s50
    %s68 = sphi 0, %s68
    %s70 = sphi 0, %s68
    %s71 = sphi 0, %s70
    %s85 = sphi 0, %s71
    %s89 = sphi 0, %s89
    %s91 = sphi 0, %s89
    %s92 = sphi 0, %s91
    %s106 = sphi 0, %s92
    %s110 = sphi 0, %s110
    %s112 = sphi 0, %s110
    %s113 = sphi 0, %s112
    %s127 = sphi 0, %s113
    %s131 = sphi 0, %s131
    %s133 = sphi 0, %s131
    %s134 = sphi 0, %s133
    %s148 = sphi 0, %s134
    %s152 = sphi 0, %s152
    %s154 = sphi 0, %s152
    %s155 = sphi 0, %s154
    %s169 = sphi 0, %s155
    %s175 = sphi 0, %s177
    %s178 = sphi 0, %s175
    %s179 = sphi 0, %s178
    %s195 = sphi 0, %s179
  $region4: #{bert_embedder_forward.27} parent=0 // loop_header_branch
    %16 = sbr.rel (%p14) target = $region8
  $region5: #{bert_embedder_forward.27} parent=0 // loop_body
    %s18 = ssub.s32 %s13, 1
    %s19 = ssub.s32 %s13, 2
    %s20 = sadd.s32 %s13, 1
    %s21 = ssub.s32 %s13, %s20
    %p22 = scmp.eq.s32.totalorder %s21, 0
    %s24 = sadd.s32 %s23, 1
    %s25 = scalar_select %p22, %s23, %s24
    %p28 = pneg %p22
    %p29 = scmp.eq.s32.totalorder %s13, 1
    %p30 = por %p28, %p29
    %p31 = scmp.ne.s32.totalorder %s23, %s26
    %p32 = scmp.eq.s32.totalorder %s13, 0
    %p33 = por %p31, %p32
    %p34 = scmp.ne.s32.totalorder %s23, %s26
    %p35 = scmp.eq.s32.totalorder %s18, 1
    %p36 = por %p34, %p35
    %p37 = scmp.ne.s32.totalorder %s26, %s27
    %p38 = scmp.eq.s32.totalorder %s18, 0
    %p39 = por %p37, %p38
    %p40 = scmp.ne.s32.totalorder %s26, %s27
    %p41 = scmp.eq.s32.totalorder %s19, 1
    %p42 = por %p40, %p41
    %p44 = scmp.ne.s32.totalorder %s27, %s43
    %p45 = scmp.eq.s32.totalorder %s19, 0
    %p46 = por %p44, %p45
    %s48 = sadd.s32 %s47, 1
    %p51 = scmp.eq.s32.totalorder %s13, 1
    %p52 = scmp.ne.s32.totalorder %s47, %s49
    %p53 = scmp.eq.s32.totalorder %s13, 0
    %p54 = por %p52, %p53
    %p55 = scmp.ne.s32.totalorder %s47, %s49
    %p56 = scmp.eq.s32.totalorder %s18, 1
    %p57 = por %p55, %p56
    %p58 = scmp.ne.s32.totalorder %s49, %s50
    %p59 = scmp.eq.s32.totalorder %s18, 0
    %p60 = por %p58, %p59
    %p61 = scmp.ne.s32.totalorder %s49, %s50
    %p62 = scmp.eq.s32.totalorder %s19, 1
    %p63 = por %p61, %p62
    %p65 = scmp.ne.s32.totalorder %s50, %s64
    %p66 = scmp.eq.s32.totalorder %s19, 0
    %p67 = por %p65, %p66
    %s69 = sadd.s32 %s68, 1
    %p72 = scmp.eq.s32.totalorder %s13, 1
    %p73 = scmp.ne.s32.totalorder %s68, %s70
    %p74 = scmp.eq.s32.totalorder %s13, 0
    %p75 = por %p73, %p74
    %p76 = scmp.ne.s32.totalorder %s68, %s70
    %p77 = scmp.eq.s32.totalorder %s18, 1
    %p78 = por %p76, %p77
    %p79 = scmp.ne.s32.totalorder %s70, %s71
    %p80 = scmp.eq.s32.totalorder %s18, 0
    %p81 = por %p79, %p80
    %p82 = scmp.ne.s32.totalorder %s70, %s71
    %p83 = scmp.eq.s32.totalorder %s19, 1
    %p84 = por %p82, %p83
    %p86 = scmp.ne.s32.totalorder %s71, %s85
    %p87 = scmp.eq.s32.totalorder %s19, 0
    %p88 = por %p86, %p87
    %s90 = sadd.s32 %s89, 1
    %p93 = scmp.eq.s32.totalorder %s13, 1
    %p94 = scmp.ne.s32.totalorder %s89, %s91
    %p95 = scmp.eq.s32.totalorder %s13, 0
    %p96 = por %p94, %p95
    %p97 = scmp.ne.s32.totalorder %s89, %s91
    %p98 = scmp.eq.s32.totalorder %s18, 1
    %p99 = por %p97, %p98
    %p100 = scmp.ne.s32.totalorder %s91, %s92
    %p101 = scmp.eq.s32.totalorder %s18, 0
    %p102 = por %p100, %p101
    %p103 = scmp.ne.s32.totalorder %s91, %s92
    %p104 = scmp.eq.s32.totalorder %s19, 1
    %p105 = por %p103, %p104
    %p107 = scmp.ne.s32.totalorder %s92, %s106
    %p108 = scmp.eq.s32.totalorder %s19, 0
    %p109 = por %p107, %p108
    %s111 = sadd.s32 %s110, 1
    %p114 = scmp.eq.s32.totalorder %s13, 1
    %p115 = scmp.ne.s32.totalorder %s110, %s112
    %p116 = scmp.eq.s32.totalorder %s13, 0
    %p117 = por %p115, %p116
    %p118 = scmp.ne.s32.totalorder %s110, %s112
    %p119 = scmp.eq.s32.totalorder %s18, 1
    %p120 = por %p118, %p119
    %p121 = scmp.ne.s32.totalorder %s112, %s113
    %p122 = scmp.eq.s32.totalorder %s18, 0
    %p123 = por %p121, %p122
    %p124 = scmp.ne.s32.totalorder %s112, %s113
    %p125 = scmp.eq.s32.totalorder %s19, 1
    %p126 = por %p124, %p125
    %p128 = scmp.ne.s32.totalorder %s113, %s127
    %p129 = scmp.eq.s32.totalorder %s19, 0
    %p130 = por %p128, %p129
    %s132 = sadd.s32 %s131, 1
    %p135 = scmp.eq.s32.totalorder %s13, 1
    %p136 = scmp.ne.s32.totalorder %s131, %s133
    %p137 = scmp.eq.s32.totalorder %s13, 0
    %p138 = por %p136, %p137
    %p139 = scmp.ne.s32.totalorder %s131, %s133
    %p140 = scmp.eq.s32.totalorder %s18, 1
    %p141 = por %p139, %p140
    %p142 = scmp.ne.s32.totalorder %s133, %s134
    %p143 = scmp.eq.s32.totalorder %s18, 0
    %p144 = por %p142, %p143
    %p145 = scmp.ne.s32.totalorder %s133, %s134
    %p146 = scmp.eq.s32.totalorder %s19, 1
    %p147 = por %p145, %p146
    %p149 = scmp.ne.s32.totalorder %s134, %s148
    %p150 = scmp.eq.s32.totalorder %s19, 0
    %p151 = por %p149, %p150
    %s153 = sadd.s32 %s152, 1
    %p156 = scmp.eq.s32.totalorder %s13, 1
    %p157 = scmp.ne.s32.totalorder %s152, %s154
    %p158 = scmp.eq.s32.totalorder %s13, 0
    %p159 = por %p157, %p158
    %p160 = scmp.ne.s32.totalorder %s152, %s154
    %p161 = scmp.eq.s32.totalorder %s18, 1
    %p162 = por %p160, %p161
    %p163 = scmp.ne.s32.totalorder %s154, %s155
    %p164 = scmp.eq.s32.totalorder %s18, 0
    %p165 = por %p163, %p164
    %p166 = scmp.ne.s32.totalorder %s154, %s155
    %p167 = scmp.eq.s32.totalorder %s19, 1
    %p168 = por %p166, %p167
    %p170 = scmp.ne.s32.totalorder %s155, %s169
    %p171 = scmp.eq.s32.totalorder %s19, 0
    %p172 = por %p170, %p171
    %s173 = ssub.s32 %s13, %s20
    %p174 = scmp.eq.s32.totalorder %s173, 0
    %s176 = sadd.s32 %s175, 1
    %s177 = scalar_select %p174, %s175, %s176
    %p180 = pneg %p174
    %p181 = scmp.eq.s32.totalorder %s13, 1
    %p182 = por %p180, %p181
    %p183 = scmp.ne.s32.totalorder %s175, %s178
    %p184 = scmp.eq.s32.totalorder %s13, 0
    %p185 = por %p183, %p184
    %p186 = scmp.ne.s32.totalorder %s175, %s178
    %p187 = scmp.eq.s32.totalorder %s18, 1
    %p188 = por %p186, %p187
    %p189 = scmp.ne.s32.totalorder %s178, %s179
    %p190 = scmp.eq.s32.totalorder %s18, 0
    %p191 = por %p189, %p190
    %p192 = scmp.ne.s32.totalorder %s178, %s179
    %p193 = scmp.eq.s32.totalorder %s19, 1
    %p194 = por %p192, %p193
    %p196 = scmp.ne.s32.totalorder %s179, %s195
    %p197 = scmp.eq.s32.totalorder %s19, 0
    %p198 = por %p196, %p197
    %p199 = scmp.le.s32.totalorder 1, %s13
    %p200 = scmp.lt.s32.totalorder %s13, 3
    %p201 = pnand %p199, %p200
    %p202 = pneg %p201
    // Predicated region
    $region9: #{bert_embedder_forward.27} parent=5 // pred_check
      _
    $region10: #{bert_embedder_forward.27} parent=5 // pred_check_branch
      %204 = sbr.rel (%p201) target = $region12
    $region11: #{bert_embedder_forward.27} parent=5 // pred_region
      %s205 = ssub.s32 %s13, 1
      // Predicated region
      $region13: #{bert_embedder_forward.27} parent=11 // pred_check
        %p206 = pneg %p60
      $region14: #{bert_embedder_forward.27} parent=11 // pred_check_branch
        %208 = sbr.rel (%p206) target = $region16
      $region15: #{bert_embedder_forward.27} parent=11 // pred_region
        _
      $region16: #{bert_embedder_forward.27} parent=11 // pred_fallthru
        _
      // Predicated region
      $region17: #{bert_embedder_forward.27} parent=11 // pred_check
        %p209 = pneg %p81
      $region18: #{bert_embedder_forward.27} parent=11 // pred_check_branch
        %211 = sbr.rel (%p209) target = $region20
      $region19: #{bert_embedder_forward.27} parent=11 // pred_region
        _
      $region20: #{bert_embedder_forward.27} parent=11 // pred_fallthru
        _
      // Predicated region
      $region21: #{bert_embedder_forward.27} parent=11 // pred_check
        %p212 = pneg %p102
      $region22: #{bert_embedder_forward.27} parent=11 // pred_check_branch
        %214 = sbr.rel (%p212) target = $region24
      $region23: #{bert_embedder_forward.27} parent=11 // pred_region
        _
      $region24: #{bert_embedder_forward.27} parent=11 // pred_fallthru
        _
      // Predicated region
      $region25: #{bert_embedder_forward.27} parent=11 // pred_check
        %p215 = pneg %p123
      $region26: #{bert_embedder_forward.27} parent=11 // pred_check_branch
        %217 = sbr.rel (%p215) target = $region28
      $region27: #{bert_embedder_forward.27} parent=11 // pred_region
        _
      $region28: #{bert_embedder_forward.27} parent=11 // pred_fallthru
        _
      // Predicated region
      $region29: #{bert_embedder_forward.27} parent=11 // pred_check
        %p218 = pneg %p144
      $region30: #{bert_embedder_forward.27} parent=11 // pred_check_branch
        %220 = sbr.rel (%p218) target = $region32
      $region31: #{bert_embedder_forward.27} parent=11 // pred_region
        _
      $region32: #{bert_embedder_forward.27} parent=11 // pred_fallthru
        _
      // Predicated region
      $region33: #{bert_embedder_forward.27} parent=11 // pred_check
        %p221 = pneg %p165
      $region34: #{bert_embedder_forward.27} parent=11 // pred_check_branch
        %223 = sbr.rel (%p221) target = $region36
      $region35: #{bert_embedder_forward.27} parent=11 // pred_region
        _
      $region36: #{bert_embedder_forward.27} parent=11 // pred_fallthru
        _
    $region12: #{bert_embedder_forward.27} parent=5 // pred_fallthru
      _
    %p224 = scmp.lt.s32.totalorder %s13, 2
    // Predicated region
    $region37: #{bert_embedder_forward.27} parent=5 // pred_check
      %p225 = pneg %p224
    $region38: #{bert_embedder_forward.27} parent=5 // pred_check_branch
      %227 = sbr.rel (%p225) target = $region40
    $region39: #{bert_embedder_forward.27} parent=5 // pred_region
      // Predicated region
      $region41: #{bert_embedder_forward.27} parent=39 // pred_check
        %p228 = pneg %p33
      $region42: #{bert_embedder_forward.27} parent=39 // pred_check_branch
        %230 = sbr.rel (%p228) target = $region44
      $region43: #{bert_embedder_forward.27} parent=39 // pred_region
        %p231 = scmp.lt.s32.totalorder %s13, 1
        %s232 = scalar_select %p231, %s13, 1
        %s233 = smul.addr %s232, 2
        %s234 = smul.addr %s233, 4
        %s235 = scalar_lea.vmem %s0, %s234
      $region44: #{bert_embedder_forward.27} parent=39 // pred_fallthru
        _
    $region40: #{bert_embedder_forward.27} parent=5 // pred_fallthru
      _
    %p236 = scmp.le.s32.totalorder 1, %s13
    %p237 = scmp.lt.s32.totalorder %s13, 3
    %p238 = pnand %p236, %p237
    %p239 = pneg %p238
    // Predicated region
    $region45: #{bert_embedder_forward.27} parent=5 // pred_check
      _
    $region46: #{bert_embedder_forward.27} parent=5 // pred_check_branch
      %241 = sbr.rel (%p238) target = $region48
    $region47: #{bert_embedder_forward.27} parent=5 // pred_region
      %s242 = ssub.s32 %s13, 1
      %p243 = scmp.lt.s32.totalorder %s18, 1
      %s244 = scalar_select %p243, %s18, 1
      %s245 = smul.addr %s244, 2
      %s246 = smul.addr %s245, 4
      %s247 = scalar_lea.vmem %s0, %s246
      %p248 = pneg %p39
      %p249 = pneg %p36
      %p250 = pneg %p60
      %p251 = pneg %p57
      %p252 = pneg %p81
      %p253 = pneg %p78
      %p254 = pneg %p102
      %p255 = pneg %p99
      %p256 = pneg %p123
      %p257 = pneg %p120
      %p258 = pneg %p144
      %p259 = pneg %p141
      %p260 = pneg %p165
      %p261 = pneg %p162
      %p262 = pneg %p191
      %p263 = pneg %p188
      %p264 = scmp.lt.s32.totalorder %s18, 1
      %s265 = scalar_select %p264, %s18, 1
      %s266 = smul.addr %s265, 2
      %s267 = smul.addr %s266, 4
      %s268 = scalar_lea.vmem %s7, %s267
      %p269 = scmp.lt.s32.totalorder %s18, 1
      %s270 = scalar_select %p269, %s18, 1
      %s271 = smul.addr %s270, 2
      %s272 = smul.addr %s271, 4
      %s273 = scalar_lea.vmem %s0, %s272
      %p274 = scmp.lt.s32.totalorder %s18, 1
      %s275 = scalar_select %p274, %s18, 1
      %s276 = smul.addr %s275, 2
      %s277 = smul.addr %s276, 4
      %s278 = scalar_lea.vmem %s7, %s277
      %v280 = vld [vmem:[%s273] sm:$0xf]
      %v281 = vld [vmem:[%s273 + $0x4] sm:$0x1]
      %v282 = vld [vmem:[%s1] sm:$0xf]
      %v283 = vld [vmem:[%s1 + $0x4] sm:$0xf]
      %v284 = vld [vmem:[%s1 + $0x8] sm:$0xf]
      %v285 = vld [vmem:[%s1 + $0xc] sm:$0xf]
      %v286 = vld [vmem:[%s2] sm:$0x1]
      %v288 = vlaneseq
      %v289 = vshrl.u32 %v288, 7
      %v290 = vsub.s32 0, %v289
      %v291 = vrot.slane %v286, %v290
      %v295 = vunpack.c.l.b16 %v280
      %v296 = vunpack.c.l.b16 %v281
      %v297 = vpack.c.b16 %v296, %v295
      %v302 = vunpack.c.l.b16 %v282
      %v303 = vunpack.c.l.b16 %v283
      %v304 = vunpack.c.l.b16 %v284
      %v305 = vunpack.c.l.b16 %v285
      %v306 = vpack.c.b16 %v303, %v302
      %v307 = vpack.c.b16 %v305, %v304
      %vm310 = vcmask 261120
      %v312 = vsel %vm310, %v297, 0
      %314 = vmatprep.subr.bf16.mxu0 0
      %315 = vmatpush1.bf16.msra.mxu0 0
      %316 = vmatprep.subr.bf16.mxu0 0
      %317 = vmatpush1.bf16.msra.mxu0 0
      %318 = vmatprep.subr.bf16.mxu0 0
      %319 = vmatpush1.bf16.msra.mxu0 0
      %320 = vmatprep.subr.bf16.mxu0 0
      %321 = vmatpush1.bf16.msra.mxu0 0
      %322 = vmatprep.subr.bf16.mxu0 0
      %323 = vmatpush1.bf16.msra.mxu0 0
      %324 = vmatprep.subr.bf16.mxu0 0
      %325 = vmatpush1.bf16.msra.mxu0 0
      %326 = vmatprep.subr.bf16.mxu0 0
      %327 = vmatpush1.bf16.msra.mxu0 %v307
      %328 = vmatprep.subr.bf16.mxu0 0
      %329 = vmatpush1.bf16.msra.mxu0 %v306
      %330 = vmatprep.subr.bf16.mxu0 0
      %331 = vmatpush2.bf16.msra.mxu0 0
      %332 = vmatprep.subr.bf16.mxu0 0
      %333 = vmatpush2.bf16.msra.mxu0 0
      %334 = vmatprep.subr.bf16.mxu0 0
      %335 = vmatpush2.bf16.msra.mxu0 0
      %336 = vmatprep.subr.bf16.mxu0 0
      %337 = vmatpush2.bf16.msra.mxu0 0
      %338 = vmatprep.subr.bf16.mxu0 0
      %339 = vmatpush2.bf16.msra.mxu0 0
      %340 = vmatprep.subr.bf16.mxu0 0
      %341 = vmatpush2.bf16.msra.mxu0 0
      %342 = vmatprep.subr.bf16.mxu0 0
      %343 = vmatpush2.bf16.msra.mxu0 0
      %344 = vmatprep.subr.bf16.mxu0 0
      %345 = vmatpush2.bf16.msra.mxu0 0
      %346 = vmatprep.mubr.bf16.mxu0 0
      %347 = vmatmul.mubr.bf16.gmra.mxu0 %v312
      %v348 = vpop.f32.mrf.mxu0
      %v349 = vadd.f32 %v291, %v348
      %v350 = vpop.f32.mrf.mxu0
      %v351 = vpop.f32.mrf.mxu0
      %v352 = vadd.f32 %v291, %v351
      %v353 = vpop.f32.mrf.mxu0
      %354 = vdwg.mxu0
      %v355 = vmul.f32 %v349, 0.35355338
      %v356 = vmul.f32 %v352, 0.35355338
      %357 = vrot.lane.b32.xlu0 %v306, 96
      %v358 = vpop.permute.xlu0 %357
      %359 = vrot.lane.b32.xlu0 %v307, 96
      %v360 = vpop.permute.xlu0 %359
      %363 = vrot.lane.b32.xlu0 %v291, 96
      %v364 = vpop.permute.xlu0 %363
      %366 = vmatprep.subr.bf16.mxu0 0
      %367 = vmatpush1.bf16.msra.mxu0 0
      %368 = vmatprep.subr.bf16.mxu0 0
      %369 = vmatpush1.bf16.msra.mxu0 0
      %370 = vmatprep.subr.bf16.mxu0 0
      %371 = vmatpush1.bf16.msra.mxu0 0
      %372 = vmatprep.subr.bf16.mxu0 0
      %373 = vmatpush1.bf16.msra.mxu0 0
      %374 = vmatprep.subr.bf16.mxu0 0
      %375 = vmatpush1.bf16.msra.mxu0 0
      %376 = vmatprep.subr.bf16.mxu0 0
      %377 = vmatpush1.bf16.msra.mxu0 0
      %378 = vmatprep.subr.bf16.mxu0 0
      %379 = vmatpush1.bf16.msra.mxu0 %v360
      %380 = vmatprep.subr.bf16.mxu0 0
      %381 = vmatpush1.bf16.msra.mxu0 %v358
      %382 = vmatprep.subr.bf16.mxu0 0
      %383 = vmatpush2.bf16.msra.mxu0 0
      %384 = vmatprep.subr.bf16.mxu0 0
      %385 = vmatpush2.bf16.msra.mxu0 0
      %386 = vmatprep.subr.bf16.mxu0 0
      %387 = vmatpush2.bf16.msra.mxu0 0
      %388 = vmatprep.subr.bf16.mxu0 0
      %389 = vmatpush2.bf16.msra.mxu0 0
      %390 = vmatprep.subr.bf16.mxu0 0
      %391 = vmatpush2.bf16.msra.mxu0 0
      %392 = vmatprep.subr.bf16.mxu0 0
      %393 = vmatpush2.bf16.msra.mxu0 0
      %394 = vmatprep.subr.bf16.mxu0 0
      %395 = vmatpush2.bf16.msra.mxu0 0
      %396 = vmatprep.subr.bf16.mxu0 0
      %397 = vmatpush2.bf16.msra.mxu0 0
      %398 = vmatprep.mubr.bf16.mxu0 0
      %399 = vmatmul.mubr.bf16.gmra.mxu0 %v312
      %v400 = vpop.f32.mrf.mxu0
      %v401 = vadd.f32 %v364, %v400
      %v402 = vpop.f32.mrf.mxu0
      %v403 = vpop.f32.mrf.mxu0
      %v404 = vadd.f32 %v364, %v403
      %v405 = vpop.f32.mrf.mxu0
      %406 = vdwg.mxu0
      %407 = vrot.lane.b32.xlu0 %v306, 64
      %v408 = vpop.permute.xlu0 %407
      %409 = vrot.lane.b32.xlu0 %v307, 64
      %v410 = vpop.permute.xlu0 %409
      %413 = vrot.lane.b32.xlu0 %v291, 64
      %v414 = vpop.permute.xlu0 %413
      %416 = vmatprep.subr.bf16.mxu0 0
      %417 = vmatpush1.bf16.msra.mxu0 0
      %418 = vmatprep.subr.bf16.mxu0 0
      %419 = vmatpush1.bf16.msra.mxu0 0
      %420 = vmatprep.subr.bf16.mxu0 0
      %421 = vmatpush1.bf16.msra.mxu0 0
      %422 = vmatprep.subr.bf16.mxu0 0
      %423 = vmatpush1.bf16.msra.mxu0 0
      %424 = vmatprep.subr.bf16.mxu0 0
      %425 = vmatpush1.bf16.msra.mxu0 0
      %426 = vmatprep.subr.bf16.mxu0 0
      %427 = vmatpush1.bf16.msra.mxu0 0
      %428 = vmatprep.subr.bf16.mxu0 0
      %429 = vmatpush1.bf16.msra.mxu0 %v410
      %430 = vmatprep.subr.bf16.mxu0 0
      %431 = vmatpush1.bf16.msra.mxu0 %v408
      %432 = vmatprep.subr.bf16.mxu0 0
      %433 = vmatpush2.bf16.msra.mxu0 0
      %434 = vmatprep.subr.bf16.mxu0 0
      %435 = vmatpush2.bf16.msra.mxu0 0
      %436 = vmatprep.subr.bf16.mxu0 0
      %437 = vmatpush2.bf16.msra.mxu0 0
      %438 = vmatprep.subr.bf16.mxu0 0
      %439 = vmatpush2.bf16.msra.mxu0 0
      %440 = vmatprep.subr.bf16.mxu0 0
      %441 = vmatpush2.bf16.msra.mxu0 0
      %442 = vmatprep.subr.bf16.mxu0 0
      %443 = vmatpush2.bf16.msra.mxu0 0
      %444 = vmatprep.subr.bf16.mxu0 0
      %445 = vmatpush2.bf16.msra.mxu0 0
      %446 = vmatprep.subr.bf16.mxu0 0
      %447 = vmatpush2.bf16.msra.mxu0 0
      %448 = vmatprep.mubr.bf16.mxu0 0
      %449 = vmatmul.mubr.bf16.gmra.mxu0 %v312
      %v450 = vpop.f32.mrf.mxu0
      %v451 = vadd.f32 %v414, %v450
      %v452 = vpop.f32.mrf.mxu0
      %v453 = vpop.f32.mrf.mxu0
      %v454 = vadd.f32 %v414, %v453
      %v455 = vpop.f32.mrf.mxu0
      %456 = vdwg.mxu0
      %v457 = vpack.c.bf16 %v356, %v355
      %v458 = vpack.c.bf16 %v404, %v401
      %vm459 = vcmask 64512
      %v461 = vsel %vm459, %v457, 0
      %v464 = vsel %vm459, %v458, 0
      %466 = vmatprep.subr.bf16.mxu0 0
      %467 = vmatpush1.bf16.xpose.msra.mxu0 0
      %468 = vmatprep.subr.bf16.mxu0 0
      %469 = vmatpush1.bf16.xpose.msra.mxu0 0
      %470 = vmatprep.subr.bf16.mxu0 0
      %471 = vmatpush1.bf16.xpose.msra.mxu0 0
      %472 = vmatprep.subr.bf16.mxu0 0
      %473 = vmatpush1.bf16.xpose.msra.mxu0 0
      %474 = vmatprep.subr.bf16.mxu0 0
      %475 = vmatpush1.bf16.xpose.msra.mxu0 0
      %476 = vmatprep.subr.bf16.mxu0 0
      %477 = vmatpush1.bf16.xpose.msra.mxu0 0
      %478 = vmatprep.subr.bf16.mxu0 0
      %479 = vmatpush1.bf16.xpose.msra.mxu0 0
      %480 = vmatprep.subr.bf16.mxu0 0
      %481 = vmatpush1.bf16.xpose.msra.mxu0 %v464
      %482 = vmatprep.subr.bf16.mxu0 0
      %483 = vmatpush2.bf16.xpose.msra.mxu0 0
      %484 = vmatprep.subr.bf16.mxu0 0
      %485 = vmatpush2.bf16.xpose.msra.mxu0 0
      %486 = vmatprep.subr.bf16.mxu0 0
      %487 = vmatpush2.bf16.xpose.msra.mxu0 0
      %488 = vmatprep.subr.bf16.mxu0 0
      %489 = vmatpush2.bf16.xpose.msra.mxu0 0
      %490 = vmatprep.subr.bf16.mxu0 0
      %491 = vmatpush2.bf16.xpose.msra.mxu0 0
      %492 = vmatprep.subr.bf16.mxu0 0
      %493 = vmatpush2.bf16.xpose.msra.mxu0 0
      %494 = vmatprep.subr.bf16.mxu0 0
      %495 = vmatpush2.bf16.xpose.msra.mxu0 0
      %496 = vmatprep.subr.bf16.mxu0 0
      %497 = vmatpush2.bf16.xpose.msra.mxu0 0
      %498 = vmatprep.mubr.bf16.mxu0 0
      %499 = vmatmul.mubr.bf16.gmra.mxu0 %v461
      %v500 = vpop.f32.mrf.mxu0
      %v501 = vadd.f32 0.0, %v500
      %v502 = vpop.f32.mrf.mxu0
      %v503 = vpop.f32.mrf.mxu0
      %v504 = vadd.f32 0.0, %v503
      %v505 = vpop.f32.mrf.mxu0
      %506 = vdwg.mxu0
      %vm507 = vcmask 80896
      %v508 = vsel %vm507, %v501, -inf
      %509 = vmax.xlane.f32.xlu0 %v508
      %v510 = vpop.xlane.xlu0 %509
      %vm511 = vcmask 74752
      %v512 = vsel %vm511, %v504, -inf
      %513 = vmax.xlane.f32.xlu0 %v512
      %v514 = vpop.xlane.xlu0 %513
      %v515 = vsub.f32 %v501, %v510
      %v516 = vsub.f32 %v504, %v514
      %v517 = vmul.f32 %v515, 1.442695
      %v518 = vpow.pop %v517
      %v519 = vmul.f32 %v516, 1.442695
      %v520 = vpow.pop %v519
      %v521 = vsel %vm507, %v518, 0.0
      %522 = vadd.xlane.f32.xlu0 %v521
      %v523 = vpop.xlane.xlu0 %522
      %v524 = vsel %vm511, %v520, 0.0
      %525 = vadd.xlane.f32.xlu0 %v524
      %v526 = vpop.xlane.xlu0 %525
      %v527 = vrcp.pop %v523
      %v528 = vrcp.pop %v526
      %v529 = vmul.f32 %v518, %v527
      %v530 = vmul.f32 %v520, %v528
      %v531 = vpack.c.bf16 %v530, %v529
      %v532 = vpack.c.bf16 %v454, %v451
      %v534 = vsel %vm507, %v531, 0
      %vm536 = vcmask 1044480
      %v538 = vsel %vm536, %v532, 0
      %540 = vmatprep.subr.bf16.mxu0 0
      %541 = vmatpush1.bf16.msra.mxu0 0
      %542 = vmatprep.subr.bf16.mxu0 0
      %543 = vmatpush1.bf16.msra.mxu0 0
      %544 = vmatprep.subr.bf16.mxu0 0
      %545 = vmatpush1.bf16.msra.mxu0 0
      %546 = vmatprep.subr.bf16.mxu0 0
      %547 = vmatpush1.bf16.msra.mxu0 0
      %548 = vmatprep.subr.bf16.mxu0 0
      %549 = vmatpush1.bf16.msra.mxu0 0
      %550 = vmatprep.subr.bf16.mxu0 0
      %551 = vmatpush1.bf16.msra.mxu0 0
      %552 = vmatprep.subr.bf16.mxu0 0
      %553 = vmatpush1.bf16.msra.mxu0 0
      %554 = vmatprep.subr.bf16.mxu0 0
      %555 = vmatpush1.bf16.msra.mxu0 %v538
      %556 = vmatprep.subr.bf16.mxu0 0
      %557 = vmatpush2.bf16.msra.mxu0 0
      %558 = vmatprep.subr.bf16.mxu0 0
      %559 = vmatpush2.bf16.msra.mxu0 0
      %560 = vmatprep.subr.bf16.mxu0 0
      %561 = vmatpush2.bf16.msra.mxu0 0
      %562 = vmatprep.subr.bf16.mxu0 0
      %563 = vmatpush2.bf16.msra.mxu0 0
      %564 = vmatprep.subr.bf16.mxu0 0
      %565 = vmatpush2.bf16.msra.mxu0 0
      %566 = vmatprep.subr.bf16.mxu0 0
      %567 = vmatpush2.bf16.msra.mxu0 0
      %568 = vmatprep.subr.bf16.mxu0 0
      %569 = vmatpush2.bf16.msra.mxu0 0
      %570 = vmatprep.subr.bf16.mxu0 0
      %571 = vmatpush2.bf16.msra.mxu0 0
      %572 = vmatprep.mubr.bf16.mxu0 0
      %573 = vmatmul.mubr.bf16.gmra.mxu0 %v534
      %v574 = vpop.f32.mrf.mxu0
      %v575 = vadd.f32 0.0, %v574
      %v576 = vpop.f32.mrf.mxu0
      %v577 = vpop.f32.mrf.mxu0
      %v578 = vadd.f32 0.0, %v577
      %v579 = vpop.f32.mrf.mxu0
      %580 = vdwg.mxu0
      %v581 = vpack.c.bf16 %v578, %v575
      %v583 = vunpack.c.l.b16 %v581
      %v584 = vunpack.c.h.b16 %v581
      %v585 = vpack.c.b16 %v583, %v583
      %v586 = vpack.c.b16 %v584, %v584
      %vm589 = vcmask 60416
      %590 = vst.msk [vmem:[#allocation2] sm:$0xf] %vm589, %v585
      %vm591 = vcmask 57344
      %592 = vst.msk [vmem:[#allocation2 + $0x4] sm:$0x1] %vm591, %v586
      %v593 = vld [vmem:[%s1] sm:$0xf]
      %v594 = vld [vmem:[%s1 + $0x4] sm:$0xf]
      %v595 = vld [vmem:[%s1 + $0x8] sm:$0xf]
      %v596 = vld [vmem:[%s1 + $0xc] sm:$0xf]
      %v597 = vld [vmem:[%s2] sm:$0x1]
      %v599 = vlaneseq
      %v600 = vshrl.u32 %v599, 7
      %v601 = vsub.s32 0, %v600
      %v602 = vrot.slane %v597, %v601
      %v607 = vunpack.c.l.b16 %v593
      %v608 = vunpack.c.l.b16 %v594
      %v609 = vunpack.c.l.b16 %v595
      %v610 = vunpack.c.l.b16 %v596
      %v611 = vpack.c.b16 %v608, %v607
      %v612 = vpack.c.b16 %v610, %v609
      %613 = vrot.lane.b32.xlu0 %v611, 120
      %v614 = vpop.permute.xlu0 %613
      %615 = vrot.lane.b32.xlu0 %v612, 120
      %v616 = vpop.permute.xlu0 %615
      %619 = vrot.lane.b32.xlu0 %v602, 120
      %v620 = vpop.permute.xlu0 %619
      %622 = vmatprep.subr.bf16.mxu0 0
      %623 = vmatpush1.bf16.msra.mxu0 0
      %624 = vmatprep.subr.bf16.mxu0 0
      %625 = vmatpush1.bf16.msra.mxu0 0
      %626 = vmatprep.subr.bf16.mxu0 0
      %627 = vmatpush1.bf16.msra.mxu0 0
      %628 = vmatprep.subr.bf16.mxu0 0
      %629 = vmatpush1.bf16.msra.mxu0 0
      %630 = vmatprep.subr.bf16.mxu0 0
      %631 = vmatpush1.bf16.msra.mxu0 0
      %632 = vmatprep.subr.bf16.mxu0 0
      %633 = vmatpush1.bf16.msra.mxu0 0
      %634 = vmatprep.subr.bf16.mxu0 0
      %635 = vmatpush1.bf16.msra.mxu0 %v616
      %636 = vmatprep.subr.bf16.mxu0 0
      %637 = vmatpush1.bf16.msra.mxu0 %v614
      %638 = vmatprep.subr.bf16.mxu0 0
      %639 = vmatpush2.bf16.msra.mxu0 0
      %640 = vmatprep.subr.bf16.mxu0 0
      %641 = vmatpush2.bf16.msra.mxu0 0
      %642 = vmatprep.subr.bf16.mxu0 0
      %643 = vmatpush2.bf16.msra.mxu0 0
      %644 = vmatprep.subr.bf16.mxu0 0
      %645 = vmatpush2.bf16.msra.mxu0 0
      %646 = vmatprep.subr.bf16.mxu0 0
      %647 = vmatpush2.bf16.msra.mxu0 0
      %648 = vmatprep.subr.bf16.mxu0 0
      %649 = vmatpush2.bf16.msra.mxu0 0
      %650 = vmatprep.subr.bf16.mxu0 0
      %651 = vmatpush2.bf16.msra.mxu0 0
      %652 = vmatprep.subr.bf16.mxu0 0
      %653 = vmatpush2.bf16.msra.mxu0 0
      %654 = vmatprep.mubr.bf16.mxu0 0
      %655 = vmatmul.mubr.bf16.gmra.mxu0 %v312
      %v656 = vpop.f32.mrf.mxu0
      %v657 = vadd.f32 %v620, %v656
      %v658 = vpop.f32.mrf.mxu0
      %v659 = vpop.f32.mrf.mxu0
      %v660 = vadd.f32 %v620, %v659
      %v661 = vpop.f32.mrf.mxu0
      %662 = vdwg.mxu0
      %v663 = vmul.f32 %v657, 0.35355338
      %v664 = vmul.f32 %v660, 0.35355338
      %665 = vrot.lane.b32.xlu0 %v611, 88
      %v666 = vpop.permute.xlu0 %665
      %667 = vrot.lane.b32.xlu0 %v612, 88
      %v668 = vpop.permute.xlu0 %667
      %671 = vrot.lane.b32.xlu0 %v602, 88
      %v672 = vpop.permute.xlu0 %671
      %674 = vmatprep.subr.bf16.mxu0 0
      %675 = vmatpush1.bf16.msra.mxu0 0
      %676 = vmatprep.subr.bf16.mxu0 0
      %677 = vmatpush1.bf16.msra.mxu0 0
      %678 = vmatprep.subr.bf16.mxu0 0
      %679 = vmatpush1.bf16.msra.mxu0 0
      %680 = vmatprep.subr.bf16.mxu0 0
      %681 = vmatpush1.bf16.msra.mxu0 0
      %682 = vmatprep.subr.bf16.mxu0 0
      %683 = vmatpush1.bf16.msra.mxu0 0
      %684 = vmatprep.subr.bf16.mxu0 0
      %685 = vmatpush1.bf16.msra.mxu0 0
      %686 = vmatprep.subr.bf16.mxu0 0
      %687 = vmatpush1.bf16.msra.mxu0 %v668
      %688 = vmatprep.subr.bf16.mxu0 0
      %689 = vmatpush1.bf16.msra.mxu0 %v666
      %690 = vmatprep.subr.bf16.mxu0 0
      %691 = vmatpush2.bf16.msra.mxu0 0
      %692 = vmatprep.subr.bf16.mxu0 0
      %693 = vmatpush2.bf16.msra.mxu0 0
      %694 = vmatprep.subr.bf16.mxu0 0
      %695 = vmatpush2.bf16.msra.mxu0 0
      %696 = vmatprep.subr.bf16.mxu0 0
      %697 = vmatpush2.bf16.msra.mxu0 0
      %698 = vmatprep.subr.bf16.mxu0 0
      %699 = vmatpush2.bf16.msra.mxu0 0
      %700 = vmatprep.subr.bf16.mxu0 0
      %701 = vmatpush2.bf16.msra.mxu0 0
      %702 = vmatprep.subr.bf16.mxu0 0
      %703 = vmatpush2.bf16.msra.mxu0 0
      %704 = vmatprep.subr.bf16.mxu0 0
      %705 = vmatpush2.bf16.msra.mxu0 0
      %706 = vmatprep.mubr.bf16.mxu0 0
      %707 = vmatmul.mubr.bf16.gmra.mxu0 %v312
      %v708 = vpop.f32.mrf.mxu0
      %v709 = vadd.f32 %v672, %v708
      %v710 = vpop.f32.mrf.mxu0
      %v711 = vpop.f32.mrf.mxu0
      %v712 = vadd.f32 %v672, %v711
      %v713 = vpop.f32.mrf.mxu0
      %714 = vdwg.mxu0
      %715 = vrot.lane.b32.xlu0 %v611, 56
      %v716 = vpop.permute.xlu0 %715
      %717 = vrot.lane.b32.xlu0 %v612, 56
      %v718 = vpop.permute.xlu0 %717
      %721 = vrot.lane.b32.xlu0 %v602, 56
      %v722 = vpop.permute.xlu0 %721
      %724 = vmatprep.subr.bf16.mxu0 0
      %725 = vmatpush1.bf16.msra.mxu0 0
      %726 = vmatprep.subr.bf16.mxu0 0
      %727 = vmatpush1.bf16.msra.mxu0 0
      %728 = vmatprep.subr.bf16.mxu0 0
      %729 = vmatpush1.bf16.msra.mxu0 0
      %730 = vmatprep.subr.bf16.mxu0 0
      %731 = vmatpush1.bf16.msra.mxu0 0
      %732 = vmatprep.subr.bf16.mxu0 0
      %733 = vmatpush1.bf16.msra.mxu0 0
      %734 = vmatprep.subr.bf16.mxu0 0
      %735 = vmatpush1.bf16.msra.mxu0 0
      %736 = vmatprep.subr.bf16.mxu0 0
      %737 = vmatpush1.bf16.msra.mxu0 %v718
      %738 = vmatprep.subr.bf16.mxu0 0
      %739 = vmatpush1.bf16.msra.mxu0 %v716
      %740 = vmatprep.subr.bf16.mxu0 0
      %741 = vmatpush2.bf16.msra.mxu0 0
      %742 = vmatprep.subr.bf16.mxu0 0
      %743 = vmatpush2.bf16.msra.mxu0 0
      %744 = vmatprep.subr.bf16.mxu0 0
      %745 = vmatpush2.bf16.msra.mxu0 0
      %746 = vmatprep.subr.bf16.mxu0 0
      %747 = vmatpush2.bf16.msra.mxu0 0
      %748 = vmatprep.subr.bf16.mxu0 0
      %749 = vmatpush2.bf16.msra.mxu0 0
      %750 = vmatprep.subr.bf16.mxu0 0
      %751 = vmatpush2.bf16.msra.mxu0 0
      %752 = vmatprep.subr.bf16.mxu0 0
      %753 = vmatpush2.bf16.msra.mxu0 0
      %754 = vmatprep.subr.bf16.mxu0 0
      %755 = vmatpush2.bf16.msra.mxu0 0
      %756 = vmatprep.mubr.bf16.mxu0 0
      %757 = vmatmul.mubr.bf16.gmra.mxu0 %v312
      %v758 = vpop.f32.mrf.mxu0
      %v759 = vadd.f32 %v722, %v758
      %v760 = vpop.f32.mrf.mxu0
      %v761 = vpop.f32.mrf.mxu0
      %v762 = vadd.f32 %v722, %v761
      %v763 = vpop.f32.mrf.mxu0
      %764 = vdwg.mxu0
      %v765 = vpack.c.bf16 %v664, %v663
      %v766 = vpack.c.bf16 %v712, %v709
      %v768 = vsel %vm459, %v765, 0
      %v771 = vsel %vm459, %v766, 0
      %773 = vmatprep.subr.bf16.mxu0 0
      %774 = vmatpush1.bf16.xpose.msra.mxu0 0
      %775 = vmatprep.subr.bf16.mxu0 0
      %776 = vmatpush1.bf16.xpose.msra.mxu0 0
      %777 = vmatprep.subr.bf16.mxu0 0
      %778 = vmatpush1.bf16.xpose.msra.mxu0 0
      %779 = vmatprep.subr.bf16.mxu0 0
      %780 = vmatpush1.bf16.xpose.msra.mxu0 0
      %781 = vmatprep.subr.bf16.mxu0 0
      %782 = vmatpush1.bf16.xpose.msra.mxu0 0
      %783 = vmatprep.subr.bf16.mxu0 0
      %784 = vmatpush1.bf16.xpose.msra.mxu0 0
      %785 = vmatprep.subr.bf16.mxu0 0
      %786 = vmatpush1.bf16.xpose.msra.mxu0 0
      %787 = vmatprep.subr.bf16.mxu0 0
      %788 = vmatpush1.bf16.xpose.msra.mxu0 %v771
      %789 = vmatprep.subr.bf16.mxu0 0
      %790 = vmatpush2.bf16.xpose.msra.mxu0 0
      %791 = vmatprep.subr.bf16.mxu0 0
      %792 = vmatpush2.bf16.xpose.msra.mxu0 0
      %793 = vmatprep.subr.bf16.mxu0 0
      %794 = vmatpush2.bf16.xpose.msra.mxu0 0
      %795 = vmatprep.subr.bf16.mxu0 0
      %796 = vmatpush2.bf16.xpose.msra.mxu0 0
      %797 = vmatprep.subr.bf16.mxu0 0
      %798 = vmatpush2.bf16.xpose.msra.mxu0 0
      %799 = vmatprep.subr.bf16.mxu0 0
      %800 = vmatpush2.bf16.xpose.msra.mxu0 0
      %801 = vmatprep.subr.bf16.mxu0 0
      %802 = vmatpush2.bf16.xpose.msra.mxu0 0
      %803 = vmatprep.subr.bf16.mxu0 0
      %804 = vmatpush2.bf16.xpose.msra.mxu0 0
      %805 = vmatprep.mubr.bf16.mxu0 0
      %806 = vmatmul.mubr.bf16.gmra.mxu0 %v768
      %v807 = vpop.f32.mrf.mxu0
      %v808 = vadd.f32 0.0, %v807
      %v809 = vpop.f32.mrf.mxu0
      %v810 = vpop.f32.mrf.mxu0
      %v811 = vadd.f32 0.0, %v810
      %v812 = vpop.f32.mrf.mxu0
      %813 = vdwg.mxu0
      %v814 = vsel %vm507, %v808, -inf
      %815 = vmax.xlane.f32.xlu0 %v814
      %v816 = vpop.xlane.xlu0 %815
      %v817 = vsel %vm511, %v811, -inf
      %818 = vmax.xlane.f32.xlu0 %v817
      %v819 = vpop.xlane.xlu0 %818
      %v820 = vsub.f32 %v808, %v816
      %v821 = vsub.f32 %v811, %v819
      %v822 = vmul.f32 %v820, 1.442695
      %v823 = vpow.pop %v822
      %v824 = vmul.f32 %v821, 1.442695
      %v825 = vpow.pop %v824
      %v826 = vsel %vm507, %v823, 0.0
      %827 = vadd.xlane.f32.xlu0 %v826
      %v828 = vpop.xlane.xlu0 %827
      %v829 = vsel %vm511, %v825, 0.0
      %830 = vadd.xlane.f32.xlu0 %v829
      %v831 = vpop.xlane.xlu0 %830
      %v832 = vrcp.pop %v828
      %v833 = vrcp.pop %v831
      %v834 = vmul.f32 %v823, %v832
      %v835 = vmul.f32 %v825, %v833
      %v836 = vpack.c.bf16 %v835, %v834
      %v837 = vpack.c.bf16 %v762, %v759
      %v839 = vsel %vm507, %v836, 0
      %v842 = vsel %vm536, %v837, 0
      %844 = vmatprep.subr.bf16.mxu0 0
      %845 = vmatpush1.bf16.msra.mxu0 0
      %846 = vmatprep.subr.bf16.mxu0 0
      %847 = vmatpush1.bf16.msra.mxu0 0
      %848 = vmatprep.subr.bf16.mxu0 0
      %849 = vmatpush1.bf16.msra.mxu0 0
      %850 = vmatprep.subr.bf16.mxu0 0
      %851 = vmatpush1.bf16.msra.mxu0 0
      %852 = vmatprep.subr.bf16.mxu0 0
      %853 = vmatpush1.bf16.msra.mxu0 0
      %854 = vmatprep.subr.bf16.mxu0 0
      %855 = vmatpush1.bf16.msra.mxu0 0
      %856 = vmatprep.subr.bf16.mxu0 0
      %857 = vmatpush1.bf16.msra.mxu0 0
      %858 = vmatprep.subr.bf16.mxu0 0
      %859 = vmatpush1.bf16.msra.mxu0 %v842
      %860 = vmatprep.subr.bf16.mxu0 0
      %861 = vmatpush2.bf16.msra.mxu0 0
      %862 = vmatprep.subr.bf16.mxu0 0
      %863 = vmatpush2.bf16.msra.mxu0 0
      %864 = vmatprep.subr.bf16.mxu0 0
      %865 = vmatpush2.bf16.msra.mxu0 0
      %866 = vmatprep.subr.bf16.mxu0 0
      %867 = vmatpush2.bf16.msra.mxu0 0
      %868 = vmatprep.subr.bf16.mxu0 0
      %869 = vmatpush2.bf16.msra.mxu0 0
      %870 = vmatprep.subr.bf16.mxu0 0
      %871 = vmatpush2.bf16.msra.mxu0 0
      %872 = vmatprep.subr.bf16.mxu0 0
      %873 = vmatpush2.bf16.msra.mxu0 0
      %874 = vmatprep.subr.bf16.mxu0 0
      %875 = vmatpush2.bf16.msra.mxu0 0
      %876 = vmatprep.mubr.bf16.mxu0 0
      %877 = vmatmul.mubr.bf16.gmra.mxu0 %v839
      %v878 = vpop.f32.mrf.mxu0
      %v879 = vadd.f32 0.0, %v878
      %v880 = vpop.f32.mrf.mxu0
      %v881 = vpop.f32.mrf.mxu0
      %v882 = vadd.f32 0.0, %v881
      %v883 = vpop.f32.mrf.mxu0
      %884 = vdwg.mxu0
      %v885 = vpack.c.bf16 %v882, %v879
      %v887 = vunpack.c.l.b16 %v885
      %v888 = vunpack.c.h.b16 %v885
      %v889 = vpack.c.b16 %v887, %v887
      %v890 = vpack.c.b16 %v888, %v888
      %891 = vrot.lane.b32.xlu0 %v889, 8
      %v892 = vpop.permute.xlu0 %891
      %893 = vrot.lane.b32.xlu0 %v890, 8
      %v894 = vpop.permute.xlu0 %893
      %vm897 = vcmask 126016
      %898 = vst.msk [vmem:[#allocation2] sm:$0xf] %vm897, %v892
      %vm899 = vcmask 122944
      %900 = vst.msk [vmem:[#allocation2 + $0x4] sm:$0x1] %vm899, %v894
      %v901 = vld [vmem:[%s1] sm:$0xf]
      %v902 = vld [vmem:[%s1 + $0x4] sm:$0xf]
      %v903 = vld [vmem:[%s1 + $0x8] sm:$0xf]
      %v904 = vld [vmem:[%s1 + $0xc] sm:$0xf]
      %v905 = vld [vmem:[%s2] sm:$0x1]
      %v907 = vlaneseq
      %v908 = vshrl.u32 %v907, 7
      %v909 = vsub.s32 0, %v908
      %v910 = vrot.slane %v905, %v909
      %v915 = vunpack.c.l.b16 %v901
      %v916 = vunpack.c.l.b16 %v902
      %v917 = vunpack.c.l.b16 %v903
      %v918 = vunpack.c.l.b16 %v904
      %v919 = vpack.c.b16 %v916, %v915
      %v920 = vpack.c.b16 %v918, %v917
      %921 = vrot.lane.b32.xlu0 %v919, 112
      %v922 = vpop.permute.xlu0 %921
      %923 = vrot.lane.b32.xlu0 %v920, 112
      %v924 = vpop.permute.xlu0 %923
      %927 = vrot.lane.b32.xlu0 %v910, 112
      %v928 = vpop.permute.xlu0 %927
      %930 = vmatprep.subr.bf16.mxu0 0
      %931 = vmatpush1.bf16.msra.mxu0 0
      %932 = vmatprep.subr.bf16.mxu0 0
      %933 = vmatpush1.bf16.msra.mxu0 0
      %934 = vmatprep.subr.bf16.mxu0 0
      %935 = vmatpush1.bf16.msra.mxu0 0
      %936 = vmatprep.subr.bf16.mxu0 0
      %937 = vmatpush1.bf16.msra.mxu0 0
      %938 = vmatprep.subr.bf16.mxu0 0
      %939 = vmatpush1.bf16.msra.mxu0 0
      %940 = vmatprep.subr.bf16.mxu0 0
      %941 = vmatpush1.bf16.msra.mxu0 0
      %942 = vmatprep.subr.bf16.mxu0 0
      %943 = vmatpush1.bf16.msra.mxu0 %v924
      %944 = vmatprep.subr.bf16.mxu0 0
      %945 = vmatpush1.bf16.msra.mxu0 %v922
      %946 = vmatprep.subr.bf16.mxu0 0
      %947 = vmatpush2.bf16.msra.mxu0 0
      %948 = vmatprep.subr.bf16.mxu0 0
      %949 = vmatpush2.bf16.msra.mxu0 0
      %950 = vmatprep.subr.bf16.mxu0 0
      %951 = vmatpush2.bf16.msra.mxu0 0
      %952 = vmatprep.subr.bf16.mxu0 0
      %953 = vmatpush2.bf16.msra.mxu0 0
      %954 = vmatprep.subr.bf16.mxu0 0
      %955 = vmatpush2.bf16.msra.mxu0 0
      %956 = vmatprep.subr.bf16.mxu0 0
      %957 = vmatpush2.bf16.msra.mxu0 0
      %958 = vmatprep.subr.bf16.mxu0 0
      %959 = vmatpush2.bf16.msra.mxu0 0
      %960 = vmatprep.subr.bf16.mxu0 0
      %961 = vmatpush2.bf16.msra.mxu0 0
      %962 = vmatprep.mubr.bf16.mxu0 0
      %963 = vmatmul.mubr.bf16.gmra.mxu0 %v312
      %v964 = vpop.f32.mrf.mxu0
      %v965 = vadd.f32 %v928, %v964
      %v966 = vpop.f32.mrf.mxu0
      %v967 = vpop.f32.mrf.mxu0
      %v968 = vadd.f32 %v928, %v967
      %v969 = vpop.f32.mrf.mxu0
      %970 = vdwg.mxu0
      %v971 = vmul.f32 %v965, 0.35355338
      %v972 = vmul.f32 %v968, 0.35355338
      %973 = vrot.lane.b32.xlu0 %v919, 80
      %v974 = vpop.permute.xlu0 %973
      %975 = vrot.lane.b32.xlu0 %v920, 80
      %v976 = vpop.permute.xlu0 %975
      %979 = vrot.lane.b32.xlu0 %v910, 80
      %v980 = vpop.permute.xlu0 %979
      %982 = vmatprep.subr.bf16.mxu0 0
      %983 = vmatpush1.bf16.msra.mxu0 0
      %984 = vmatprep.subr.bf16.mxu0 0
      %985 = vmatpush1.bf16.msra.mxu0 0
      %986 = vmatprep.subr.bf16.mxu0 0
      %987 = vmatpush1.bf16.msra.mxu0 0
      %988 = vmatprep.subr.bf16.mxu0 0
      %989 = vmatpush1.bf16.msra.mxu0 0
      %990 = vmatprep.subr.bf16.mxu0 0
      %991 = vmatpush1.bf16.msra.mxu0 0
      %992 = vmatprep.subr.bf16.mxu0 0
      %993 = vmatpush1.bf16.msra.mxu0 0
      %994 = vmatprep.subr.bf16.mxu0 0
      %995 = vmatpush1.bf16.msra.mxu0 %v976
      %996 = vmatprep.subr.bf16.mxu0 0
      %997 = vmatpush1.bf16.msra.mxu0 %v974
      %998 = vmatprep.subr.bf16.mxu0 0
      %999 = vmatpush2.bf16.msra.mxu0 0
      %1000 = vmatprep.subr.bf16.mxu0 0
      %1001 = vmatpush2.bf16.msra.mxu0 0
      %1002 = vmatprep.subr.bf16.mxu0 0
      %1003 = vmatpush2.bf16.msra.mxu0 0
      %1004 = vmatprep.subr.bf16.mxu0 0
      %1005 = vmatpush2.bf16.msra.mxu0 0
      %1006 = vmatprep.subr.bf16.mxu0 0
      %1007 = vmatpush2.bf16.msra.mxu0 0
      %1008 = vmatprep.subr.bf16.mxu0 0
      %1009 = vmatpush2.bf16.msra.mxu0 0
      %1010 = vmatprep.subr.bf16.mxu0 0
      %1011 = vmatpush2.bf16.msra.mxu0 0
      %1012 = vmatprep.subr.bf16.mxu0 0
      %1013 = vmatpush2.bf16.msra.mxu0 0
      %1014 = vmatprep.mubr.bf16.mxu0 0
      %1015 = vmatmul.mubr.bf16.gmra.mxu0 %v312
      %v1016 = vpop.f32.mrf.mxu0
      %v1017 = vadd.f32 %v980, %v1016
      %v1018 = vpop.f32.mrf.mxu0
      %v1019 = vpop.f32.mrf.mxu0
      %v1020 = vadd.f32 %v980, %v1019
      %v1021 = vpop.f32.mrf.mxu0
      %1022 = vdwg.mxu0
      %1023 = vrot.lane.b32.xlu0 %v919, 48
      %v1024 = vpop.permute.xlu0 %1023
      %1025 = vrot.lane.b32.xlu0 %v920, 48
      %v1026 = vpop.permute.xlu0 %1025
      %1029 = vrot.lane.b32.xlu0 %v910, 48
      %v1030 = vpop.permute.xlu0 %1029
      %1032 = vmatprep.subr.bf16.mxu0 0
      %1033 = vmatpush1.bf16.msra.mxu0 0
      %1034 = vmatprep.subr.bf16.mxu0 0
      %1035 = vmatpush1.bf16.msra.mxu0 0
      %1036 = vmatprep.subr.bf16.mxu0 0
      %1037 = vmatpush1.bf16.msra.mxu0 0
      %1038 = vmatprep.subr.bf16.mxu0 0
      %1039 = vmatpush1.bf16.msra.mxu0 0
      %1040 = vmatprep.subr.bf16.mxu0 0
      %1041 = vmatpush1.bf16.msra.mxu0 0
      %1042 = vmatprep.subr.bf16.mxu0 0
      %1043 = vmatpush1.bf16.msra.mxu0 0
      %1044 = vmatprep.subr.bf16.mxu0 0
      %1045 = vmatpush1.bf16.msra.mxu0 %v1026
      %1046 = vmatprep.subr.bf16.mxu0 0
      %1047 = vmatpush1.bf16.msra.mxu0 %v1024
      %1048 = vmatprep.subr.bf16.mxu0 0
      %1049 = vmatpush2.bf16.msra.mxu0 0
      %1050 = vmatprep.subr.bf16.mxu0 0
      %1051 = vmatpush2.bf16.msra.mxu0 0
      %1052 = vmatprep.subr.bf16.mxu0 0
      %1053 = vmatpush2.bf16.msra.mxu0 0
      %1054 = vmatprep.subr.bf16.mxu0 0
      %1055 = vmatpush2.bf16.msra.mxu0 0
      %1056 = vmatprep.subr.bf16.mxu0 0
      %1057 = vmatpush2.bf16.msra.mxu0 0
      %1058 = vmatprep.subr.bf16.mxu0 0
      %1059 = vmatpush2.bf16.msra.mxu0 0
      %1060 = vmatprep.subr.bf16.mxu0 0
      %1061 = vmatpush2.bf16.msra.mxu0 0
      %1062 = vmatprep.subr.bf16.mxu0 0
      %1063 = vmatpush2.bf16.msra.mxu0 0
      %1064 = vmatprep.mubr.bf16.mxu0 0
      %1065 = vmatmul.mubr.bf16.gmra.mxu0 %v312
      %v1066 = vpop.f32.mrf.mxu0
      %v1067 = vadd.f32 %v1030, %v1066
      %v1068 = vpop.f32.mrf.mxu0
      %v1069 = vpop.f32.mrf.mxu0
      %v1070 = vadd.f32 %v1030, %v1069
      %v1071 = vpop.f32.mrf.mxu0
      %1072 = vdwg.mxu0
      %v1073 = vpack.c.bf16 %v972, %v971
      %v1074 = vpack.c.bf16 %v1020, %v1017
      %v1076 = vsel %vm459, %v1073, 0
      %v1079 = vsel %vm459, %v1074, 0
      %1081 = vmatprep.subr.bf16.mxu0 0
      %1082 = vmatpush1.bf16.xpose.msra.mxu0 0
      %1083 = vmatprep.subr.bf16.mxu0 0
      %1084 = vmatpush1.bf16.xpose.msra.mxu0 0
      %1085 = vmatprep.subr.bf16.mxu0 0
      %1086 = vmatpush1.bf16.xpose.msra.mxu0 0
      %1087 = vmatprep.subr.bf16.mxu0 0
      %1088 = vmatpush1.bf16.xpose.msra.mxu0 0
      %1089 = vmatprep.subr.bf16.mxu0 0
      %1090 = vmatpush1.bf16.xpose.msra.mxu0 0
      %1091 = vmatprep.subr.bf16.mxu0 0
      %1092 = vmatpush1.bf16.xpose.msra.mxu0 0
      %1093 = vmatprep.subr.bf16.mxu0 0
      %1094 = vmatpush1.bf16.xpose.msra.mxu0 0
      %1095 = vmatprep.subr.bf16.mxu0 0
      %1096 = vmatpush1.bf16.xpose.msra.mxu0 %v1079
      %1097 = vmatprep.subr.bf16.mxu0 0
      %1098 = vmatpush2.bf16.xpose.msra.mxu0 0
      %1099 = vmatprep.subr.bf16.mxu0 0
      %1100 = vmatpush2.bf16.xpose.msra.mxu0 0
      %1101 = vmatprep.subr.bf16.mxu0 0
      %1102 = vmatpush2.bf16.xpose.msra.mxu0 0
      %1103 = vmatprep.subr.bf16.mxu0 0
      %1104 = vmatpush2.bf16.xpose.msra.mxu0 0
      %1105 = vmatprep.subr.bf16.mxu0 0
      %1106 = vmatpush2.bf16.xpose.msra.mxu0 0
      %1107 = vmatprep.subr.bf16.mxu0 0
      %1108 = vmatpush2.bf16.xpose.msra.mxu0 0
      %1109 = vmatprep.subr.bf16.mxu0 0
      %1110 = vmatpush2.bf16.xpose.msra.mxu0 0
      %1111 = vmatprep.subr.bf16.mxu0 0
      %1112 = vmatpush2.bf16.xpose.msra.mxu0 0
      %1113 = vmatprep.mubr.bf16.mxu0 0
      %1114 = vmatmul.mubr.bf16.gmra.mxu0 %v1076
      %v1115 = vpop.f32.mrf.mxu0
      %v1116 = vadd.f32 0.0, %v1115
      %v1117 = vpop.f32.mrf.mxu0
      %v1118 = vpop.f32.mrf.mxu0
      %v1119 = vadd.f32 0.0, %v1118
      %v1120 = vpop.f32.mrf.mxu0
      %1121 = vdwg.mxu0
      %v1122 = vsel %vm507, %v1116, -inf
      %1123 = vmax.xlane.f32.xlu0 %v1122
      %v1124 = vpop.xlane.xlu0 %1123
      %v1125 = vsel %vm511, %v1119, -inf
      %1126 = vmax.xlane.f32.xlu0 %v1125
      %v1127 = vpop.xlane.xlu0 %1126
      %v1128 = vsub.f32 %v1116, %v1124
      %v1129 = vsub.f32 %v1119, %v1127
      %v1130 = vmul.f32 %v1128, 1.442695
      %v1131 = vpow.pop %v1130
      %v1132 = vmul.f32 %v1129, 1.442695
      %v1133 = vpow.pop %v1132
      %v1134 = vsel %vm507, %v1131, 0.0
      %1135 = vadd.xlane.f32.xlu0 %v1134
      %v1136 = vpop.xlane.xlu0 %1135
      %v1137 = vsel %vm511, %v1133, 0.0
      %1138 = vadd.xlane.f32.xlu0 %v1137
      %v1139 = vpop.xlane.xlu0 %1138
      %v1140 = vrcp.pop %v1136
      %v1141 = vrcp.pop %v1139
      %v1142 = vmul.f32 %v1131, %v1140
      %v1143 = vmul.f32 %v1133, %v1141
      %v1144 = vpack.c.bf16 %v1143, %v1142
      %v1145 = vpack.c.bf16 %v1070, %v1067
      %v1147 = vsel %vm507, %v1144, 0
      %v1150 = vsel %vm536, %v1145, 0
      %1152 = vmatprep.subr.bf16.mxu0 0
      %1153 = vmatpush1.bf16.msra.mxu0 0
      %1154 = vmatprep.subr.bf16.mxu0 0
      %1155 = vmatpush1.bf16.msra.mxu0 0
      %1156 = vmatprep.subr.bf16.mxu0 0
      %1157 = vmatpush1.bf16.msra.mxu0 0
      %1158 = vmatprep.subr.bf16.mxu0 0
      %1159 = vmatpush1.bf16.msra.mxu0 0
      %1160 = vmatprep.subr.bf16.mxu0 0
      %1161 = vmatpush1.bf16.msra.mxu0 0
      %1162 = vmatprep.subr.bf16.mxu0 0
      %1163 = vmatpush1.bf16.msra.mxu0 0
      %1164 = vmatprep.subr.bf16.mxu0 0
      %1165 = vmatpush1.bf16.msra.mxu0 0
      %1166 = vmatprep.subr.bf16.mxu0 0
      %1167 = vmatpush1.bf16.msra.mxu0 %v1150
      %1168 = vmatprep.subr.bf16.mxu0 0
      %1169 = vmatpush2.bf16.msra.mxu0 0
      %1170 = vmatprep.subr.bf16.mxu0 0
      %1171 = vmatpush2.bf16.msra.mxu0 0
      %1172 = vmatprep.subr.bf16.mxu0 0
      %1173 = vmatpush2.bf16.msra.mxu0 0
      %1174 = vmatprep.subr.bf16.mxu0 0
      %1175 = vmatpush2.bf16.msra.mxu0 0
      %1176 = vmatprep.subr.bf16.mxu0 0
      %1177 = vmatpush2.bf16.msra.mxu0 0
      %1178 = vmatprep.subr.bf16.mxu0 0
      %1179 = vmatpush2.bf16.msra.mxu0 0
      %1180 = vmatprep.subr.bf16.mxu0 0
      %1181 = vmatpush2.bf16.msra.mxu0 0
      %1182 = vmatprep.subr.bf16.mxu0 0
      %1183 = vmatpush2.bf16.msra.mxu0 0
      %1184 = vmatprep.mubr.bf16.mxu0 0
      %1185 = vmatmul.mubr.bf16.gmra.mxu0 %v1147
      %v1186 = vpop.f32.mrf.mxu0
      %v1187 = vadd.f32 0.0, %v1186
      %v1188 = vpop.f32.mrf.mxu0
      %v1189 = vpop.f32.mrf.mxu0
      %v1190 = vadd.f32 0.0, %v1189
      %v1191 = vpop.f32.mrf.mxu0
      %1192 = vdwg.mxu0
      %v1193 = vpack.c.bf16 %v1190, %v1187
      %v1195 = vunpack.c.l.b16 %v1193
      %v1196 = vunpack.c.h.b16 %v1193
      %v1197 = vpack.c.b16 %v1195, %v1195
      %v1198 = vpack.c.b16 %v1196, %v1196
      %1199 = vrot.lane.b32.xlu0 %v1197, 16
      %v1200 = vpop.permute.xlu0 %1199
      %1201 = vrot.lane.b32.xlu0 %v1198, 16
      %v1202 = vpop.permute.xlu0 %1201
      %vm1205 = vcmask 191616
      %1206 = vst.msk [vmem:[#allocation2] sm:$0xf] %vm1205, %v1200
      %vm1207 = vcmask 188544
      %1208 = vst.msk [vmem:[#allocation2 + $0x4] sm:$0x1] %vm1207, %v1202
      %v1209 = vld [vmem:[%s1] sm:$0xf]
      %v1210 = vld [vmem:[%s1 + $0x4] sm:$0xf]
      %v1211 = vld [vmem:[%s1 + $0x8] sm:$0xf]
      %v1212 = vld [vmem:[%s1 + $0xc] sm:$0xf]
      %v1213 = vld [vmem:[%s2] sm:$0x1]
      %v1215 = vlaneseq
      %v1216 = vshrl.u32 %v1215, 7
      %v1217 = vsub.s32 0, %v1216
      %v1218 = vrot.slane %v1213, %v1217
      %v1223 = vunpack.c.l.b16 %v1209
      %v1224 = vunpack.c.l.b16 %v1210
      %v1225 = vunpack.c.l.b16 %v1211
      %v1226 = vunpack.c.l.b16 %v1212
      %v1227 = vpack.c.b16 %v1224, %v1223
      %v1228 = vpack.c.b16 %v1226, %v1225
      %1229 = vrot.lane.b32.xlu0 %v1227, 104
      %v1230 = vpop.permute.xlu0 %1229
      %1231 = vrot.lane.b32.xlu0 %v1228, 104
      %v1232 = vpop.permute.xlu0 %1231
      %1235 = vrot.lane.b32.xlu0 %v1218, 104
      %v1236 = vpop.permute.xlu0 %1235
      %1238 = vmatprep.subr.bf16.mxu0 0
      %1239 = vmatpush1.bf16.msra.mxu0 0
      %1240 = vmatprep.subr.bf16.mxu0 0
      %1241 = vmatpush1.bf16.msra.mxu0 0
      %1242 = vmatprep.subr.bf16.mxu0 0
      %1243 = vmatpush1.bf16.msra.mxu0 0
      %1244 = vmatprep.subr.bf16.mxu0 0
      %1245 = vmatpush1.bf16.msra.mxu0 0
      %1246 = vmatprep.subr.bf16.mxu0 0
      %1247 = vmatpush1.bf16.msra.mxu0 0
      %1248 = vmatprep.subr.bf16.mxu0 0
      %1249 = vmatpush1.bf16.msra.mxu0 0
      %1250 = vmatprep.subr.bf16.mxu0 0
      %1251 = vmatpush1.bf16.msra.mxu0 %v1232
      %1252 = vmatprep.subr.bf16.mxu0 0
      %1253 = vmatpush1.bf16.msra.mxu0 %v1230
      %1254 = vmatprep.subr.bf16.mxu0 0
      %1255 = vmatpush2.bf16.msra.mxu0 0
      %1256 = vmatprep.subr.bf16.mxu0 0
      %1257 = vmatpush2.bf16.msra.mxu0 0
      %1258 = vmatprep.subr.bf16.mxu0 0
      %1259 = vmatpush2.bf16.msra.mxu0 0
      %1260 = vmatprep.subr.bf16.mxu0 0
      %1261 = vmatpush2.bf16.msra.mxu0 0
      %1262 = vmatprep.subr.bf16.mxu0 0
      %1263 = vmatpush2.bf16.msra.mxu0 0
      %1264 = vmatprep.subr.bf16.mxu0 0
      %1265 = vmatpush2.bf16.msra.mxu0 0
      %1266 = vmatprep.subr.bf16.mxu0 0
      %1267 = vmatpush2.bf16.msra.mxu0 0
      %1268 = vmatprep.subr.bf16.mxu0 0
      %1269 = vmatpush2.bf16.msra.mxu0 0
      %1270 = vmatprep.mubr.bf16.mxu0 0
      %1271 = vmatmul.mubr.bf16.gmra.mxu0 %v312
      %v1272 = vpop.f32.mrf.mxu0
      %v1273 = vadd.f32 %v1236, %v1272
      %v1274 = vpop.f32.mrf.mxu0
      %v1275 = vpop.f32.mrf.mxu0
      %v1276 = vadd.f32 %v1236, %v1275
      %v1277 = vpop.f32.mrf.mxu0
      %1278 = vdwg.mxu0
      %v1279 = vmul.f32 %v1273, 0.35355338
      %v1280 = vmul.f32 %v1276, 0.35355338
      %1281 = vrot.lane.b32.xlu0 %v1227, 72
      %v1282 = vpop.permute.xlu0 %1281
      %1283 = vrot.lane.b32.xlu0 %v1228, 72
      %v1284 = vpop.permute.xlu0 %1283
      %1287 = vrot.lane.b32.xlu0 %v1218, 72
      %v1288 = vpop.permute.xlu0 %1287
      %1290 = vmatprep.subr.bf16.mxu0 0
      %1291 = vmatpush1.bf16.msra.mxu0 0
      %1292 = vmatprep.subr.bf16.mxu0 0
      %1293 = vmatpush1.bf16.msra.mxu0 0
      %1294 = vmatprep.subr.bf16.mxu0 0
      %1295 = vmatpush1.bf16.msra.mxu0 0
      %1296 = vmatprep.subr.bf16.mxu0 0
      %1297 = vmatpush1.bf16.msra.mxu0 0
      %1298 = vmatprep.subr.bf16.mxu0 0
      %1299 = vmatpush1.bf16.msra.mxu0 0
      %1300 = vmatprep.subr.bf16.mxu0 0
      %1301 = vmatpush1.bf16.msra.mxu0 0
      %1302 = vmatprep.subr.bf16.mxu0 0
      %1303 = vmatpush1.bf16.msra.mxu0 %v1284
      %1304 = vmatprep.subr.bf16.mxu0 0
      %1305 = vmatpush1.bf16.msra.mxu0 %v1282
      %1306 = vmatprep.subr.bf16.mxu0 0
      %1307 = vmatpush2.bf16.msra.mxu0 0
      %1308 = vmatprep.subr.bf16.mxu0 0
      %1309 = vmatpush2.bf16.msra.mxu0 0
      %1310 = vmatprep.subr.bf16.mxu0 0
      %1311 = vmatpush2.bf16.msra.mxu0 0
      %1312 = vmatprep.subr.bf16.mxu0 0
      %1313 = vmatpush2.bf16.msra.mxu0 0
      %1314 = vmatprep.subr.bf16.mxu0 0
      %1315 = vmatpush2.bf16.msra.mxu0 0
      %1316 = vmatprep.subr.bf16.mxu0 0
      %1317 = vmatpush2.bf16.msra.mxu0 0
      %1318 = vmatprep.subr.bf16.mxu0 0
      %1319 = vmatpush2.bf16.msra.mxu0 0
      %1320 = vmatprep.subr.bf16.mxu0 0
      %1321 = vmatpush2.bf16.msra.mxu0 0
      %1322 = vmatprep.mubr.bf16.mxu0 0
      %1323 = vmatmul.mubr.bf16.gmra.mxu0 %v312
      %v1324 = vpop.f32.mrf.mxu0
      %v1325 = vadd.f32 %v1288, %v1324
      %v1326 = vpop.f32.mrf.mxu0
      %v1327 = vpop.f32.mrf.mxu0
      %v1328 = vadd.f32 %v1288, %v1327
      %v1329 = vpop.f32.mrf.mxu0
      %1330 = vdwg.mxu0
      %1331 = vrot.lane.b32.xlu0 %v1227, 40
      %v1332 = vpop.permute.xlu0 %1331
      %1333 = vrot.lane.b32.xlu0 %v1228, 40
      %v1334 = vpop.permute.xlu0 %1333
      %1337 = vrot.lane.b32.xlu0 %v1218, 40
      %v1338 = vpop.permute.xlu0 %1337
      %1340 = vmatprep.subr.bf16.mxu0 0
      %1341 = vmatpush1.bf16.msra.mxu0 0
      %1342 = vmatprep.subr.bf16.mxu0 0
      %1343 = vmatpush1.bf16.msra.mxu0 0
      %1344 = vmatprep.subr.bf16.mxu0 0
      %1345 = vmatpush1.bf16.msra.mxu0 0
      %1346 = vmatprep.subr.bf16.mxu0 0
      %1347 = vmatpush1.bf16.msra.mxu0 0
      %1348 = vmatprep.subr.bf16.mxu0 0
      %1349 = vmatpush1.bf16.msra.mxu0 0
      %1350 = vmatprep.subr.bf16.mxu0 0
      %1351 = vmatpush1.bf16.msra.mxu0 0
      %1352 = vmatprep.subr.bf16.mxu0 0
      %1353 = vmatpush1.bf16.msra.mxu0 %v1334
      %1354 = vmatprep.subr.bf16.mxu0 0
      %1355 = vmatpush1.bf16.msra.mxu0 %v1332
      %1356 = vmatprep.subr.bf16.mxu0 0
      %1357 = vmatpush2.bf16.msra.mxu0 0
      %1358 = vmatprep.subr.bf16.mxu0 0
      %1359 = vmatpush2.bf16.msra.mxu0 0
      %1360 = vmatprep.subr.bf16.mxu0 0
      %1361 = vmatpush2.bf16.msra.mxu0 0
      %1362 = vmatprep.subr.bf16.mxu0 0
      %1363 = vmatpush2.bf16.msra.mxu0 0
      %1364 = vmatprep.subr.bf16.mxu0 0
      %1365 = vmatpush2.bf16.msra.mxu0 0
      %1366 = vmatprep.subr.bf16.mxu0 0
      %1367 = vmatpush2.bf16.msra.mxu0 0
      %1368 = vmatprep.subr.bf16.mxu0 0
      %1369 = vmatpush2.bf16.msra.mxu0 0
      %1370 = vmatprep.subr.bf16.mxu0 0
      %1371 = vmatpush2.bf16.msra.mxu0 0
      %1372 = vmatprep.mubr.bf16.mxu0 0
      %1373 = vmatmul.mubr.bf16.gmra.mxu0 %v312
      %v1374 = vpop.f32.mrf.mxu0
      %v1375 = vadd.f32 %v1338, %v1374
      %v1376 = vpop.f32.mrf.mxu0
      %v1377 = vpop.f32.mrf.mxu0
      %v1378 = vadd.f32 %v1338, %v1377
      %v1379 = vpop.f32.mrf.mxu0
      %1380 = vdwg.mxu0
      %v1381 = vpack.c.bf16 %v1280, %v1279
      %v1382 = vpack.c.bf16 %v1328, %v1325
      %v1384 = vsel %vm459, %v1381, 0
      %v1387 = vsel %vm459, %v1382, 0
      %1389 = vmatprep.subr.bf16.mxu0 0
      %1390 = vmatpush1.bf16.xpose.msra.mxu0 0
      %1391 = vmatprep.subr.bf16.mxu0 0
      %1392 = vmatpush1.bf16.xpose.msra.mxu0 0
      %1393 = vmatprep.subr.bf16.mxu0 0
      %1394 = vmatpush1.bf16.xpose.msra.mxu0 0
      %1395 = vmatprep.subr.bf16.mxu0 0
      %1396 = vmatpush1.bf16.xpose.msra.mxu0 0
      %1397 = vmatprep.subr.bf16.mxu0 0
      %1398 = vmatpush1.bf16.xpose.msra.mxu0 0
      %1399 = vmatprep.subr.bf16.mxu0 0
      %1400 = vmatpush1.bf16.xpose.msra.mxu0 0
      %1401 = vmatprep.subr.bf16.mxu0 0
      %1402 = vmatpush1.bf16.xpose.msra.mxu0 0
      %1403 = vmatprep.subr.bf16.mxu0 0
      %1404 = vmatpush1.bf16.xpose.msra.mxu0 %v1387
      %1405 = vmatprep.subr.bf16.mxu0 0
      %1406 = vmatpush2.bf16.xpose.msra.mxu0 0
      %1407 = vmatprep.subr.bf16.mxu0 0
      %1408 = vmatpush2.bf16.xpose.msra.mxu0 0
      %1409 = vmatprep.subr.bf16.mxu0 0
      %1410 = vmatpush2.bf16.xpose.msra.mxu0 0
      %1411 = vmatprep.subr.bf16.mxu0 0
      %1412 = vmatpush2.bf16.xpose.msra.mxu0 0
      %1413 = vmatprep.subr.bf16.mxu0 0
      %1414 = vmatpush2.bf16.xpose.msra.mxu0 0
      %1415 = vmatprep.subr.bf16.mxu0 0
      %1416 = vmatpush2.bf16.xpose.msra.mxu0 0
      %1417 = vmatprep.subr.bf16.mxu0 0
      %1418 = vmatpush2.bf16.xpose.msra.mxu0 0
      %1419 = vmatprep.subr.bf16.mxu0 0
      %1420 = vmatpush2.bf16.xpose.msra.mxu0 0
      %1421 = vmatprep.mubr.bf16.mxu0 0
      %1422 = vmatmul.mubr.bf16.gmra.mxu0 %v1384
      %v1423 = vpop.f32.mrf.mxu0
      %v1424 = vadd.f32 0.0, %v1423
      %v1425 = vpop.f32.mrf.mxu0
      %v1426 = vpop.f32.mrf.mxu0
      %v1427 = vadd.f32 0.0, %v1426
      %v1428 = vpop.f32.mrf.mxu0
      %1429 = vdwg.mxu0
      %v1430 = vsel %vm507, %v1424, -inf
      %1431 = vmax.xlane.f32.xlu0 %v1430
      %v1432 = vpop.xlane.xlu0 %1431
      %v1433 = vsel %vm511, %v1427, -inf
      %1434 = vmax.xlane.f32.xlu0 %v1433
      %v1435 = vpop.xlane.xlu0 %1434
      %v1436 = vsub.f32 %v1424, %v1432
      %v1437 = vsub.f32 %v1427, %v1435
      %v1438 = vmul.f32 %v1436, 1.442695
      %v1439 = vpow.pop %v1438
      %v1440 = vmul.f32 %v1437, 1.442695
      %v1441 = vpow.pop %v1440
      %v1442 = vsel %vm507, %v1439, 0.0
      %1443 = vadd.xlane.f32.xlu0 %v1442
      %v1444 = vpop.xlane.xlu0 %1443
      %v1445 = vsel %vm511, %v1441, 0.0
      %1446 = vadd.xlane.f32.xlu0 %v1445
      %v1447 = vpop.xlane.xlu0 %1446
      %v1448 = vrcp.pop %v1444
      %v1449 = vrcp.pop %v1447
      %v1450 = vmul.f32 %v1439, %v1448
      %v1451 = vmul.f32 %v1441, %v1449
      %v1452 = vpack.c.bf16 %v1451, %v1450
      %v1453 = vpack.c.bf16 %v1378, %v1375
      %v1455 = vsel %vm507, %v1452, 0
      %v1458 = vsel %vm536, %v1453, 0
      %1460 = vmatprep.subr.bf16.mxu0 0
      %1461 = vmatpush1.bf16.msra.mxu0 0
      %1462 = vmatprep.subr.bf16.mxu0 0
      %1463 = vmatpush1.bf16.msra.mxu0 0
      %1464 = vmatprep.subr.bf16.mxu0 0
      %1465 = vmatpush1.bf16.msra.mxu0 0
      %1466 = vmatprep.subr.bf16.mxu0 0
      %1467 = vmatpush1.bf16.msra.mxu0 0
      %1468 = vmatprep.subr.bf16.mxu0 0
      %1469 = vmatpush1.bf16.msra.mxu0 0
      %1470 = vmatprep.subr.bf16.mxu0 0
      %1471 = vmatpush1.bf16.msra.mxu0 0
      %1472 = vmatprep.subr.bf16.mxu0 0
      %1473 = vmatpush1.bf16.msra.mxu0 0
      %1474 = vmatprep.subr.bf16.mxu0 0
      %1475 = vmatpush1.bf16.msra.mxu0 %v1458
      %1476 = vmatprep.subr.bf16.mxu0 0
      %1477 = vmatpush2.bf16.msra.mxu0 0
      %1478 = vmatprep.subr.bf16.mxu0 0
      %1479 = vmatpush2.bf16.msra.mxu0 0
      %1480 = vmatprep.subr.bf16.mxu0 0
      %1481 = vmatpush2.bf16.msra.mxu0 0
      %1482 = vmatprep.subr.bf16.mxu0 0
      %1483 = vmatpush2.bf16.msra.mxu0 0
      %1484 = vmatprep.subr.bf16.mxu0 0
      %1485 = vmatpush2.bf16.msra.mxu0 0
      %1486 = vmatprep.subr.bf16.mxu0 0
      %1487 = vmatpush2.bf16.msra.mxu0 0
      %1488 = vmatprep.subr.bf16.mxu0 0
      %1489 = vmatpush2.bf16.msra.mxu0 0
      %1490 = vmatprep.subr.bf16.mxu0 0
      %1491 = vmatpush2.bf16.msra.mxu0 0
      %1492 = vmatprep.mubr.bf16.mxu0 0
      %1493 = vmatmul.mubr.bf16.gmra.mxu0 %v1455
      %v1494 = vpop.f32.mrf.mxu0
      %v1495 = vadd.f32 0.0, %v1494
      %v1496 = vpop.f32.mrf.mxu0
      %v1497 = vpop.f32.mrf.mxu0
      %v1498 = vadd.f32 0.0, %v1497
      %v1499 = vpop.f32.mrf.mxu0
      %1500 = vdwg.mxu0
      %v1501 = vpack.c.bf16 %v1498, %v1495
      %v1503 = vunpack.c.l.b16 %v1501
      %v1504 = vunpack.c.h.b16 %v1501
      %v1505 = vpack.c.b16 %v1503, %v1503
      %v1506 = vpack.c.b16 %v1504, %v1504
      %1507 = vrot.lane.b32.xlu0 %v1505, 24
      %v1508 = vpop.permute.xlu0 %1507
      %1509 = vrot.lane.b32.xlu0 %v1506, 24
      %v1510 = vpop.permute.xlu0 %1509
      %vm1513 = vcmask 257216
      %1514 = vst.msk [vmem:[#allocation2] sm:$0xf] %vm1513, %v1508
      %vm1515 = vcmask 254144
      %1516 = vst.msk [vmem:[#allocation2 + $0x4] sm:$0x1] %vm1515, %v1510
      %v1517 = vld [vmem:[#allocation2] sm:$0xf]
      %v1518 = vld [vmem:[#allocation2 + $0x4] sm:$0x1]
      %v1519 = vld [vmem:[%s3] sm:$0xf]
      %v1520 = vld [vmem:[%s3 + $0x4] sm:$0xf]
      %v1521 = vld [vmem:[%s3 + $0x8] sm:$0xf]
      %v1522 = vld [vmem:[%s3 + $0xc] sm:$0xf]
      %v1523 = vld [vmem:[%s4] sm:$0x1]
      %v1525 = vlaneseq
      %v1526 = vshrl.u32 %v1525, 7
      %v1527 = vsub.s32 0, %v1526
      %v1528 = vrot.slane %v1523, %v1527
      %v1532 = vunpack.c.l.b16 %v1517
      %v1533 = vunpack.c.l.b16 %v1518
      %v1534 = vpack.c.b16 %v1533, %v1532
      %v1539 = vunpack.c.l.b16 %v1519
      %v1540 = vunpack.c.l.b16 %v1520
      %v1541 = vunpack.c.l.b16 %v1521
      %v1542 = vunpack.c.l.b16 %v1522
      %v1543 = vpack.c.b16 %v1540, %v1539
      %v1544 = vpack.c.b16 %v1542, %v1541
      %v1548 = vsel %vm310, %v1534, 0
      %1550 = vmatprep.subr.bf16.mxu0 0
      %1551 = vmatpush1.bf16.msra.mxu0 0
      %1552 = vmatprep.subr.bf16.mxu0 0
      %1553 = vmatpush1.bf16.msra.mxu0 0
      %1554 = vmatprep.subr.bf16.mxu0 0
      %1555 = vmatpush1.bf16.msra.mxu0 0
      %1556 = vmatprep.subr.bf16.mxu0 0
      %1557 = vmatpush1.bf16.msra.mxu0 0
      %1558 = vmatprep.subr.bf16.mxu0 0
      %1559 = vmatpush1.bf16.msra.mxu0 0
      %1560 = vmatprep.subr.bf16.mxu0 0
      %1561 = vmatpush1.bf16.msra.mxu0 0
      %1562 = vmatprep.subr.bf16.mxu0 0
      %1563 = vmatpush1.bf16.msra.mxu0 %v1544
      %1564 = vmatprep.subr.bf16.mxu0 0
      %1565 = vmatpush1.bf16.msra.mxu0 %v1543
      %1566 = vmatprep.subr.bf16.mxu0 0
      %1567 = vmatpush2.bf16.msra.mxu0 0
      %1568 = vmatprep.subr.bf16.mxu0 0
      %1569 = vmatpush2.bf16.msra.mxu0 0
      %1570 = vmatprep.subr.bf16.mxu0 0
      %1571 = vmatpush2.bf16.msra.mxu0 0
      %1572 = vmatprep.subr.bf16.mxu0 0
      %1573 = vmatpush2.bf16.msra.mxu0 0
      %1574 = vmatprep.subr.bf16.mxu0 0
      %1575 = vmatpush2.bf16.msra.mxu0 0
      %1576 = vmatprep.subr.bf16.mxu0 0
      %1577 = vmatpush2.bf16.msra.mxu0 0
      %1578 = vmatprep.subr.bf16.mxu0 0
      %1579 = vmatpush2.bf16.msra.mxu0 0
      %1580 = vmatprep.subr.bf16.mxu0 0
      %1581 = vmatpush2.bf16.msra.mxu0 0
      %1582 = vmatprep.mubr.bf16.mxu0 0
      %1583 = vmatmul.mubr.bf16.gmra.mxu0 %v1548
      %v1584 = vpop.f32.mrf.mxu0
      %v1585 = vadd.f32 %v1528, %v1584
      %v1586 = vpop.f32.mrf.mxu0
      %v1587 = vpop.f32.mrf.mxu0
      %v1588 = vadd.f32 %v1528, %v1587
      %v1589 = vpop.f32.mrf.mxu0
      %1590 = vdwg.mxu0
      %v1591 = vunpack.c.l.bf16 %v280
      %v1592 = vunpack.c.l.bf16 %v281
      %v1593 = vadd.f32 %v1585, %v1591
      %v1594 = vadd.f32 %v1588, %v1592
      %v1595 = vld [vmem:[%s5] sm:$0x1]
      %v1596 = vld [vmem:[%s6] sm:$0x1]
      %v1597 = vsel %vm310, %v1593, 0.0
      %1598 = vadd.xlane.f32.xlu0 %v1597
      %v1599 = vpop.xlane.xlu0 %1598
      %vm1600 = vcmask 254976
      %v1601 = vsel %vm1600, %v1594, 0.0
      %1602 = vadd.xlane.f32.xlu0 %v1601
      %v1603 = vpop.xlane.xlu0 %1602
      %v1604 = vrcp.pop 32.0
      %v1605 = vmul.f32 %v1599, %v1604
      %v1606 = vmul.f32 %v1603, %v1604
      %v1607 = vsub.f32 %v1593, %v1605
      %v1608 = vsub.f32 %v1594, %v1606
      %v1609 = vmul.f32 %v1607, %v1607
      %v1610 = vmul.f32 %v1608, %v1608
      %v1611 = vsel %vm310, %v1609, 0.0
      %1612 = vadd.xlane.f32.xlu0 %v1611
      %v1613 = vpop.xlane.xlu0 %1612
      %v1614 = vsel %vm1600, %v1610, 0.0
      %1615 = vadd.xlane.f32.xlu0 %v1614
      %v1616 = vpop.xlane.xlu0 %1615
      %v1617 = vmul.f32 %v1613, %v1604
      %v1618 = vmul.f32 %v1616, %v1604
      %v1619 = vadd.f32 %v1617, 1e-12
      %v1620 = vadd.f32 %v1618, 1e-12
      %v1621 = vrsqrt.pop %v1619
      %v1622 = vrsqrt.pop %v1620
      %v1623 = vmul.f32 %v1607, %v1621
      %v1624 = vmul.f32 %v1608, %v1622
      %v1626 = vlaneseq
      %v1627 = vshrl.u32 %v1626, 7
      %v1628 = vsub.s32 0, %v1627
      %v1629 = vrot.slane %v1595, %v1628
      %v1631 = vmul.f32 %v1623, %v1629
      %v1632 = vmul.f32 %v1624, %v1629
      %v1634 = vlaneseq
      %v1635 = vshrl.u32 %v1634, 7
      %v1636 = vsub.s32 0, %v1635
      %v1637 = vrot.slane %v1596, %v1636
      %v1639 = vadd.f32 %v1631, %v1637
      %v1640 = vadd.f32 %v1632, %v1637
      %v1641 = vpack.c.bf16 %v1640, %v1639
      %v1643 = vunpack.c.l.b16 %v1641
      %v1644 = vunpack.c.h.b16 %v1641
      %v1645 = vpack.c.b16 %v1643, %v1643
      %v1646 = vpack.c.b16 %v1644, %v1644
      %vm1649 = vcmask 257024
      %1650 = vst.msk [vmem:[%s278] sm:$0xf] %vm1649, %v1645
      %vm1651 = vcmask 253952
      %1652 = vst.msk [vmem:[%s278 + $0x4] sm:$0x1] %vm1651, %v1646
      %p1653 = scmp.lt.s32.totalorder %s18, 1
      %s1654 = scalar_select %p1653, %s18, 1
      %s1655 = smul.addr %s1654, 2
      %s1656 = smul.addr %s1655, 4
      %s1657 = scalar_lea.vmem %s7, %s1656
      // Predicated region
      $region49: #{bert_embedder_forward.27} parent=47 // pred_check
        %p1658 = pneg %p188
      $region50: #{bert_embedder_forward.27} parent=47 // pred_check_branch
        %1660 = sbr.rel (%p1658) target = $region52
      $region51: #{bert_embedder_forward.27} parent=47 // pred_region
        _
      $region52: #{bert_embedder_forward.27} parent=47 // pred_fallthru
        _
    $region48: #{bert_embedder_forward.27} parent=5 // pred_fallthru
      _
    %p1661 = scmp.le.s32.totalorder 2, %s13
    // Predicated region
    $region53: #{bert_embedder_forward.27} parent=5 // pred_check
      %p1662 = pneg %p1661
    $region54: #{bert_embedder_forward.27} parent=5 // pred_check_branch
      %1664 = sbr.rel (%p1662) target = $region56
    $region55: #{bert_embedder_forward.27} parent=5 // pred_region
      %s1665 = ssub.s32 %s13, 2
      // Predicated region
      $region57: #{bert_embedder_forward.27} parent=55 // pred_check
        %p1666 = pneg %p194
      $region58: #{bert_embedder_forward.27} parent=55 // pred_check_branch
        %1668 = sbr.rel (%p1666) target = $region60
      $region59: #{bert_embedder_forward.27} parent=55 // pred_region
        %p1669 = scmp.lt.s32.totalorder %s19, 1
        %s1670 = scalar_select %p1669, %s19, 1
        %s1671 = smul.addr %s1670, 2
        %s1672 = smul.addr %s1671, 4
        %s1673 = scalar_lea.vmem %s7, %s1672
      $region60: #{bert_embedder_forward.27} parent=55 // pred_fallthru
        _
    $region56: #{bert_embedder_forward.27} parent=5 // pred_fallthru
      _
  $region6: #{bert_embedder_forward.27} parent=0 // loop_footer
    %s17 = sadd.s32 1, %s13
  $region7: #{bert_embedder_forward.27} parent=0 // loop_footer_branch
    %12 = sbr.rel target = $region3
  $region8: #{bert_embedder_forward.27} parent=0 // loop_exit
    _

// kernel: bert_embedder_forward.51
$region0: #{bert_embedder_forward.51}
  #allocation0 [shape = 'u32[]', space=smem, size = 0x4, offset = 0x4, fixed_abs, tag = 'smem constant byte address 0x4 - core index']
  #allocation1 [shape = 'u32[144,128]{1,0:T(1,128)}', space=vmem, size = 0x12000, scoped, tag = 'internal scratch']
  %s0 = inlined_call_operand.vmem [shape: s32[2,1,6], index: 0, kind: input, shape index: {}]
  %s1 = inlined_call_operand.vmem [shape: f32[2,10,32], index: 1, kind: input, shape index: {}]
  %s2 = inlined_call_operand.vmem [shape: f32[2,6,32], index: 2, kind: output, shape index: {}]
  %s3 = sld [smem:[#allocation0]]
  $region41: #{bert_embedder_forward.51} parent=0
    _
  %s5 = ssub.s32 1, %s3
  %s6 = scalar_select 0, %s5, %s3
  loop: start=0, step=1, limit=4
  $region2: #{bert_embedder_forward.51} parent=0 // loop_pre_header
    _
  $region3: #{bert_embedder_forward.51} parent=0 // loop_header
    %s8 = sphi 0, %s12
    %p9 = scmp.ge.s32.totalorder %s8, 4
    %s18 = sphi 0, %s20
    %s21 = sphi 0, %s18
    %s22 = sphi 0, %s21
    %s38 = sphi 0, %s22
    %s44 = sphi 0, %s46
    %s47 = sphi 0, %s44
    %s48 = sphi 0, %s47
    %s64 = sphi 0, %s48
    %s70 = sphi 0, %s72
    %s73 = sphi 0, %s70
    %s74 = sphi 0, %s73
    %s90 = sphi 0, %s74
  $region4: #{bert_embedder_forward.51} parent=0 // loop_header_branch
    %11 = sbr.rel (%p9) target = $region8
  $region5: #{bert_embedder_forward.51} parent=0 // loop_body
    %s13 = ssub.s32 %s8, 1
    %s14 = ssub.s32 %s8, 2
    %s15 = sadd.s32 %s8, 1
    %s16 = ssub.s32 %s8, %s15
    %p17 = scmp.eq.s32.totalorder %s16, 0
    %s19 = sadd.s32 %s18, 1
    %s20 = scalar_select %p17, %s18, %s19
    %p23 = pneg %p17
    %p24 = scmp.eq.s32.totalorder %s8, 1
    %p25 = por %p23, %p24
    %p26 = scmp.ne.s32.totalorder %s18, %s21
    %p27 = scmp.eq.s32.totalorder %s8, 0
    %p28 = por %p26, %p27
    %p29 = scmp.ne.s32.totalorder %s18, %s21
    %p30 = scmp.eq.s32.totalorder %s13, 1
    %p31 = por %p29, %p30
    %p32 = scmp.ne.s32.totalorder %s21, %s22
    %p33 = scmp.eq.s32.totalorder %s13, 0
    %p34 = por %p32, %p33
    %p35 = scmp.ne.s32.totalorder %s21, %s22
    %p36 = scmp.eq.s32.totalorder %s14, 1
    %p37 = por %p35, %p36
    %p39 = scmp.ne.s32.totalorder %s22, %s38
    %p40 = scmp.eq.s32.totalorder %s14, 0
    %p41 = por %p39, %p40
    %s42 = ssub.s32 %s8, %s15
    %p43 = scmp.eq.s32.totalorder %s42, 0
    %s45 = sadd.s32 %s44, 1
    %s46 = scalar_select %p43, %s44, %s45
    %p49 = pneg %p43
    %p50 = scmp.eq.s32.totalorder %s8, 1
    %p51 = por %p49, %p50
    %p52 = scmp.ne.s32.totalorder %s44, %s47
    %p53 = scmp.eq.s32.totalorder %s8, 0
    %p54 = por %p52, %p53
    %p55 = scmp.ne.s32.totalorder %s44, %s47
    %p56 = scmp.eq.s32.totalorder %s13, 1
    %p57 = por %p55, %p56
    %p58 = scmp.ne.s32.totalorder %s47, %s48
    %p59 = scmp.eq.s32.totalorder %s13, 0
    %p60 = por %p58, %p59
    %p61 = scmp.ne.s32.totalorder %s47, %s48
    %p62 = scmp.eq.s32.totalorder %s14, 1
    %p63 = por %p61, %p62
    %p65 = scmp.ne.s32.totalorder %s48, %s64
    %p66 = scmp.eq.s32.totalorder %s14, 0
    %p67 = por %p65, %p66
    %s68 = ssub.s32 %s8, %s15
    %p69 = scmp.eq.s32.totalorder %s68, 0
    %s71 = sadd.s32 %s70, 1
    %s72 = scalar_select %p69, %s70, %s71
    %p75 = pneg %p69
    %p76 = scmp.eq.s32.totalorder %s8, 1
    %p77 = por %p75, %p76
    %p78 = scmp.ne.s32.totalorder %s70, %s73
    %p79 = scmp.eq.s32.totalorder %s8, 0
    %p80 = por %p78, %p79
    %p81 = scmp.ne.s32.totalorder %s70, %s73
    %p82 = scmp.eq.s32.totalorder %s13, 1
    %p83 = por %p81, %p82
    %p84 = scmp.ne.s32.totalorder %s73, %s74
    %p85 = scmp.eq.s32.totalorder %s13, 0
    %p86 = por %p84, %p85
    %p87 = scmp.ne.s32.totalorder %s73, %s74
    %p88 = scmp.eq.s32.totalorder %s14, 1
    %p89 = por %p87, %p88
    %p91 = scmp.ne.s32.totalorder %s74, %s90
    %p92 = scmp.eq.s32.totalorder %s14, 0
    %p93 = por %p91, %p92
    %p94 = scmp.le.s32.totalorder 1, %s8
    %p95 = scmp.lt.s32.totalorder %s8, 3
    %p96 = pnand %p94, %p95
    %p97 = pneg %p96
    // Predicated region
    $region9: #{bert_embedder_forward.51} parent=5 // pred_check
      _
    $region10: #{bert_embedder_forward.51} parent=5 // pred_check_branch
      %99 = sbr.rel (%p96) target = $region12
    $region11: #{bert_embedder_forward.51} parent=5 // pred_region
      %s100 = ssub.s32 %s8, 1
    $region12: #{bert_embedder_forward.51} parent=5 // pred_fallthru
      _
    %p101 = scmp.lt.s32.totalorder %s8, 2
    // Predicated region
    $region13: #{bert_embedder_forward.51} parent=5 // pred_check
      %p102 = pneg %p101
    $region14: #{bert_embedder_forward.51} parent=5 // pred_check_branch
      %104 = sbr.rel (%p102) target = $region16
    $region15: #{bert_embedder_forward.51} parent=5 // pred_region
      // Predicated region
      $region17: #{bert_embedder_forward.51} parent=15 // pred_check
        %p105 = pneg %p28
      $region18: #{bert_embedder_forward.51} parent=15 // pred_check_branch
        %107 = sbr.rel (%p105) target = $region20
      $region19: #{bert_embedder_forward.51} parent=15 // pred_region
        %p108 = scmp.lt.s32.totalorder %s8, 1
        %s109 = scalar_select %p108, %s8, 1
        %s110 = scalar_lea.vmem %s0, %s109
      $region20: #{bert_embedder_forward.51} parent=15 // pred_fallthru
        _
      // Predicated region
      $region21: #{bert_embedder_forward.51} parent=15 // pred_check
        %p111 = pneg %p54
      $region22: #{bert_embedder_forward.51} parent=15 // pred_check_branch
        %113 = sbr.rel (%p111) target = $region24
      $region23: #{bert_embedder_forward.51} parent=15 // pred_region
        %p114 = scmp.lt.s32.totalorder %s8, 1
        %s115 = scalar_select %p114, %s8, 1
        %s116 = smul.addr %s115, 2
        %s117 = smul.addr %s116, 8
        %s118 = scalar_lea.vmem %s1, %s117
      $region24: #{bert_embedder_forward.51} parent=15 // pred_fallthru
        _
    $region16: #{bert_embedder_forward.51} parent=5 // pred_fallthru
      _
    %p119 = scmp.le.s32.totalorder 1, %s8
    %p120 = scmp.lt.s32.totalorder %s8, 3
    %p121 = pnand %p119, %p120
    %p122 = pneg %p121
    // Predicated region
    $region25: #{bert_embedder_forward.51} parent=5 // pred_check
      _
    $region26: #{bert_embedder_forward.51} parent=5 // pred_check_branch
      %124 = sbr.rel (%p121) target = $region28
    $region27: #{bert_embedder_forward.51} parent=5 // pred_region
      %s125 = ssub.s32 %s8, 1
      %p126 = scmp.lt.s32.totalorder %s13, 1
      %s127 = scalar_select %p126, %s13, 1
      %s128 = scalar_lea.vmem %s0, %s127
      %p129 = pneg %p34
      %p130 = pneg %p31
      %p131 = scmp.lt.s32.totalorder %s13, 1
      %s132 = scalar_select %p131, %s13, 1
      %s133 = smul.addr %s132, 2
      %s134 = smul.addr %s133, 8
      %s135 = scalar_lea.vmem %s1, %s134
      %p136 = pneg %p60
      %p137 = pneg %p57
      %p138 = pneg %p86
      %p139 = pneg %p83
      %p140 = scmp.lt.s32.totalorder %s13, 1
      %s141 = scalar_select %p140, %s13, 1
      %s142 = smul.addr %s141, 8
      %s143 = scalar_lea.vmem %s2, %s142
      %p144 = scmp.lt.s32.totalorder %s13, 1
      %s145 = scalar_select %p144, %s13, 1
      %s146 = scalar_lea.vmem %s0, %s145
      %p147 = scmp.lt.s32.totalorder %s13, 1
      %s148 = scalar_select %p147, %s13, 1
      %s149 = smul.addr %s148, 2
      %s150 = smul.addr %s149, 8
      %s151 = scalar_lea.vmem %s1, %s150
      %p152 = scmp.lt.s32.totalorder %s13, 1
      %s153 = scalar_select %p152, %s13, 1
      %s154 = smul.addr %s153, 8
      %s155 = scalar_lea.vmem %s2, %s154
      %v156 = vld [vmem:[%s151] sm:$0xff]
      %v157 = vld [vmem:[%s151 + $0x8] sm:$0x3]
      %v158 = vld [vmem:[%s146] sm:$0x1]
      %v159 = vlaneseq
      %v160 = vshrl.u32 %v159, 7
      %v161 = vadd.s32 %v160, 8
      %v162 = vlaneseq
      %v163 = vshrl.u32 %v162, 7
      %v164 = vsub.s32 0, %v163
      %v165 = vrot.slane %v158, %v164
      %vm166 = vcmp.eq.s32.totalorder %v160, %v165
      %vm167 = vcmp.eq.s32.totalorder %v161, %v165
      %v168 = vsel %vm166, 1, 0
      %v169 = vsel %vm167, 1, 0
      %v170 = vcvt.s32.f32 %v168
      %v171 = vcvt.s32.f32 %v169
      %172 = vxpose.xlu0.b32.start [1/16] %v170, 128
      %173 = vxpose.xlu0.b32.cont [2/16] %v171, 128
      %174 = vxpose.xlu0.b32.cont [3/16] 0.0, 128
      %175 = vxpose.xlu0.b32.cont [4/16] 0.0, 128
      %176 = vxpose.xlu0.b32.cont [5/16] 0.0, 128
      %177 = vxpose.xlu0.b32.cont [6/16] 0.0, 128
      %178 = vxpose.xlu0.b32.cont [7/16] 0.0, 128
      %179 = vxpose.xlu0.b32.cont [8/16] 0.0, 128
      %180 = vxpose.xlu0.b32.cont [9/16] 0.0, 128
      %181 = vxpose.xlu0.b32.cont [10/16] 0.0, 128
      %182 = vxpose.xlu0.b32.cont [11/16] 0.0, 128
      %183 = vxpose.xlu0.b32.cont [12/16] 0.0, 128
      %184 = vxpose.xlu0.b32.cont [13/16] 0.0, 128
      %185 = vxpose.xlu0.b32.cont [14/16] 0.0, 128
      %186 = vxpose.xlu0.b32.cont [15/16] 0.0, 128
      %187 = vxpose.xlu0.b32.end [16/16] 0.0, 128
      %v188 = vpop.trf.xlu0
      %v189 = vpop.trf.xlu0
      %v190 = vpop.trf.xlu0
      %v191 = vpop.trf.xlu0
      %v192 = vpop.trf.xlu0
      %v193 = vpop.trf.xlu0
      %v194 = vpop.trf.xlu0
      %v195 = vpop.trf.xlu0
      %v196 = vpop.trf.xlu0
      %v197 = vpop.trf.xlu0
      %v198 = vpop.trf.xlu0
      %v199 = vpop.trf.xlu0
      %v200 = vpop.trf.xlu0
      %v201 = vpop.trf.xlu0
      %v202 = vpop.trf.xlu0
      %v203 = vpop.trf.xlu0
      %vm204 = vcmask 80896
      %v206 = vsel %vm204, %v188, 0
      %vm208 = vcmask 1041408
      %v210 = vsel %vm208, %v157, 0
      %212 = vmatprep.subr.mxu0 0.0
      %213 = vmatpush1.msra.mxu0 0.0
      %214 = vmatprep.subr.mxu0 0.0
      %215 = vmatpush1.msra.mxu0 0.0
      %216 = vmatprep.subr.mxu0 0.0
      %217 = vmatpush1.msra.mxu0 0.0
      %218 = vmatprep.subr.mxu0 0.0
      %219 = vmatpush1.msra.mxu0 0.0
      %220 = vmatprep.subr.mxu0 0.0
      %221 = vmatpush1.msra.mxu0 0.0
      %222 = vmatprep.subr.mxu0 0.0
      %223 = vmatpush1.msra.mxu0 0.0
      %224 = vmatprep.subr.mxu0 0.0
      %225 = vmatpush1.msra.mxu0 0.0
      %226 = vmatprep.subr.mxu0 0.0
      %227 = vmatpush1.msra.mxu0 0.0
      %228 = vmatprep.subr.mxu0 0.0
      %229 = vmatpush1.msra.mxu0 0.0
      %230 = vmatprep.subr.mxu0 0.0
      %231 = vmatpush1.msra.mxu0 0.0
      %232 = vmatprep.subr.mxu0 0.0
      %233 = vmatpush1.msra.mxu0 0.0
      %234 = vmatprep.subr.mxu0 0.0
      %235 = vmatpush1.msra.mxu0 0.0
      %236 = vmatprep.subr.mxu0 0.0
      %237 = vmatpush1.msra.mxu0 0.0
      %238 = vmatprep.subr.mxu0 0.0
      %239 = vmatpush1.msra.mxu0 0.0
      %240 = vmatprep.subr.mxu0 0.0
      %241 = vmatpush1.msra.mxu0 %v210
      %242 = vmatprep.subr.mxu0 0.0
      %243 = vmatpush1.msra.mxu0 %v156
      %244 = vmatprep.subr.mxu0 0.0
      %245 = vmatpush2.msra.mxu0 0.0
      %246 = vmatprep.subr.mxu0 0.0
      %247 = vmatpush2.msra.mxu0 0.0
      %248 = vmatprep.subr.mxu0 0.0
      %249 = vmatpush2.msra.mxu0 0.0
      %250 = vmatprep.subr.mxu0 0.0
      %251 = vmatpush2.msra.mxu0 0.0
      %252 = vmatprep.subr.mxu0 0.0
      %253 = vmatpush2.msra.mxu0 0.0
      %254 = vmatprep.subr.mxu0 0.0
      %255 = vmatpush2.msra.mxu0 0.0
      %256 = vmatprep.subr.mxu0 0.0
      %257 = vmatpush2.msra.mxu0 0.0
      %258 = vmatprep.subr.mxu0 0.0
      %259 = vmatpush2.msra.mxu0 0.0
      %260 = vmatprep.subr.mxu0 0.0
      %261 = vmatpush2.msra.mxu0 0.0
      %262 = vmatprep.subr.mxu0 0.0
      %263 = vmatpush2.msra.mxu0 0.0
      %264 = vmatprep.subr.mxu0 0.0
      %265 = vmatpush2.msra.mxu0 0.0
      %266 = vmatprep.subr.mxu0 0.0
      %267 = vmatpush2.msra.mxu0 0.0
      %268 = vmatprep.subr.mxu0 0.0
      %269 = vmatpush2.msra.mxu0 0.0
      %270 = vmatprep.subr.mxu0 0.0
      %271 = vmatpush2.msra.mxu0 0.0
      %272 = vmatprep.subr.mxu0 0.0
      %273 = vmatpush2.msra.mxu0 0.0
      %274 = vmatprep.subr.mxu0 0.0
      %275 = vmatpush2.msra.mxu0 0.0
      %276 = vmatprep.mubr.f32.mxu0 0.0
      %277 = vmatmul.mubr.f32.gmra.mxu0 %v206
      %v278 = vpop.f32.mrf.mxu0
      %v279 = vadd.f32 0.0, %v278
      %v280 = vpop.f32.mrf.mxu0
      %281 = vdwg.mxu0
      %vm282 = vcmask 259072
      %283 = vst.msk [vmem:[%s155] sm:$0x3f] %vm282, %v279
      %p284 = scmp.lt.s32.totalorder %s13, 1
      %s285 = scalar_select %p284, %s13, 1
      %s286 = smul.addr %s285, 8
      %s287 = scalar_lea.vmem %s2, %s286
      // Predicated region
      $region29: #{bert_embedder_forward.51} parent=27 // pred_check
        %p288 = pneg %p83
      $region30: #{bert_embedder_forward.51} parent=27 // pred_check_branch
        %290 = sbr.rel (%p288) target = $region32
      $region31: #{bert_embedder_forward.51} parent=27 // pred_region
        _
      $region32: #{bert_embedder_forward.51} parent=27 // pred_fallthru
        _
    $region28: #{bert_embedder_forward.51} parent=5 // pred_fallthru
      _
    %p291 = scmp.le.s32.totalorder 2, %s8
    // Predicated region
    $region33: #{bert_embedder_forward.51} parent=5 // pred_check
      %p292 = pneg %p291
    $region34: #{bert_embedder_forward.51} parent=5 // pred_check_branch
      %294 = sbr.rel (%p292) target = $region36
    $region35: #{bert_embedder_forward.51} parent=5 // pred_region
      %s295 = ssub.s32 %s8, 2
      // Predicated region
      $region37: #{bert_embedder_forward.51} parent=35 // pred_check
        %p296 = pneg %p89
      $region38: #{bert_embedder_forward.51} parent=35 // pred_check_branch
        %298 = sbr.rel (%p296) target = $region40
      $region39: #{bert_embedder_forward.51} parent=35 // pred_region
        %p299 = scmp.lt.s32.totalorder %s14, 1
        %s300 = scalar_select %p299, %s14, 1
        %s301 = smul.addr %s300, 8
        %s302 = scalar_lea.vmem %s2, %s301
      $region40: #{bert_embedder_forward.51} parent=35 // pred_fallthru
        _
    $region36: #{bert_embedder_forward.51} parent=5 // pred_fallthru
      _
  $region6: #{bert_embedder_forward.51} parent=0 // loop_footer
    %s12 = sadd.s32 1, %s8
  $region7: #{bert_embedder_forward.51} parent=0 // loop_footer_branch
    %7 = sbr.rel target = $region3
  $region8: #{bert_embedder_forward.51} parent=0 // loop_exit
    _

</llo_original>
